<compile_context>
chip_gen: v5e
topology: v5e:2x2
jax: 0.10.0
libtpu: 0.0.40
codegen_flags: <defaults>
</compile_context>

<pallas_src>
import functools

import jax
import jax.numpy as jnp
import numpy as np
from jax.experimental import pallas as pl
from jax.experimental.pallas import tpu as pltpu


# ------------------------------ Pallas kernel --------------------------------


def _llama_stack_kernel(
    x_ref, scale_ref,
    wqkv_ref, bqkv_ref, wo_ref, bo_ref,
    wff_ref, bff_ref, wglu_ref, bglu_ref,
    cos_ref, sin_ref, mask_ref,
    o_ref,
    act_ref,
    *, num_head,
):
    l = pl.program_id(0)
    H = num_head
    M, D = act_ref.shape                      # M = B*T tokens, D = latent
    inv_sqrt_d = float(D) ** (-0.5)

    # Layer-0: load the input activation into the persistent VMEM carry.
    @pl.when(l == 0)
    def _():
        act_ref[...] = x_ref[...]

    x = act_ref[...]                          # (M, D) f32
    scale = scale_ref[...]                    # (1, D) f32

    def rmsnorm(v):
        ms = jnp.mean(v * v, axis=-1, keepdims=True)
        return v * jax.lax.rsqrt(ms + 1e-6) * scale

    def bf16(v):
        return v.astype(jnp.bfloat16)

    h1 = rmsnorm(x)                           # (M, D) f32

    # ---- fused QKV projection (bf16 operands, f32 accumulation) --------------
    qkv = jnp.dot(bf16(h1), wqkv_ref[...],
                  preferred_element_type=jnp.float32) + bqkv_ref[...]   # (M, 3HD)

    # ---- pack heads: (M, H*D) column slices -> (H*M, D) rows, order (h, b, t)
    def pack(base):
        return jnp.concatenate(
            [qkv[:, (base + h) * D:(base + h + 1) * D] for h in range(H)], axis=0)

    q_p, k_p, v_p = pack(0), pack(H), pack(2 * H)        # each (H*M, D) f32

    # ---- RoPE in split (even | odd) layout: pair swap == lane roll by D/2 ----
    cos = cos_ref[...]                         # (H*M, D) precomputed per packed row
    sin = sin_ref[...]

    def rope(u):
        return u * cos + pltpu.roll(u, shift=D // 2, axis=1) * sin

    # ---- one full-tile score matmul for all (batch, head) pairs -------------
    s = jax.lax.dot_general(bf16(rope(q_p)), bf16(rope(k_p)),
                            (((1,), (1,)), ((), ())),
                            preferred_element_type=jnp.float32)        # (H*M, H*M)
    s = s * inv_sqrt_d + mask_ref[...]         # block-diagonal + causal additive mask
    smax = jnp.max(s, axis=-1, keepdims=True)
    e = jnp.exp(s - smax)
    p = e * pl.reciprocal(jnp.sum(e, axis=-1, keepdims=True), approx=True)
    attn = jnp.dot(bf16(p), bf16(v_p),
                   preferred_element_type=jnp.float32)                  # (H*M, D)

    # ---- unpack back to (M, H*D) (column order (h, d)) and project ----------
    attn_cat = jnp.concatenate(
        [attn[h * M:(h + 1) * M, :] for h in range(H)], axis=1)         # (M, H*D)
    mha = jnp.dot(bf16(attn_cat), wo_ref[...],
                  preferred_element_type=jnp.float32) + bo_ref[...]     # (M, D)

    x2 = h1 + mha                             # residual on the normed input
    h2 = rmsnorm(x2)

    # ---- fcn = Linear(D, D) -> SwiGLU(D) with fused (V|W) projection ---------
    y = jnp.dot(bf16(h2), wff_ref[...],
                preferred_element_type=jnp.float32) + bff_ref[...]      # (M, D)
    vw = jnp.dot(bf16(y), wglu_ref[...],
                 preferred_element_type=jnp.float32) + bglu_ref[...]    # (M, 2D)
    vv = vw[:, :D]
    ww = vw[:, D:]
    sig = 0.5 * (jnp.tanh(0.5 * vv) + 1.0)    # robust sigmoid (EUP tanh)
    out = h2 + ww * (vv * sig)                # PyTorch: x = rms(x2); x = x + fcn(x)

    act_ref[...] = out                        # carry to next layer

    @pl.when(l == pl.num_programs(0) - 1)
    def _():
        o_ref[...] = out


# -------------------------------- wrapper -------------------------------------


def llama_decoder_stack(x, params, *, num_head):
    B, T, D = x.shape
    H = num_head
    L = params["wqkv"].shape[0]
    M = B * T
    M2 = H * M

    def wspec(*shape):                         # per-layer stacked weight
        n = len(shape)
        return pl.BlockSpec((None,) + tuple(shape), lambda l: (l,) + (0,) * n)

    def cspec(*shape):                         # layer-invariant block
        n = len(shape)
        return pl.BlockSpec(tuple(shape), lambda l: (0,) * n)

    grid_spec = pltpu.PrefetchScalarGridSpec(
        num_scalar_prefetch=0,
        grid=(L,),
        in_specs=[
            cspec(M, D),                                   # x (read at layer 0)
            wspec(1, D),                                   # rmsnorm scale
            wspec(D, 3 * H * D), wspec(1, 3 * H * D),      # wqkv, bqkv
            wspec(H * D, D), wspec(1, D),                  # wo, bo
            wspec(D, D), wspec(1, D),                      # wff, bff
            wspec(D, 2 * D), wspec(1, 2 * D),              # wglu (V|W), bglu
            cspec(M2, D), cspec(M2, D),                    # packed cos, sin
            cspec(M2, M2),                                 # packed additive mask
        ],
        out_specs=cspec(M, D),
        scratch_shapes=[pltpu.VMEM((M, D), jnp.float32)],  # activation carry
    )

    out = pl.pallas_call(
        functools.partial(_llama_stack_kernel, num_head=H),
        out_shape=jax.ShapeDtypeStruct((M, D), jnp.float32),
        grid_spec=grid_spec,
        compiler_params=pltpu.CompilerParams(dimension_semantics=("arbitrary",)),
    )(x.reshape(M, D), params["scale"],
      params["wqkv"], params["bqkv"], params["wo"], params["bo"],
      params["wff"], params["bff"], params["wglu"], params["bglu"],
      params["cos"], params["sin"], params["mask"])
    return out.reshape(B, T, D)


# ------------------------- parameter initialization ---------------------------


def _rotary_matrices(context_length, D, rope_base=10000):
    """Exactly the PyTorch get_rotary_matrix (used by the pure-JAX reference)."""
    R = np.zeros((context_length, D, D), np.float64)
    for pos in range(context_length):
        for i in range(D // 2):
            th = pos * rope_base ** (-2.0 * i / D)
            c, s = np.cos(th), np.sin(th)
            R[pos, 2 * i, 2 * i] = c
            R[pos, 2 * i, 2 * i + 1] = -s
            R[pos, 2 * i + 1, 2 * i] = s
            R[pos, 2 * i + 1, 2 * i + 1] = c
    return jnp.asarray(R, jnp.float32)


def init_raw_params(key, num_head, latent_size):
    """Parameters in PyTorch layout: Linear weight is (out, in)."""
    D, H = latent_size, num_head

    def lin(k, out_dim, in_dim):
        kw, kb = jax.random.split(k)
        w = jax.random.normal(kw, (out_dim, in_dim), jnp.float32) * 0.05
        b = jax.random.normal(kb, (out_dim,), jnp.float32) * 0.05
        return w, b

    ks = jax.random.split(key, 7)

    def per_head(k):
        ws, bs = zip(*(lin(kk, D, D) for kk in jax.random.split(k, H)))
        return jnp.stack(ws), jnp.stack(bs)              # (H, D, D), (H, D)

    wq, bq = per_head(ks[0])
    wk, bk = per_head(ks[1])
    wv, bv = per_head(ks[2])
    wo, bo = lin(ks[3], D, H * D)
    w1, b1 = lin(ks[4], D, D)                            # fcn Linear
    wsw, bsw = lin(ks[5], D, D)                          # SwiGLU W
    vsw, bvs = lin(ks[6], D, D)                          # SwiGLU V

    return dict(scale=jnp.ones((D,), jnp.float32),
                wq=wq, bq=bq, wk=wk, bk=bk, wv=wv, bv=bv,
                wo=wo, bo=bo, w1=w1, b1=b1,
                wsw=wsw, bsw=bsw, vsw=vsw, bvs=bvs)


def pack_and_stack(raw_layers, num_head, latent_size):
    """Fuse / pre-transpose the PyTorch-layout weights and stack on a layer axis.

    - Wqkv: (D, 3*H*D) columns ordered [q_0..q_{H-1} | k_0..k_{H-1} | v_0..v_{H-1}];
      q/k output columns permuted to the split (even | odd) layout so RoPE's
      (2i <-> 2i+1) swap becomes pltpu.roll(D/2). Same permutation on q and k
      leaves q.k^T unchanged.
    - Wglu: (D, 2*D) = [V | W] fused SwiGLU projection.
    - Weights stored bf16 (halved DMA bytes, native MXU rate); biases/scale f32.
    """
    D, H = latent_size, num_head
    split = np.concatenate([np.arange(0, D, 2), np.arange(1, D, 2)])

    def pack_one(raw):
        wq = [np.asarray(raw["wq"][h]).T[:, split] for h in range(H)]
        wk = [np.asarray(raw["wk"][h]).T[:, split] for h in range(H)]
        wv = [np.asarray(raw["wv"][h]).T for h in range(H)]
        bq = [np.asarray(raw["bq"][h])[split] for h in range(H)]
        bk = [np.asarray(raw["bk"][h])[split] for h in range(H)]
        bv = [np.asarray(raw["bv"][h]) for h in range(H)]
        return dict(
            scale=np.asarray(raw["scale"]).reshape(1, D),
            wqkv=np.concatenate(wq + wk + wv, axis=1),
            bqkv=np.concatenate(bq + bk + bv).reshape(1, 3 * H * D),
            wo=np.asarray(raw["wo"]).T,
            bo=np.asarray(raw["bo"]).reshape(1, D),
            wff=np.asarray(raw["w1"]).T,
            bff=np.asarray(raw["b1"]).reshape(1, D),
            wglu=np.concatenate([np.asarray(raw["vsw"]).T,
                                 np.asarray(raw["wsw"]).T], axis=1),
            bglu=np.concatenate([np.asarray(raw["bvs"]),
                                 np.asarray(raw["bsw"])]).reshape(1, 2 * D),
        )

    packed = [pack_one(r) for r in raw_layers]

    def stk(name, dtype):
        return jnp.asarray(np.stack([p[name] for p in packed]), dtype)

    return dict(
        scale=stk("scale", jnp.float32),
        wqkv=stk("wqkv", jnp.bfloat16), bqkv=stk("bqkv", jnp.float32),
        wo=stk("wo", jnp.bfloat16), bo=stk("bo", jnp.float32),
        wff=stk("wff", jnp.bfloat16), bff=stk("bff", jnp.float32),
        wglu=stk("wglu", jnp.bfloat16), bglu=stk("bglu", jnp.float32),
    )


def attn_constants(batch, seq, num_head, latent_size, rope_base=10000):
    """Packed-row (h, b, t) RoPE tables (split layout) and attention mask."""
    B, T, H, D = batch, seq, num_head, latent_size
    pos = np.arange(T, dtype=np.float64)[:, None]
    i = np.arange(D // 2, dtype=np.float64)[None, :]
    theta = pos * rope_base ** (-2.0 * i / D)                 # (T, D/2)
    c, s = np.cos(theta), np.sin(theta)
    cos_t = np.concatenate([c, c], axis=1)                    # (T, D) split layout
    sin_t = np.concatenate([s, -s], axis=1)
    cos_p = np.tile(cos_t, (H * B, 1))                        # (H*B*T, D)
    sin_p = np.tile(sin_t, (H * B, 1))

    idx = np.arange(H * B * T)
    hb = idx // T                                             # combined (head, batch)
    t = idx % T
    valid = (hb[:, None] == hb[None, :]) & (t[None, :] <= t[:, None])
    mask = np.where(valid, 0.0, -1e30)                        # additive, finite

    return dict(cos=jnp.asarray(cos_p, jnp.float32),
                sin=jnp.asarray(sin_p, jnp.float32),
                mask=jnp.asarray(mask, jnp.float32))


# ---------------------------- pure-JAX reference -------------------------------


def reference_decoder_block(x, raw, rotary, num_head):
    """Faithful mirror of the PyTorch DecoderBlock forward (incl. rotary bmm)."""
    B, T, D = x.shape
    scale = raw["scale"]

    def rms(v):
        return v * jax.lax.rsqrt(jnp.mean(v * v, -1, keepdims=True) + 1e-6) * scale

    h1 = rms(x)
    R = rotary[:T]                                            # (T, D, D)
    mask = np.triu(np.ones((T, T), bool), 1)

    heads = []
    for h in range(num_head):
        q = h1 @ raw["wq"][h].T + raw["bq"][h]
        k = h1 @ raw["wk"][h].T + raw["bk"][h]
        v = h1 @ raw["wv"][h].T + raw["bv"][h]
        q = jnp.einsum("btd,tde->bte", q, R)
        k = jnp.einsum("btd,tde->bte", k, R)
        s = jnp.einsum("btd,bsd->bts", q, k) * D ** (-0.5)
        s = jnp.where(mask, -jnp.inf, s)
        a = jax.nn.softmax(s, -1)
        heads.append(jnp.einsum("bts,bsd->btd", a, v))

    mha = jnp.concatenate(heads, -1) @ raw["wo"].T + raw["bo"]
    x2 = h1 + mha
    h2 = rms(x2)
    y = h2 @ raw["w1"].T + raw["b1"]
    vv = y @ raw["vsw"].T + raw["bvs"]
    ww = y @ raw["wsw"].T + raw["bsw"]
    return h2 + ww * (vv * jax.nn.sigmoid(vv))


# ----------------------------------- main --------------------------------------


if __name__ == "__main__":
    # Module-consistent small shapes. Note: M = B*T = 32 underfills the MXU rows;
    # at real sizes increase B (or T) so M approaches 128/256 for free throughput.
    B, NUM_LAYERS, NUM_HEAD, CTX, D = 2, 2, 4, 16, 128

    key = jax.random.PRNGKey(0)
    kx, *kl = jax.random.split(key, NUM_LAYERS + 1)
    x = jax.random.normal(kx, (B, CTX, D), jnp.float32)

    raw_layers = [init_raw_params(k, NUM_HEAD, D) for k in kl]
    params = pack_and_stack(raw_layers, NUM_HEAD, D)
    params.update(attn_constants(B, CTX, NUM_HEAD, D))

    out = jax.block_until_ready(llama_decoder_stack(x, params, num_head=NUM_HEAD))

    rotary = _rotary_matrices(CTX, D)
    ref = x
    for raw in raw_layers:
        ref = reference_decoder_block(ref, raw, rotary, NUM_HEAD)

    assert out.shape == (B, CTX, D)
    # Tolerance loosened vs. pure-f32 parity: matmul operands are bf16 (f32 acc)
    # and the softmax denominator uses the EUP approx reciprocal.
    np.testing.assert_allclose(np.asarray(out), np.asarray(ref), rtol=3e-2, atol=3e-2)
    print("KERNEL_OK")
</pallas_src>

<mosaic_0001>
module attributes {stable_mosaic.version = 11 : i64} {
  func.func @_llama_stack_kernel(%arg0: i32, %arg1: memref<32x128xf32, #tpu.memory_space<vmem>>, %arg2: memref<1x1x128xf32, #tpu.memory_space<vmem>>, %arg3: memref<1x128x1536xbf16, #tpu.memory_space<vmem>>, %arg4: memref<1x1x1536xf32, #tpu.memory_space<vmem>>, %arg5: memref<1x512x128xbf16, #tpu.memory_space<vmem>>, %arg6: memref<1x1x128xf32, #tpu.memory_space<vmem>>, %arg7: memref<1x128x128xbf16, #tpu.memory_space<vmem>>, %arg8: memref<1x1x128xf32, #tpu.memory_space<vmem>>, %arg9: memref<1x128x256xbf16, #tpu.memory_space<vmem>>, %arg10: memref<1x1x256xf32, #tpu.memory_space<vmem>>, %arg11: memref<128x128xf32, #tpu.memory_space<vmem>>, %arg12: memref<128x128xf32, #tpu.memory_space<vmem>>, %arg13: memref<128x128xf32, #tpu.memory_space<vmem>>, %arg14: memref<32x128xf32, #tpu.memory_space<vmem>>, %arg15: memref<32x128xf32, #tpu.memory_space<vmem>>) attributes {dimension_semantics = [#tpu.dimension_semantics<arbitrary>], iteration_bounds = array<i64: 2>, scalar_prefetch = 0 : i64, scratch_operands = 1 : i64, tpu.core_type = #tpu.core_type<tc>, window_params = [{pipeline_mode = #tpu.pipeline_mode<synchronous>, transform_indices = @transform_0, window_bounds = array<i64: 32, 128>}, {transform_indices = @transform_1, window_bounds = array<i64: 1, 1, 128>}, {transform_indices = @transform_2, window_bounds = array<i64: 1, 128, 1536>}, {transform_indices = @transform_3, window_bounds = array<i64: 1, 1, 1536>}, {transform_indices = @transform_4, window_bounds = array<i64: 1, 512, 128>}, {transform_indices = @transform_5, window_bounds = array<i64: 1, 1, 128>}, {transform_indices = @transform_6, window_bounds = array<i64: 1, 128, 128>}, {transform_indices = @transform_7, window_bounds = array<i64: 1, 1, 128>}, {transform_indices = @transform_8, window_bounds = array<i64: 1, 128, 256>}, {transform_indices = @transform_9, window_bounds = array<i64: 1, 1, 256>}, {pipeline_mode = #tpu.pipeline_mode<synchronous>, transform_indices = @transform_10, window_bounds = array<i64: 128, 128>}, {pipeline_mode = #tpu.pipeline_mode<synchronous>, transform_indices = @transform_11, window_bounds = array<i64: 128, 128>}, {pipeline_mode = #tpu.pipeline_mode<synchronous>, transform_indices = @transform_12, window_bounds = array<i64: 128, 128>}, {pipeline_mode = #tpu.pipeline_mode<synchronous>, transform_indices = @transform_13, window_bounds = array<i64: 32, 128>}]} {
    %c0_i32 = arith.constant 0 : i32
    %0 = arith.cmpi eq, %arg0, %c0_i32 : i32
    %1 = arith.extui %0 : i1 to i32
    %c0_i32_0 = arith.constant 0 : i32
    %2 = arith.cmpi ne, %1, %c0_i32_0 : i32
    scf.if %2 {
      %c0_56 = arith.constant 0 : index
      %c0_57 = arith.constant 0 : index
      %129 = vector.load %arg1[%c0_56, %c0_57] : memref<32x128xf32, #tpu.memory_space<vmem>>, vector<32x128xf32>
      %c0_58 = arith.constant 0 : index
      %c0_59 = arith.constant 0 : index
      %130 = vector.load %arg15[%c0_58, %c0_59] : memref<32x128xf32, #tpu.memory_space<vmem>>, vector<32x128xf32>
      tpu.vector_store %arg15[%c0_58, %c0_59], %129 {strides = array<i32>} : memref<32x128xf32, #tpu.memory_space<vmem>>, vector<32x128xf32>,
    } else {
    }
    %c0 = arith.constant 0 : index
    %c0_1 = arith.constant 0 : index
    %3 = vector.load %arg15[%c0, %c0_1] : memref<32x128xf32, #tpu.memory_space<vmem>>, vector<32x128xf32>
    %c0_2 = arith.constant 0 : index
    %c0_3 = arith.constant 0 : index
    %c0_4 = arith.constant 0 : index
    %4 = vector.load %arg2[%c0_2, %c0_3, %c0_4] : memref<1x1x128xf32, #tpu.memory_space<vmem>>, vector<1x1x128xf32>
    %5 = vector.shape_cast %4 : vector<1x1x128xf32> to vector<1x128xf32>
    %6 = arith.mulf %3, %3 : vector<32x128xf32>
    %cst = arith.constant dense<0.000000e+00> : vector<32xf32>
    %7 = vector.multi_reduction <add>, %6, %cst [1] : vector<32x128xf32> to vector<32xf32>
    %8 = vector.shape_cast %7 : vector<32xf32> to vector<32x1xf32>
    %cst_5 = arith.constant 1.280000e+02 : f32
    %9 = vector.broadcast %cst_5 : f32 to vector<32x1xf32>
    %10 = arith.divf %8, %9 : vector<32x1xf32>
    %cst_6 = arith.constant 9.99999997E-7 : f32
    %11 = vector.broadcast %cst_6 : f32 to vector<32x1xf32>
    %12 = arith.addf %10, %11 : vector<32x1xf32>
    %13 = math.rsqrt %12 : vector<32x1xf32>
    %14 = vector.broadcast %13 : vector<32x1xf32> to vector<32x128xf32>
    %15 = arith.mulf %3, %14 : vector<32x128xf32>
    %16 = vector.broadcast %5 : vector<1x128xf32> to vector<32x128xf32>
    %17 = arith.mulf %15, %16 : vector<32x128xf32>
    %18 = arith.truncf %17 : vector<32x128xf32> to vector<32x128xbf16>
    %c0_7 = arith.constant 0 : index
    %c0_8 = arith.constant 0 : index
    %c0_9 = arith.constant 0 : index
    %19 = vector.load %arg3[%c0_7, %c0_8, %c0_9] : memref<1x128x1536xbf16, #tpu.memory_space<vmem>>, vector<1x128x1536xbf16>
    %20 = vector.shape_cast %19 : vector<1x128x1536xbf16> to vector<128x1536xbf16>
    %cst_10 = arith.constant dense<0.000000e+00> : vector<32x1536xf32>
    %21 = tpu.matmul %18, %20, %cst_10 {dimension_numbers = #tpu.dot_dimension_numbers<[1], [0], [0], [1], [0, 0, 1, 1], [], []>} : vector<32x128xbf16>, vector<128x1536xbf16>, vector<32x1536xf32> -> vector<32x1536xf32>
    %c0_11 = arith.constant 0 : index
    %c0_12 = arith.constant 0 : index
    %c0_13 = arith.constant 0 : index
    %22 = vector.load %arg4[%c0_11, %c0_12, %c0_13] : memref<1x1x1536xf32, #tpu.memory_space<vmem>>, vector<1x1x1536xf32>
    %23 = vector.shape_cast %22 : vector<1x1x1536xf32> to vector<1x1536xf32>
    %24 = vector.broadcast %23 : vector<1x1536xf32> to vector<32x1536xf32>
    %25 = arith.addf %21, %24 : vector<32x1536xf32>
    %26 = vector.extract_strided_slice %25 {offsets = [0, 0], sizes = [32, 128], strides = [1, 1]} : vector<32x1536xf32> to vector<32x128xf32>
    %27 = vector.extract_strided_slice %25 {offsets = [0, 128], sizes = [32, 128], strides = [1, 1]} : vector<32x1536xf32> to vector<32x128xf32>
    %28 = vector.extract_strided_slice %25 {offsets = [0, 256], sizes = [32, 128], strides = [1, 1]} : vector<32x1536xf32> to vector<32x128xf32>
    %29 = vector.extract_strided_slice %25 {offsets = [0, 384], sizes = [32, 128], strides = [1, 1]} : vector<32x1536xf32> to vector<32x128xf32>
    %30 = tpu.concatenate %26, %27, %28, %29 in 0 : vector<32x128xf32>, vector<32x128xf32>, vector<32x128xf32>, vector<32x128xf32> -> vector<128x128xf32>
    %31 = vector.extract_strided_slice %25 {offsets = [0, 512], sizes = [32, 128], strides = [1, 1]} : vector<32x1536xf32> to vector<32x128xf32>
    %32 = vector.extract_strided_slice %25 {offsets = [0, 640], sizes = [32, 128], strides = [1, 1]} : vector<32x1536xf32> to vector<32x128xf32>
    %33 = vector.extract_strided_slice %25 {offsets = [0, 768], sizes = [32, 128], strides = [1, 1]} : vector<32x1536xf32> to vector<32x128xf32>
    %34 = vector.extract_strided_slice %25 {offsets = [0, 896], sizes = [32, 128], strides = [1, 1]} : vector<32x1536xf32> to vector<32x128xf32>
    %35 = tpu.concatenate %31, %32, %33, %34 in 0 : vector<32x128xf32>, vector<32x128xf32>, vector<32x128xf32>, vector<32x128xf32> -> vector<128x128xf32>
    %36 = vector.extract_strided_slice %25 {offsets = [0, 1024], sizes = [32, 128], strides = [1, 1]} : vector<32x1536xf32> to vector<32x128xf32>
    %37 = vector.extract_strided_slice %25 {offsets = [0, 1152], sizes = [32, 128], strides = [1, 1]} : vector<32x1536xf32> to vector<32x128xf32>
    %38 = vector.extract_strided_slice %25 {offsets = [0, 1280], sizes = [32, 128], strides = [1, 1]} : vector<32x1536xf32> to vector<32x128xf32>
    %39 = vector.extract_strided_slice %25 {offsets = [0, 1408], sizes = [32, 128], strides = [1, 1]} : vector<32x1536xf32> to vector<32x128xf32>
    %40 = tpu.concatenate %36, %37, %38, %39 in 0 : vector<32x128xf32>, vector<32x128xf32>, vector<32x128xf32>, vector<32x128xf32> -> vector<128x128xf32>
    %c0_14 = arith.constant 0 : index
    %c0_15 = arith.constant 0 : index
    %41 = vector.load %arg11[%c0_14, %c0_15] : memref<128x128xf32, #tpu.memory_space<vmem>>, vector<128x128xf32>
    %c0_16 = arith.constant 0 : index
    %c0_17 = arith.constant 0 : index
    %42 = vector.load %arg12[%c0_16, %c0_17] : memref<128x128xf32, #tpu.memory_space<vmem>>, vector<128x128xf32>
    %43 = arith.mulf %30, %41 : vector<128x128xf32>
    %c64_i32 = arith.constant 64 : i32
    %44 = tpu.dynamic_rotate %30 by %c64_i32 dim 1 : vector<128x128xf32>, i32 -> vector<128x128xf32>
    %45 = arith.mulf %44, %42 : vector<128x128xf32>
    %46 = arith.addf %43, %45 : vector<128x128xf32>
    %47 = arith.truncf %46 : vector<128x128xf32> to vector<128x128xbf16>
    %48 = arith.mulf %35, %41 : vector<128x128xf32>
    %c64_i32_18 = arith.constant 64 : i32
    %49 = tpu.dynamic_rotate %35 by %c64_i32_18 dim 1 : vector<128x128xf32>, i32 -> vector<128x128xf32>
    %50 = arith.mulf %49, %42 : vector<128x128xf32>
    %51 = arith.addf %48, %50 : vector<128x128xf32>
    %52 = arith.truncf %51 : vector<128x128xf32> to vector<128x128xbf16>
    %cst_19 = arith.constant dense<0.000000e+00> : vector<128x128xf32>
    %53 = tpu.matmul %47, %52, %cst_19 {dimension_numbers = #tpu.dot_dimension_numbers<[1], [1], [0], [0], [0, 0, 1, 0], [], []>} : vector<128x128xbf16>, vector<128x128xbf16>, vector<128x128xf32> -> vector<128x128xf32>
    %cst_20 = arith.constant 0.0883883461 : f32
    %54 = vector.broadcast %cst_20 : f32 to vector<128x128xf32>
    %55 = arith.mulf %53, %54 : vector<128x128xf32>
    %c0_21 = arith.constant 0 : index
    %c0_22 = arith.constant 0 : index
    %56 = vector.load %arg13[%c0_21, %c0_22] : memref<128x128xf32, #tpu.memory_space<vmem>>, vector<128x128xf32>
    %57 = arith.addf %55, %56 : vector<128x128xf32>
    %cst_23 = arith.constant dense<0xFF800000> : vector<128xf32>
    %58 = vector.multi_reduction <maximumf>, %57, %cst_23 [1] : vector<128x128xf32> to vector<128xf32>
    %59 = vector.shape_cast %58 : vector<128xf32> to vector<128x1xf32>
    %60 = vector.broadcast %59 : vector<128x1xf32> to vector<128x128xf32>
    %61 = arith.subf %57, %60 : vector<128x128xf32>
    %62 = math.exp %61 : vector<128x128xf32>
    %cst_24 = arith.constant dense<0.000000e+00> : vector<128xf32>
    %63 = vector.multi_reduction <add>, %62, %cst_24 [1] : vector<128x128xf32> to vector<128xf32>
    %64 = vector.shape_cast %63 : vector<128xf32> to vector<128x1xf32>
    %65 = tpu.reciprocal %64 {approx = true} : vector<128x1xf32> -> vector<128x1xf32>
    %66 = vector.broadcast %65 : vector<128x1xf32> to vector<128x128xf32>
    %67 = arith.mulf %62, %66 : vector<128x128xf32>
    %68 = arith.truncf %67 : vector<128x128xf32> to vector<128x128xbf16>
    %69 = arith.truncf %40 : vector<128x128xf32> to vector<128x128xbf16>
    %cst_25 = arith.constant dense<0.000000e+00> : vector<128x128xf32>
    %70 = tpu.matmul %68, %69, %cst_25 {dimension_numbers = #tpu.dot_dimension_numbers<[1], [0], [0], [1], [0, 0, 1, 1], [], []>} : vector<128x128xbf16>, vector<128x128xbf16>, vector<128x128xf32> -> vector<128x128xf32>
    %71 = vector.extract_strided_slice %70 {offsets = [0, 0], sizes = [32, 128], strides = [1, 1]} : vector<128x128xf32> to vector<32x128xf32>
    %72 = vector.extract_strided_slice %70 {offsets = [32, 0], sizes = [32, 128], strides = [1, 1]} : vector<128x128xf32> to vector<32x128xf32>
    %73 = vector.extract_strided_slice %70 {offsets = [64, 0], sizes = [32, 128], strides = [1, 1]} : vector<128x128xf32> to vector<32x128xf32>
    %74 = vector.extract_strided_slice %70 {offsets = [96, 0], sizes = [32, 128], strides = [1, 1]} : vector<128x128xf32> to vector<32x128xf32>
    %75 = tpu.concatenate %71, %72, %73, %74 in 1 : vector<32x128xf32>, vector<32x128xf32>, vector<32x128xf32>, vector<32x128xf32> -> vector<32x512xf32>
    %76 = arith.truncf %75 : vector<32x512xf32> to vector<32x512xbf16>
    %c0_26 = arith.constant 0 : index
    %c0_27 = arith.constant 0 : index
    %c0_28 = arith.constant 0 : index
    %77 = vector.load %arg5[%c0_26, %c0_27, %c0_28] : memref<1x512x128xbf16, #tpu.memory_space<vmem>>, vector<1x512x128xbf16>
    %78 = vector.shape_cast %77 : vector<1x512x128xbf16> to vector<512x128xbf16>
    %cst_29 = arith.constant dense<0.000000e+00> : vector<32x128xf32>
    %79 = tpu.matmul %76, %78, %cst_29 {dimension_numbers = #tpu.dot_dimension_numbers<[1], [0], [0], [1], [0, 0, 1, 1], [], []>} : vector<32x512xbf16>, vector<512x128xbf16>, vector<32x128xf32> -> vector<32x128xf32>
    %c0_30 = arith.constant 0 : index
    %c0_31 = arith.constant 0 : index
    %c0_32 = arith.constant 0 : index
    %80 = vector.load %arg6[%c0_30, %c0_31, %c0_32] : memref<1x1x128xf32, #tpu.memory_space<vmem>>, vector<1x1x128xf32>
    %81 = vector.shape_cast %80 : vector<1x1x128xf32> to vector<1x128xf32>
    %82 = vector.broadcast %81 : vector<1x128xf32> to vector<32x128xf32>
    %83 = arith.addf %79, %82 : vector<32x128xf32>
    %84 = arith.addf %17, %83 : vector<32x128xf32>
    %85 = arith.mulf %84, %84 : vector<32x128xf32>
    %cst_33 = arith.constant dense<0.000000e+00> : vector<32xf32>
    %86 = vector.multi_reduction <add>, %85, %cst_33 [1] : vector<32x128xf32> to vector<32xf32>
    %87 = vector.shape_cast %86 : vector<32xf32> to vector<32x1xf32>
    %cst_34 = arith.constant 1.280000e+02 : f32
    %88 = vector.broadcast %cst_34 : f32 to vector<32x1xf32>
    %89 = arith.divf %87, %88 : vector<32x1xf32>
    %cst_35 = arith.constant 9.99999997E-7 : f32
    %90 = vector.broadcast %cst_35 : f32 to vector<32x1xf32>
    %91 = arith.addf %89, %90 : vector<32x1xf32>
    %92 = math.rsqrt %91 : vector<32x1xf32>
    %93 = vector.broadcast %92 : vector<32x1xf32> to vector<32x128xf32>
    %94 = arith.mulf %84, %93 : vector<32x128xf32>
    %95 = vector.broadcast %5 : vector<1x128xf32> to vector<32x128xf32>
    %96 = arith.mulf %94, %95 : vector<32x128xf32>
    %97 = arith.truncf %96 : vector<32x128xf32> to vector<32x128xbf16>
    %c0_36 = arith.constant 0 : index
    %c0_37 = arith.constant 0 : index
    %c0_38 = arith.constant 0 : index
    %98 = vector.load %arg7[%c0_36, %c0_37, %c0_38] : memref<1x128x128xbf16, #tpu.memory_space<vmem>>, vector<1x128x128xbf16>
    %99 = vector.shape_cast %98 : vector<1x128x128xbf16> to vector<128x128xbf16>
    %cst_39 = arith.constant dense<0.000000e+00> : vector<32x128xf32>
    %100 = tpu.matmul %97, %99, %cst_39 {dimension_numbers = #tpu.dot_dimension_numbers<[1], [0], [0], [1], [0, 0, 1, 1], [], []>} : vector<32x128xbf16>, vector<128x128xbf16>, vector<32x128xf32> -> vector<32x128xf32>
    %c0_40 = arith.constant 0 : index
    %c0_41 = arith.constant 0 : index
    %c0_42 = arith.constant 0 : index
    %101 = vector.load %arg8[%c0_40, %c0_41, %c0_42] : memref<1x1x128xf32, #tpu.memory_space<vmem>>, vector<1x1x128xf32>
    %102 = vector.shape_cast %101 : vector<1x1x128xf32> to vector<1x128xf32>
    %103 = vector.broadcast %102 : vector<1x128xf32> to vector<32x128xf32>
    %104 = arith.addf %100, %103 : vector<32x128xf32>
    %105 = arith.truncf %104 : vector<32x128xf32> to vector<32x128xbf16>
    %c0_43 = arith.constant 0 : index
    %c0_44 = arith.constant 0 : index
    %c0_45 = arith.constant 0 : index
    %106 = vector.load %arg9[%c0_43, %c0_44, %c0_45] : memref<1x128x256xbf16, #tpu.memory_space<vmem>>, vector<1x128x256xbf16>
    %107 = vector.shape_cast %106 : vector<1x128x256xbf16> to vector<128x256xbf16>
    %cst_46 = arith.constant dense<0.000000e+00> : vector<32x256xf32>
    %108 = tpu.matmul %105, %107, %cst_46 {dimension_numbers = #tpu.dot_dimension_numbers<[1], [0], [0], [1], [0, 0, 1, 1], [], []>} : vector<32x128xbf16>, vector<128x256xbf16>, vector<32x256xf32> -> vector<32x256xf32>
    %c0_47 = arith.constant 0 : index
    %c0_48 = arith.constant 0 : index
    %c0_49 = arith.constant 0 : index
    %109 = vector.load %arg10[%c0_47, %c0_48, %c0_49] : memref<1x1x256xf32, #tpu.memory_space<vmem>>, vector<1x1x256xf32>
    %110 = vector.shape_cast %109 : vector<1x1x256xf32> to vector<1x256xf32>
    %111 = vector.broadcast %110 : vector<1x256xf32> to vector<32x256xf32>
    %112 = arith.addf %108, %111 : vector<32x256xf32>
    %113 = vector.extract_strided_slice %112 {offsets = [0, 0], sizes = [32, 128], strides = [1, 1]} : vector<32x256xf32> to vector<32x128xf32>
    %114 = vector.extract_strided_slice %112 {offsets = [0, 128], sizes = [32, 128], strides = [1, 1]} : vector<32x256xf32> to vector<32x128xf32>
    %cst_50 = arith.constant 5.000000e-01 : f32
    %115 = vector.broadcast %cst_50 : f32 to vector<32x128xf32>
    %116 = arith.mulf %115, %113 : vector<32x128xf32>
    %117 = math.tanh %116 : vector<32x128xf32>
    %cst_51 = arith.constant 1.000000e+00 : f32
    %118 = vector.broadcast %cst_51 : f32 to vector<32x128xf32>
    %119 = arith.addf %117, %118 : vector<32x128xf32>
    %cst_52 = arith.constant 5.000000e-01 : f32
    %120 = vector.broadcast %cst_52 : f32 to vector<32x128xf32>
    %121 = arith.mulf %120, %119 : vector<32x128xf32>
    %122 = arith.mulf %113, %121 : vector<32x128xf32>
    %123 = arith.mulf %114, %122 : vector<32x128xf32>
    %124 = arith.addf %96, %123 : vector<32x128xf32>
    %c0_53 = arith.constant 0 : index
    %c0_54 = arith.constant 0 : index
    %125 = vector.load %arg15[%c0_53, %c0_54] : memref<32x128xf32, #tpu.memory_space<vmem>>, vector<32x128xf32>
    tpu.vector_store %arg15[%c0_53, %c0_54], %124 {strides = array<i32>} : memref<32x128xf32, #tpu.memory_space<vmem>>, vector<32x128xf32>,
    %c1_i32 = arith.constant 1 : i32
    %126 = arith.cmpi eq, %arg0, %c1_i32 : i32
    %127 = arith.extui %126 : i1 to i32
    %c0_i32_55 = arith.constant 0 : i32
    %128 = arith.cmpi ne, %127, %c0_i32_55 : i32
    scf.if %128 {
      %c0_56 = arith.constant 0 : index
      %c0_57 = arith.constant 0 : index
      %129 = vector.load %arg14[%c0_56, %c0_57] : memref<32x128xf32, #tpu.memory_space<vmem>>, vector<32x128xf32>
      tpu.vector_store %arg14[%c0_56, %c0_57], %124 {strides = array<i32>} : memref<32x128xf32, #tpu.memory_space<vmem>>, vector<32x128xf32>,
    } else {
    }
    return
  }
  func.func @transform_0(%arg0: i32) -> (i32, i32) {
    %c0_i32 = arith.constant 0 : i32
    %c0_i32_0 = arith.constant 0 : i32
    %c0_i32_1 = arith.constant 0 : i32
    return %c0_i32, %c0_i32_0 : i32, i32
  }
  func.func @transform_1(%arg0: i32) -> (i32, i32, i32) {
    %c0_i32 = arith.constant 0 : i32
    %c0_i32_0 = arith.constant 0 : i32
    %c0_i32_1 = arith.constant 0 : i32
    return %arg0, %c0_i32, %c0_i32_0 : i32, i32, i32
  }
  func.func @transform_2(%arg0: i32) -> (i32, i32, i32) {
    %c0_i32 = arith.constant 0 : i32
    %c0_i32_0 = arith.constant 0 : i32
    %c0_i32_1 = arith.constant 0 : i32
    return %arg0, %c0_i32, %c0_i32_0 : i32, i32, i32
  }
  func.func @transform_3(%arg0: i32) -> (i32, i32, i32) {
    %c0_i32 = arith.constant 0 : i32
    %c0_i32_0 = arith.constant 0 : i32
    %c0_i32_1 = arith.constant 0 : i32
    return %arg0, %c0_i32, %c0_i32_0 : i32, i32, i32
  }
  func.func @transform_4(%arg0: i32) -> (i32, i32, i32) {
    %c0_i32 = arith.constant 0 : i32
    %c0_i32_0 = arith.constant 0 : i32
    %c0_i32_1 = arith.constant 0 : i32
    return %arg0, %c0_i32, %c0_i32_0 : i32, i32, i32
  }
  func.func @transform_5(%arg0: i32) -> (i32, i32, i32) {
    %c0_i32 = arith.constant 0 : i32
    %c0_i32_0 = arith.constant 0 : i32
    %c0_i32_1 = arith.constant 0 : i32
    return %arg0, %c0_i32, %c0_i32_0 : i32, i32, i32
  }
  func.func @transform_6(%arg0: i32) -> (i32, i32, i32) {
    %c0_i32 = arith.constant 0 : i32
    %c0_i32_0 = arith.constant 0 : i32
    %c0_i32_1 = arith.constant 0 : i32
    return %arg0, %c0_i32, %c0_i32_0 : i32, i32, i32
  }
  func.func @transform_7(%arg0: i32) -> (i32, i32, i32) {
    %c0_i32 = arith.constant 0 : i32
    %c0_i32_0 = arith.constant 0 : i32
    %c0_i32_1 = arith.constant 0 : i32
    return %arg0, %c0_i32, %c0_i32_0 : i32, i32, i32
  }
  func.func @transform_8(%arg0: i32) -> (i32, i32, i32) {
    %c0_i32 = arith.constant 0 : i32
    %c0_i32_0 = arith.constant 0 : i32
    %c0_i32_1 = arith.constant 0 : i32
    return %arg0, %c0_i32, %c0_i32_0 : i32, i32, i32
  }
  func.func @transform_9(%arg0: i32) -> (i32, i32, i32) {
    %c0_i32 = arith.constant 0 : i32
    %c0_i32_0 = arith.constant 0 : i32
    %c0_i32_1 = arith.constant 0 : i32
    return %arg0, %c0_i32, %c0_i32_0 : i32, i32, i32
  }
  func.func @transform_10(%arg0: i32) -> (i32, i32) {
    %c0_i32 = arith.constant 0 : i32
    %c0_i32_0 = arith.constant 0 : i32
    %c0_i32_1 = arith.constant 0 : i32
    return %c0_i32, %c0_i32_0 : i32, i32
  }
  func.func @transform_11(%arg0: i32) -> (i32, i32) {
    %c0_i32 = arith.constant 0 : i32
    %c0_i32_0 = arith.constant 0 : i32
    %c0_i32_1 = arith.constant 0 : i32
    return %c0_i32, %c0_i32_0 : i32, i32
  }
  func.func @transform_12(%arg0: i32) -> (i32, i32) {
    %c0_i32 = arith.constant 0 : i32
    %c0_i32_0 = arith.constant 0 : i32
    %c0_i32_1 = arith.constant 0 : i32
    return %c0_i32, %c0_i32_0 : i32, i32
  }
  func.func @transform_13(%arg0: i32) -> (i32, i32) {
    %c0_i32 = arith.constant 0 : i32
    %c0_i32_0 = arith.constant 0 : i32
    %c0_i32_1 = arith.constant 0 : i32
    return %c0_i32, %c0_i32_0 : i32, i32
  }
}

</mosaic_0001>

<llo_original>
// kernel: tpu_custom_call.1
$region0: #{tpu_custom_call.1}
  #allocation0 [shape = 'u32[]', space=smem, size = 0x4, offset = 0x4, fixed_abs, tag = 'smem constant byte address 0x4 - core index']
  #allocation1 [shape = 'u32[72,128]{1,0:T(1,128)}', space=vmem, size = 0x9000, scoped, tag = 'internal scratch']
  #allocation2 [shape = 'f32[32,128]{1,0:T(8,128)}', space=vmem, size = 0x4000, scoped, tag = 'scratch operand']
  %s0 = inlined_call_operand.hbm [shape: f32[32,128], index: 0, kind: input, shape index: {}]
  %s1 = inlined_call_operand.hbm [shape: f32[2,1,128], index: 1, kind: input, shape index: {}]
  %s2 = inlined_call_operand.hbm [shape: bf16[2,128,1536], index: 2, kind: input, shape index: {}]
  %s3 = inlined_call_operand.hbm [shape: f32[2,1,1536], index: 3, kind: input, shape index: {}]
  %s4 = inlined_call_operand.hbm [shape: bf16[2,512,128], index: 4, kind: input, shape index: {}]
  %s5 = inlined_call_operand.vmem [shape: f32[2,1,128], index: 5, kind: input, shape index: {}]
  %s6 = inlined_call_operand.hbm [shape: bf16[2,128,128], index: 6, kind: input, shape index: {}]
  %s7 = inlined_call_operand.hbm [shape: f32[2,1,128], index: 7, kind: input, shape index: {}]
  %s8 = inlined_call_operand.hbm [shape: bf16[2,128,256], index: 8, kind: input, shape index: {}]
  %s9 = inlined_call_operand.vmem [shape: f32[2,1,256], index: 9, kind: input, shape index: {}]
  %s10 = inlined_call_operand.hbm [shape: f32[128,128], index: 10, kind: input, shape index: {}]
  %s11 = inlined_call_operand.hbm [shape: f32[128,128], index: 11, kind: input, shape index: {}]
  %s12 = inlined_call_operand.hbm [shape: f32[128,128], index: 12, kind: input, shape index: {}]
  %s13 = inlined_call_operand.hbm [shape: f32[32,128], index: 13, kind: output, shape index: {}]
  %s14 = sld [smem:[#allocation0]]
  $region137: #{tpu_custom_call.1} parent=0
    _
  %s16 = ssub.s32 1, %s14
  %s17 = scalar_select 0, %s16, %s14
  $region1: #{tpu_custom_call.1} parent=0
    #allocation3 [shape = 'u8[16384]{0}', space=vmem, size = 0x4000, scoped, tag = 'input window, operand 0, single buffered']
    #allocation4 [shape = 's32[2]{0}', space=sflag, size = 0x8, scoped, tag = 'scoped memory for tpu_custom_call.1']
    #allocation5 [shape = 's32[2]{0}', space=sflag, size = 0x8, scoped, tag = 'scoped memory for tpu_custom_call.1']
    #allocation6 [shape = 'u8[1024]{0}', space=vmem, size = 0x400, scoped, tag = 'input window, operand 1']
    #allocation7 [shape = 's32[2]{0}', space=sflag, size = 0x8, scoped, tag = 'scoped memory for tpu_custom_call.1']
    #allocation8 [shape = 'u8[786432]{0}', space=vmem, size = 0xc0000, scoped, tag = 'input window, operand 2']
    #allocation9 [shape = 'u8[12288]{0}', space=vmem, size = 0x3000, scoped, tag = 'input window, operand 3']
    #allocation10 [shape = 's32[2]{0}', space=sflag, size = 0x8, scoped, tag = 'scoped memory for tpu_custom_call.1']
    #allocation11 [shape = 'u8[262144]{0}', space=vmem, size = 0x40000, scoped, tag = 'input window, operand 4']
    #allocation12 [shape = 'u8[65536]{0}', space=vmem, size = 0x10000, scoped, tag = 'input window, operand 6']
    #allocation13 [shape = 's32[2]{0}', space=sflag, size = 0x8, scoped, tag = 'scoped memory for tpu_custom_call.1']
    #allocation14 [shape = 'u8[1024]{0}', space=vmem, size = 0x400, scoped, tag = 'input window, operand 7']
    #allocation15 [shape = 'u8[131072]{0}', space=vmem, size = 0x20000, scoped, tag = 'input window, operand 8']
    #allocation16 [shape = 's32[2]{0}', space=sflag, size = 0x8, scoped, tag = 'scoped memory for tpu_custom_call.1']
    #allocation17 [shape = 'u8[65536]{0}', space=vmem, size = 0x10000, scoped, tag = 'input window, operand 10, single buffered']
    #allocation18 [shape = 'u8[65536]{0}', space=vmem, size = 0x10000, scoped, tag = 'input window, operand 11, single buffered']
    #allocation19 [shape = 's32[1]{0}', space=sflag, size = 0x4, scoped, tag = 'scoped memory for tpu_custom_call.1']
    #allocation20 [shape = 'u8[65536]{0}', space=vmem, size = 0x10000, scoped, tag = 'input window, operand 12, single buffered']
    #allocation21 [shape = 'u8[16384]{0}', space=vmem, size = 0x4000, scoped, tag = 'output window, operand 0, single buffered']
    %18 = vsyncpa [#allocation4], 0
    %19 = vsyncpa [#allocation7], 0
    %s20 = scalar_lea.sflag [#allocation7], 1
    %21 = vsyncpa %s20, 0
    %22 = vsyncpa [#allocation10], 0
    %s23 = scalar_lea.sflag [#allocation10], 1
    %24 = vsyncpa %s23, 0
    %25 = vsyncpa [#allocation13], 0
    %s26 = scalar_lea.sflag [#allocation13], 1
    %27 = vsyncpa %s26, 0
    %28 = vsyncpa [#allocation16], 0
    %s29 = scalar_lea.sflag [#allocation16], 1
    %30 = vsyncpa %s29, 0
    %31 = vsyncpa [#allocation19], 0
    %32 = vsyncpa [#allocation5], 0
    loop: start=0, step=1, limit=4
    $region2: #{tpu_custom_call.1} parent=1 // loop_pre_header
      _
    $region3: #{tpu_custom_call.1} parent=1 // loop_header
      %s34 = sphi 0, %s38
      %p35 = scmp.ge.s32.totalorder %s34, 4
      %s42 = sphi 0, %s42
      %s44 = sphi 0, %s42
      %s45 = sphi 0, %s44
      %s59 = sphi 0, %s45
      %s65 = sphi 0, %s67
      %s68 = sphi 0, %s65
      %s69 = sphi 0, %s68
      %s85 = sphi 0, %s69
      %s91 = sphi 0, %s93
      %s94 = sphi 0, %s91
      %s95 = sphi 0, %s94
      %s111 = sphi 0, %s95
      %s117 = sphi 0, %s119
      %s120 = sphi 0, %s117
      %s121 = sphi 0, %s120
      %s137 = sphi 0, %s121
      %s143 = sphi 0, %s145
      %s146 = sphi 0, %s143
      %s147 = sphi 0, %s146
      %s163 = sphi 0, %s147
      %s169 = sphi 0, %s171
      %s172 = sphi 0, %s169
      %s173 = sphi 0, %s172
      %s189 = sphi 0, %s173
      %s195 = sphi 0, %s197
      %s198 = sphi 0, %s195
      %s199 = sphi 0, %s198
      %s215 = sphi 0, %s199
      %s221 = sphi 0, %s223
      %s224 = sphi 0, %s221
      %s225 = sphi 0, %s224
      %s241 = sphi 0, %s225
      %s247 = sphi 0, %s249
      %s250 = sphi 0, %s247
      %s251 = sphi 0, %s250
      %s267 = sphi 0, %s251
      %s273 = sphi 0, %s275
      %s276 = sphi 0, %s273
      %s277 = sphi 0, %s276
      %s293 = sphi 0, %s277
      %s297 = sphi 0, %s297
      %s299 = sphi 0, %s297
      %s300 = sphi 0, %s299
      %s314 = sphi 0, %s300
      %s318 = sphi 0, %s318
      %s320 = sphi 0, %s318
      %s321 = sphi 0, %s320
      %s335 = sphi 0, %s321
      %s339 = sphi 0, %s339
      %s341 = sphi 0, %s339
      %s342 = sphi 0, %s341
      %s356 = sphi 0, %s342
      %s360 = sphi 0, %s360
      %s362 = sphi 0, %s360
      %s363 = sphi 0, %s362
      %s377 = sphi 0, %s363
    $region4: #{tpu_custom_call.1} parent=1 // loop_header_branch
      %37 = sbr.rel (%p35) target = $region8
    $region5: #{tpu_custom_call.1} parent=1 // loop_body
      %s39 = ssub.s32 %s34, 1
      %s40 = ssub.s32 %s34, 2
      %s41 = sadd.s32 %s34, 1
      %s43 = sadd.s32 %s42, 1
      %p46 = scmp.eq.s32.totalorder %s34, 1
      %p47 = scmp.ne.s32.totalorder %s42, %s44
      %p48 = scmp.eq.s32.totalorder %s34, 0
      %p49 = por %p47, %p48
      %p50 = scmp.ne.s32.totalorder %s42, %s44
      %p51 = scmp.eq.s32.totalorder %s39, 1
      %p52 = por %p50, %p51
      %p53 = scmp.ne.s32.totalorder %s44, %s45
      %p54 = scmp.eq.s32.totalorder %s39, 0
      %p55 = por %p53, %p54
      %p56 = scmp.ne.s32.totalorder %s44, %s45
      %p57 = scmp.eq.s32.totalorder %s40, 1
      %p58 = por %p56, %p57
      %p60 = scmp.ne.s32.totalorder %s45, %s59
      %p61 = scmp.eq.s32.totalorder %s40, 0
      %p62 = por %p60, %p61
      %s63 = ssub.s32 %s34, %s41
      %p64 = scmp.eq.s32.totalorder %s63, 0
      %s66 = sadd.s32 %s65, 1
      %s67 = scalar_select %p64, %s65, %s66
      %p70 = pneg %p64
      %p71 = scmp.eq.s32.totalorder %s34, 1
      %p72 = por %p70, %p71
      %p73 = scmp.ne.s32.totalorder %s65, %s68
      %p74 = scmp.eq.s32.totalorder %s34, 0
      %p75 = por %p73, %p74
      %p76 = scmp.ne.s32.totalorder %s65, %s68
      %p77 = scmp.eq.s32.totalorder %s39, 1
      %p78 = por %p76, %p77
      %p79 = scmp.ne.s32.totalorder %s68, %s69
      %p80 = scmp.eq.s32.totalorder %s39, 0
      %p81 = por %p79, %p80
      %p82 = scmp.ne.s32.totalorder %s68, %s69
      %p83 = scmp.eq.s32.totalorder %s40, 1
      %p84 = por %p82, %p83
      %p86 = scmp.ne.s32.totalorder %s69, %s85
      %p87 = scmp.eq.s32.totalorder %s40, 0
      %p88 = por %p86, %p87
      %s89 = ssub.s32 %s34, %s41
      %p90 = scmp.eq.s32.totalorder %s89, 0
      %s92 = sadd.s32 %s91, 1
      %s93 = scalar_select %p90, %s91, %s92
      %p96 = pneg %p90
      %p97 = scmp.eq.s32.totalorder %s34, 1
      %p98 = por %p96, %p97
      %p99 = scmp.ne.s32.totalorder %s91, %s94
      %p100 = scmp.eq.s32.totalorder %s34, 0
      %p101 = por %p99, %p100
      %p102 = scmp.ne.s32.totalorder %s91, %s94
      %p103 = scmp.eq.s32.totalorder %s39, 1
      %p104 = por %p102, %p103
      %p105 = scmp.ne.s32.totalorder %s94, %s95
      %p106 = scmp.eq.s32.totalorder %s39, 0
      %p107 = por %p105, %p106
      %p108 = scmp.ne.s32.totalorder %s94, %s95
      %p109 = scmp.eq.s32.totalorder %s40, 1
      %p110 = por %p108, %p109
      %p112 = scmp.ne.s32.totalorder %s95, %s111
      %p113 = scmp.eq.s32.totalorder %s40, 0
      %p114 = por %p112, %p113
      %s115 = ssub.s32 %s34, %s41
      %p116 = scmp.eq.s32.totalorder %s115, 0
      %s118 = sadd.s32 %s117, 1
      %s119 = scalar_select %p116, %s117, %s118
      %p122 = pneg %p116
      %p123 = scmp.eq.s32.totalorder %s34, 1
      %p124 = por %p122, %p123
      %p125 = scmp.ne.s32.totalorder %s117, %s120
      %p126 = scmp.eq.s32.totalorder %s34, 0
      %p127 = por %p125, %p126
      %p128 = scmp.ne.s32.totalorder %s117, %s120
      %p129 = scmp.eq.s32.totalorder %s39, 1
      %p130 = por %p128, %p129
      %p131 = scmp.ne.s32.totalorder %s120, %s121
      %p132 = scmp.eq.s32.totalorder %s39, 0
      %p133 = por %p131, %p132
      %p134 = scmp.ne.s32.totalorder %s120, %s121
      %p135 = scmp.eq.s32.totalorder %s40, 1
      %p136 = por %p134, %p135
      %p138 = scmp.ne.s32.totalorder %s121, %s137
      %p139 = scmp.eq.s32.totalorder %s40, 0
      %p140 = por %p138, %p139
      %s141 = ssub.s32 %s34, %s41
      %p142 = scmp.eq.s32.totalorder %s141, 0
      %s144 = sadd.s32 %s143, 1
      %s145 = scalar_select %p142, %s143, %s144
      %p148 = pneg %p142
      %p149 = scmp.eq.s32.totalorder %s34, 1
      %p150 = por %p148, %p149
      %p151 = scmp.ne.s32.totalorder %s143, %s146
      %p152 = scmp.eq.s32.totalorder %s34, 0
      %p153 = por %p151, %p152
      %p154 = scmp.ne.s32.totalorder %s143, %s146
      %p155 = scmp.eq.s32.totalorder %s39, 1
      %p156 = por %p154, %p155
      %p157 = scmp.ne.s32.totalorder %s146, %s147
      %p158 = scmp.eq.s32.totalorder %s39, 0
      %p159 = por %p157, %p158
      %p160 = scmp.ne.s32.totalorder %s146, %s147
      %p161 = scmp.eq.s32.totalorder %s40, 1
      %p162 = por %p160, %p161
      %p164 = scmp.ne.s32.totalorder %s147, %s163
      %p165 = scmp.eq.s32.totalorder %s40, 0
      %p166 = por %p164, %p165
      %s167 = ssub.s32 %s34, %s41
      %p168 = scmp.eq.s32.totalorder %s167, 0
      %s170 = sadd.s32 %s169, 1
      %s171 = scalar_select %p168, %s169, %s170
      %p174 = pneg %p168
      %p175 = scmp.eq.s32.totalorder %s34, 1
      %p176 = por %p174, %p175
      %p177 = scmp.ne.s32.totalorder %s169, %s172
      %p178 = scmp.eq.s32.totalorder %s34, 0
      %p179 = por %p177, %p178
      %p180 = scmp.ne.s32.totalorder %s169, %s172
      %p181 = scmp.eq.s32.totalorder %s39, 1
      %p182 = por %p180, %p181
      %p183 = scmp.ne.s32.totalorder %s172, %s173
      %p184 = scmp.eq.s32.totalorder %s39, 0
      %p185 = por %p183, %p184
      %p186 = scmp.ne.s32.totalorder %s172, %s173
      %p187 = scmp.eq.s32.totalorder %s40, 1
      %p188 = por %p186, %p187
      %p190 = scmp.ne.s32.totalorder %s173, %s189
      %p191 = scmp.eq.s32.totalorder %s40, 0
      %p192 = por %p190, %p191
      %s193 = ssub.s32 %s34, %s41
      %p194 = scmp.eq.s32.totalorder %s193, 0
      %s196 = sadd.s32 %s195, 1
      %s197 = scalar_select %p194, %s195, %s196
      %p200 = pneg %p194
      %p201 = scmp.eq.s32.totalorder %s34, 1
      %p202 = por %p200, %p201
      %p203 = scmp.ne.s32.totalorder %s195, %s198
      %p204 = scmp.eq.s32.totalorder %s34, 0
      %p205 = por %p203, %p204
      %p206 = scmp.ne.s32.totalorder %s195, %s198
      %p207 = scmp.eq.s32.totalorder %s39, 1
      %p208 = por %p206, %p207
      %p209 = scmp.ne.s32.totalorder %s198, %s199
      %p210 = scmp.eq.s32.totalorder %s39, 0
      %p211 = por %p209, %p210
      %p212 = scmp.ne.s32.totalorder %s198, %s199
      %p213 = scmp.eq.s32.totalorder %s40, 1
      %p214 = por %p212, %p213
      %p216 = scmp.ne.s32.totalorder %s199, %s215
      %p217 = scmp.eq.s32.totalorder %s40, 0
      %p218 = por %p216, %p217
      %s219 = ssub.s32 %s34, %s41
      %p220 = scmp.eq.s32.totalorder %s219, 0
      %s222 = sadd.s32 %s221, 1
      %s223 = scalar_select %p220, %s221, %s222
      %p226 = pneg %p220
      %p227 = scmp.eq.s32.totalorder %s34, 1
      %p228 = por %p226, %p227
      %p229 = scmp.ne.s32.totalorder %s221, %s224
      %p230 = scmp.eq.s32.totalorder %s34, 0
      %p231 = por %p229, %p230
      %p232 = scmp.ne.s32.totalorder %s221, %s224
      %p233 = scmp.eq.s32.totalorder %s39, 1
      %p234 = por %p232, %p233
      %p235 = scmp.ne.s32.totalorder %s224, %s225
      %p236 = scmp.eq.s32.totalorder %s39, 0
      %p237 = por %p235, %p236
      %p238 = scmp.ne.s32.totalorder %s224, %s225
      %p239 = scmp.eq.s32.totalorder %s40, 1
      %p240 = por %p238, %p239
      %p242 = scmp.ne.s32.totalorder %s225, %s241
      %p243 = scmp.eq.s32.totalorder %s40, 0
      %p244 = por %p242, %p243
      %s245 = ssub.s32 %s34, %s41
      %p246 = scmp.eq.s32.totalorder %s245, 0
      %s248 = sadd.s32 %s247, 1
      %s249 = scalar_select %p246, %s247, %s248
      %p252 = pneg %p246
      %p253 = scmp.eq.s32.totalorder %s34, 1
      %p254 = por %p252, %p253
      %p255 = scmp.ne.s32.totalorder %s247, %s250
      %p256 = scmp.eq.s32.totalorder %s34, 0
      %p257 = por %p255, %p256
      %p258 = scmp.ne.s32.totalorder %s247, %s250
      %p259 = scmp.eq.s32.totalorder %s39, 1
      %p260 = por %p258, %p259
      %p261 = scmp.ne.s32.totalorder %s250, %s251
      %p262 = scmp.eq.s32.totalorder %s39, 0
      %p263 = por %p261, %p262
      %p264 = scmp.ne.s32.totalorder %s250, %s251
      %p265 = scmp.eq.s32.totalorder %s40, 1
      %p266 = por %p264, %p265
      %p268 = scmp.ne.s32.totalorder %s251, %s267
      %p269 = scmp.eq.s32.totalorder %s40, 0
      %p270 = por %p268, %p269
      %s271 = ssub.s32 %s34, %s41
      %p272 = scmp.eq.s32.totalorder %s271, 0
      %s274 = sadd.s32 %s273, 1
      %s275 = scalar_select %p272, %s273, %s274
      %p278 = pneg %p272
      %p279 = scmp.eq.s32.totalorder %s34, 1
      %p280 = por %p278, %p279
      %p281 = scmp.ne.s32.totalorder %s273, %s276
      %p282 = scmp.eq.s32.totalorder %s34, 0
      %p283 = por %p281, %p282
      %p284 = scmp.ne.s32.totalorder %s273, %s276
      %p285 = scmp.eq.s32.totalorder %s39, 1
      %p286 = por %p284, %p285
      %p287 = scmp.ne.s32.totalorder %s276, %s277
      %p288 = scmp.eq.s32.totalorder %s39, 0
      %p289 = por %p287, %p288
      %p290 = scmp.ne.s32.totalorder %s276, %s277
      %p291 = scmp.eq.s32.totalorder %s40, 1
      %p292 = por %p290, %p291
      %p294 = scmp.ne.s32.totalorder %s277, %s293
      %p295 = scmp.eq.s32.totalorder %s40, 0
      %p296 = por %p294, %p295
      %s298 = sadd.s32 %s297, 1
      %p301 = scmp.eq.s32.totalorder %s34, 1
      %p302 = scmp.ne.s32.totalorder %s297, %s299
      %p303 = scmp.eq.s32.totalorder %s34, 0
      %p304 = por %p302, %p303
      %p305 = scmp.ne.s32.totalorder %s297, %s299
      %p306 = scmp.eq.s32.totalorder %s39, 1
      %p307 = por %p305, %p306
      %p308 = scmp.ne.s32.totalorder %s299, %s300
      %p309 = scmp.eq.s32.totalorder %s39, 0
      %p310 = por %p308, %p309
      %p311 = scmp.ne.s32.totalorder %s299, %s300
      %p312 = scmp.eq.s32.totalorder %s40, 1
      %p313 = por %p311, %p312
      %p315 = scmp.ne.s32.totalorder %s300, %s314
      %p316 = scmp.eq.s32.totalorder %s40, 0
      %p317 = por %p315, %p316
      %s319 = sadd.s32 %s318, 1
      %p322 = scmp.eq.s32.totalorder %s34, 1
      %p323 = scmp.ne.s32.totalorder %s318, %s320
      %p324 = scmp.eq.s32.totalorder %s34, 0
      %p325 = por %p323, %p324
      %p326 = scmp.ne.s32.totalorder %s318, %s320
      %p327 = scmp.eq.s32.totalorder %s39, 1
      %p328 = por %p326, %p327
      %p329 = scmp.ne.s32.totalorder %s320, %s321
      %p330 = scmp.eq.s32.totalorder %s39, 0
      %p331 = por %p329, %p330
      %p332 = scmp.ne.s32.totalorder %s320, %s321
      %p333 = scmp.eq.s32.totalorder %s40, 1
      %p334 = por %p332, %p333
      %p336 = scmp.ne.s32.totalorder %s321, %s335
      %p337 = scmp.eq.s32.totalorder %s40, 0
      %p338 = por %p336, %p337
      %s340 = sadd.s32 %s339, 1
      %p343 = scmp.eq.s32.totalorder %s34, 1
      %p344 = scmp.ne.s32.totalorder %s339, %s341
      %p345 = scmp.eq.s32.totalorder %s34, 0
      %p346 = por %p344, %p345
      %p347 = scmp.ne.s32.totalorder %s339, %s341
      %p348 = scmp.eq.s32.totalorder %s39, 1
      %p349 = por %p347, %p348
      %p350 = scmp.ne.s32.totalorder %s341, %s342
      %p351 = scmp.eq.s32.totalorder %s39, 0
      %p352 = por %p350, %p351
      %p353 = scmp.ne.s32.totalorder %s341, %s342
      %p354 = scmp.eq.s32.totalorder %s40, 1
      %p355 = por %p353, %p354
      %p357 = scmp.ne.s32.totalorder %s342, %s356
      %p358 = scmp.eq.s32.totalorder %s40, 0
      %p359 = por %p357, %p358
      %s361 = sadd.s32 %s360, 1
      %p364 = scmp.eq.s32.totalorder %s34, 1
      %p365 = scmp.ne.s32.totalorder %s360, %s362
      %p366 = scmp.eq.s32.totalorder %s34, 0
      %p367 = por %p365, %p366
      %p368 = scmp.ne.s32.totalorder %s360, %s362
      %p369 = scmp.eq.s32.totalorder %s39, 1
      %p370 = por %p368, %p369
      %p371 = scmp.ne.s32.totalorder %s362, %s363
      %p372 = scmp.eq.s32.totalorder %s39, 0
      %p373 = por %p371, %p372
      %p374 = scmp.ne.s32.totalorder %s362, %s363
      %p375 = scmp.eq.s32.totalorder %s40, 1
      %p376 = por %p374, %p375
      %p378 = scmp.ne.s32.totalorder %s363, %s377
      %p379 = scmp.eq.s32.totalorder %s40, 0
      %p380 = por %p378, %p379
      %p381 = scmp.le.s32.totalorder 1, %s34
      %p382 = scmp.lt.s32.totalorder %s34, 3
      %p383 = pnand %p381, %p382
      %p384 = pneg %p383
      // Predicated region
      $region9: #{tpu_custom_call.1} parent=5 // pred_check
        _
      $region10: #{tpu_custom_call.1} parent=5 // pred_check_branch
        %386 = sbr.rel (%p383) target = $region12
      $region11: #{tpu_custom_call.1} parent=5 // pred_region
        %s387 = ssub.s32 %s34, 1
        // Predicated region
        $region13: #{tpu_custom_call.1} parent=11 // pred_check
          %p388 = pneg %p55
        $region14: #{tpu_custom_call.1} parent=11 // pred_check_branch
          %390 = sbr.rel (%p388) target = $region16
        $region15: #{tpu_custom_call.1} parent=11 // pred_region
          %392 = vsyncadd [#allocation4], 0
          %s393 = sshll.u32 %s0, 4
          %s394 = int_to_ptr.hbm [resolvable:$true] %s393
          %s395 = sshll.u32 [#allocation3], 4
          %s396 = int_to_ptr.vmem [resolvable:$true] %s395
          %401 = dma.hbm_to_vmem [thread:$0]  %s394, 512, %s396, [#allocation4], 128, 128, 8
        $region16: #{tpu_custom_call.1} parent=11 // pred_fallthru
          _
        // Predicated region
        $region17: #{tpu_custom_call.1} parent=11 // pred_check
          %p402 = pneg %p310
        $region18: #{tpu_custom_call.1} parent=11 // pred_check_branch
          %404 = sbr.rel (%p402) target = $region20
        $region19: #{tpu_custom_call.1} parent=11 // pred_region
          %406 = vsyncadd [#allocation16], 0
          %s407 = sshll.u32 %s10, 4
          %s408 = int_to_ptr.hbm [resolvable:$true] %s407
          %s409 = sshll.u32 [#allocation17], 4
          %s410 = int_to_ptr.vmem [resolvable:$true] %s409
          %415 = dma.hbm_to_vmem [thread:$0]  %s408, 2048, %s410, [#allocation16], 128, 128, 8
        $region20: #{tpu_custom_call.1} parent=11 // pred_fallthru
          _
        // Predicated region
        $region21: #{tpu_custom_call.1} parent=11 // pred_check
          %p416 = pneg %p331
        $region22: #{tpu_custom_call.1} parent=11 // pred_check_branch
          %418 = sbr.rel (%p416) target = $region24
        $region23: #{tpu_custom_call.1} parent=11 // pred_region
          %420 = vsyncadd [#allocation19], 0
          %s421 = sshll.u32 %s11, 4
          %s422 = int_to_ptr.hbm [resolvable:$true] %s421
          %s423 = sshll.u32 [#allocation18], 4
          %s424 = int_to_ptr.vmem [resolvable:$true] %s423
          %429 = dma.hbm_to_vmem [thread:$0]  %s422, 2048, %s424, [#allocation19], 128, 128, 8
        $region24: #{tpu_custom_call.1} parent=11 // pred_fallthru
          _
        // Predicated region
        $region25: #{tpu_custom_call.1} parent=11 // pred_check
          %p430 = pneg %p352
        $region26: #{tpu_custom_call.1} parent=11 // pred_check_branch
          %432 = sbr.rel (%p430) target = $region28
        $region27: #{tpu_custom_call.1} parent=11 // pred_region
          %434 = vsyncadd [#allocation19], 0
          %s435 = sshll.u32 %s12, 4
          %s436 = int_to_ptr.hbm [resolvable:$true] %s435
          %s437 = sshll.u32 [#allocation20], 4
          %s438 = int_to_ptr.vmem [resolvable:$true] %s437
          %443 = dma.hbm_to_vmem [thread:$0]  %s436, 2048, %s438, [#allocation19], 128, 128, 8
        $region28: #{tpu_custom_call.1} parent=11 // pred_fallthru
          _
      $region12: #{tpu_custom_call.1} parent=5 // pred_fallthru
        _
      %p444 = scmp.lt.s32.totalorder %s34, 2
      // Predicated region
      $region29: #{tpu_custom_call.1} parent=5 // pred_check
        %p445 = pneg %p444
      $region30: #{tpu_custom_call.1} parent=5 // pred_check_branch
        %447 = sbr.rel (%p445) target = $region32
      $region31: #{tpu_custom_call.1} parent=5 // pred_region
        // Predicated region
        $region33: #{tpu_custom_call.1} parent=31 // pred_check
          %p448 = pneg %p75
        $region34: #{tpu_custom_call.1} parent=31 // pred_check_branch
          %450 = sbr.rel (%p448) target = $region36
        $region35: #{tpu_custom_call.1} parent=31 // pred_region
          %s451 = sand.u32 %s34, 1
          %s452 = scalar_lea.sflag [#allocation7], %s451
          %s453 = sand.u32 %s65, 1
          %s454 = scalar_lea.vmem [#allocation6], %s453
          %456 = vsyncadd %s452, 0
          %s457 = scalar_lea.hbm %s1, %s34
          %s459 = sshll.u32 %s457, 4
          %s460 = int_to_ptr.hbm [resolvable:$true] %s459
          %s461 = sshll.u32 %s454, 4
          %s462 = int_to_ptr.vmem [resolvable:$true] %s461
          %464 = dma.hbm_to_vmem [thread:$0]  %s460, 16, %s462, %s452
        $region36: #{tpu_custom_call.1} parent=31 // pred_fallthru
          _
        // Predicated region
        $region37: #{tpu_custom_call.1} parent=31 // pred_check
          %p465 = pneg %p101
        $region38: #{tpu_custom_call.1} parent=31 // pred_check_branch
          %467 = sbr.rel (%p465) target = $region40
        $region39: #{tpu_custom_call.1} parent=31 // pred_region
          %s468 = sand.u32 %s34, 1
          %s469 = scalar_lea.sflag [#allocation7], %s468
          %s470 = sand.u32 %s91, 1
          %s471 = smul.addr %s470, 768
          %s472 = scalar_lea.vmem [#allocation8], %s471
          %474 = vsyncadd %s469, 0
          %s475 = smul.addr %s34, 192
          %s476 = smul.addr %s475, 4
          %s477 = scalar_lea.hbm %s2, %s476
          %s478 = sshll.u32 %s477, 4
          %s479 = int_to_ptr.hbm [resolvable:$true] %s478
          %s480 = sshll.u32 %s472, 4
          %s481 = int_to_ptr.vmem [resolvable:$true] %s480
          %486 = dma.hbm_to_vmem [thread:$0]  %s479, 12288, %s481, %s469, 768, 768, 48
        $region40: #{tpu_custom_call.1} parent=31 // pred_fallthru
          _
        // Predicated region
        $region41: #{tpu_custom_call.1} parent=31 // pred_check
          %p487 = pneg %p127
        $region42: #{tpu_custom_call.1} parent=31 // pred_check_branch
          %489 = sbr.rel (%p487) target = $region44
        $region43: #{tpu_custom_call.1} parent=31 // pred_region
          %s490 = sand.u32 %s34, 1
          %s491 = scalar_lea.sflag [#allocation10], %s490
          %s492 = sand.u32 %s117, 1
          %s493 = smul.addr %s492, 12
          %s494 = scalar_lea.vmem [#allocation9], %s493
          %496 = vsyncadd %s491, 0
          %s497 = smul.addr %s34, 12
          %s498 = scalar_lea.hbm %s3, %s497
          %s500 = sshll.u32 %s498, 4
          %s501 = int_to_ptr.hbm [resolvable:$true] %s500
          %s502 = sshll.u32 %s494, 4
          %s503 = int_to_ptr.vmem [resolvable:$true] %s502
          %505 = dma.hbm_to_vmem [thread:$0]  %s501, 192, %s503, %s491
        $region44: #{tpu_custom_call.1} parent=31 // pred_fallthru
          _
        // Predicated region
        $region45: #{tpu_custom_call.1} parent=31 // pred_check
          %p506 = pneg %p153
        $region46: #{tpu_custom_call.1} parent=31 // pred_check_branch
          %508 = sbr.rel (%p506) target = $region48
        $region47: #{tpu_custom_call.1} parent=31 // pred_region
          %s509 = sand.u32 %s34, 1
          %s510 = scalar_lea.sflag [#allocation10], %s509
          %s511 = sand.u32 %s143, 1
          %s512 = smul.addr %s511, 256
          %s513 = scalar_lea.vmem [#allocation11], %s512
          %515 = vsyncadd %s510, 0
          %s516 = smul.addr %s34, 64
          %s517 = smul.addr %s516, 4
          %s518 = scalar_lea.hbm %s4, %s517
          %s519 = sshll.u32 %s518, 4
          %s520 = int_to_ptr.hbm [resolvable:$true] %s519
          %s521 = sshll.u32 %s513, 4
          %s522 = int_to_ptr.vmem [resolvable:$true] %s521
          %527 = dma.hbm_to_vmem [thread:$0]  %s520, 4096, %s522, %s510, 64, 64, 4
        $region48: #{tpu_custom_call.1} parent=31 // pred_fallthru
          _
        // Predicated region
        $region49: #{tpu_custom_call.1} parent=31 // pred_check
          %p528 = pneg %p179
        $region50: #{tpu_custom_call.1} parent=31 // pred_check_branch
          %530 = sbr.rel (%p528) target = $region52
        $region51: #{tpu_custom_call.1} parent=31 // pred_region
          %p531 = scmp.lt.s32.totalorder %s34, 1
          %s532 = scalar_select %p531, %s34, 1
          %s533 = scalar_lea.vmem %s5, %s532
        $region52: #{tpu_custom_call.1} parent=31 // pred_fallthru
          _
        // Predicated region
        $region53: #{tpu_custom_call.1} parent=31 // pred_check
          %p534 = pneg %p205
        $region54: #{tpu_custom_call.1} parent=31 // pred_check_branch
          %536 = sbr.rel (%p534) target = $region56
        $region55: #{tpu_custom_call.1} parent=31 // pred_region
          %s537 = sand.u32 %s34, 1
          %s538 = scalar_lea.sflag [#allocation13], %s537
          %s539 = sand.u32 %s195, 1
          %s540 = smul.addr %s539, 64
          %s541 = scalar_lea.vmem [#allocation12], %s540
          %543 = vsyncadd %s538, 0
          %s544 = smul.addr %s34, 16
          %s545 = smul.addr %s544, 4
          %s546 = scalar_lea.hbm %s6, %s545
          %s547 = sshll.u32 %s546, 4
          %s548 = int_to_ptr.hbm [resolvable:$true] %s547
          %s549 = sshll.u32 %s541, 4
          %s550 = int_to_ptr.vmem [resolvable:$true] %s549
          %555 = dma.hbm_to_vmem [thread:$0]  %s548, 1024, %s550, %s538, 64, 64, 4
        $region56: #{tpu_custom_call.1} parent=31 // pred_fallthru
          _
        // Predicated region
        $region57: #{tpu_custom_call.1} parent=31 // pred_check
          %p556 = pneg %p231
        $region58: #{tpu_custom_call.1} parent=31 // pred_check_branch
          %558 = sbr.rel (%p556) target = $region60
        $region59: #{tpu_custom_call.1} parent=31 // pred_region
          %s559 = sand.u32 %s34, 1
          %s560 = scalar_lea.sflag [#allocation13], %s559
          %s561 = sand.u32 %s221, 1
          %s562 = scalar_lea.vmem [#allocation14], %s561
          %564 = vsyncadd %s560, 0
          %s565 = scalar_lea.hbm %s7, %s34
          %s567 = sshll.u32 %s565, 4
          %s568 = int_to_ptr.hbm [resolvable:$true] %s567
          %s569 = sshll.u32 %s562, 4
          %s570 = int_to_ptr.vmem [resolvable:$true] %s569
          %572 = dma.hbm_to_vmem [thread:$0]  %s568, 16, %s570, %s560
        $region60: #{tpu_custom_call.1} parent=31 // pred_fallthru
          _
        // Predicated region
        $region61: #{tpu_custom_call.1} parent=31 // pred_check
          %p573 = pneg %p257
        $region62: #{tpu_custom_call.1} parent=31 // pred_check_branch
          %575 = sbr.rel (%p573) target = $region64
        $region63: #{tpu_custom_call.1} parent=31 // pred_region
          %s576 = sand.u32 %s34, 1
          %s577 = scalar_lea.sflag [#allocation16], %s576
          %s578 = sand.u32 %s247, 1
          %s579 = smul.addr %s578, 128
          %s580 = scalar_lea.vmem [#allocation15], %s579
          %582 = vsyncadd %s577, 0
          %s583 = smul.addr %s34, 32
          %s584 = smul.addr %s583, 4
          %s585 = scalar_lea.hbm %s8, %s584
          %s586 = sshll.u32 %s585, 4
          %s587 = int_to_ptr.hbm [resolvable:$true] %s586
          %s588 = sshll.u32 %s580, 4
          %s589 = int_to_ptr.vmem [resolvable:$true] %s588
          %594 = dma.hbm_to_vmem [thread:$0]  %s587, 2048, %s589, %s577, 128, 128, 8
        $region64: #{tpu_custom_call.1} parent=31 // pred_fallthru
          _
        // Predicated region
        $region65: #{tpu_custom_call.1} parent=31 // pred_check
          %p595 = pneg %p283
        $region66: #{tpu_custom_call.1} parent=31 // pred_check_branch
          %597 = sbr.rel (%p595) target = $region68
        $region67: #{tpu_custom_call.1} parent=31 // pred_region
          %p598 = scmp.lt.s32.totalorder %s34, 1
          %s599 = scalar_select %p598, %s34, 1
          %s600 = smul.addr %s599, 2
          %s601 = scalar_lea.vmem %s9, %s600
        $region68: #{tpu_custom_call.1} parent=31 // pred_fallthru
          _
      $region32: #{tpu_custom_call.1} parent=5 // pred_fallthru
        _
      %p602 = scmp.le.s32.totalorder 1, %s34
      %p603 = scmp.lt.s32.totalorder %s34, 3
      %p604 = pnand %p602, %p603
      %p605 = pneg %p604
      // Predicated region
      $region69: #{tpu_custom_call.1} parent=5 // pred_check
        _
      $region70: #{tpu_custom_call.1} parent=5 // pred_check_branch
        %607 = sbr.rel (%p604) target = $region72
      $region71: #{tpu_custom_call.1} parent=5 // pred_region
        %s608 = ssub.s32 %s34, 1
        // Predicated region
        $region73: #{tpu_custom_call.1} parent=71 // pred_check
          %p609 = pneg %p55
        $region74: #{tpu_custom_call.1} parent=71 // pred_check_branch
          %611 = sbr.rel (%p609) target = $region76
        $region75: #{tpu_custom_call.1} parent=71 // pred_region
          %613 = dma.done [#allocation4], 512
        $region76: #{tpu_custom_call.1} parent=71 // pred_fallthru
          _
        %s614 = sand.u32 %s39, 1
        %s615 = scalar_lea.sflag [#allocation7], %s614
        %s616 = sand.u32 %s68, 1
        %s617 = scalar_lea.vmem [#allocation6], %s616
        // Predicated region
        $region77: #{tpu_custom_call.1} parent=71 // pred_check
          %p618 = pneg %p81
        $region78: #{tpu_custom_call.1} parent=71 // pred_check_branch
          %620 = sbr.rel (%p618) target = $region80
        $region79: #{tpu_custom_call.1} parent=71 // pred_region
          %622 = dma.done %s615, 16
        $region80: #{tpu_custom_call.1} parent=71 // pred_fallthru
          _
        %s623 = sand.u32 %s39, 1
        %s624 = scalar_lea.sflag [#allocation7], %s623
        %s625 = sand.u32 %s94, 1
        %s626 = smul.addr %s625, 768
        %s627 = scalar_lea.vmem [#allocation8], %s626
        // Predicated region
        $region81: #{tpu_custom_call.1} parent=71 // pred_check
          %p628 = pneg %p107
        $region82: #{tpu_custom_call.1} parent=71 // pred_check_branch
          %630 = sbr.rel (%p628) target = $region84
        $region83: #{tpu_custom_call.1} parent=71 // pred_region
          %632 = dma.done %s624, 12288
        $region84: #{tpu_custom_call.1} parent=71 // pred_fallthru
          _
        %s633 = sand.u32 %s39, 1
        %s634 = scalar_lea.sflag [#allocation10], %s633
        %s635 = sand.u32 %s120, 1
        %s636 = smul.addr %s635, 12
        %s637 = scalar_lea.vmem [#allocation9], %s636
        // Predicated region
        $region85: #{tpu_custom_call.1} parent=71 // pred_check
          %p638 = pneg %p133
        $region86: #{tpu_custom_call.1} parent=71 // pred_check_branch
          %640 = sbr.rel (%p638) target = $region88
        $region87: #{tpu_custom_call.1} parent=71 // pred_region
          %642 = dma.done %s634, 192
        $region88: #{tpu_custom_call.1} parent=71 // pred_fallthru
          _
        %s643 = sand.u32 %s39, 1
        %s644 = scalar_lea.sflag [#allocation10], %s643
        %s645 = sand.u32 %s146, 1
        %s646 = smul.addr %s645, 256
        %s647 = scalar_lea.vmem [#allocation11], %s646
        // Predicated region
        $region89: #{tpu_custom_call.1} parent=71 // pred_check
          %p648 = pneg %p159
        $region90: #{tpu_custom_call.1} parent=71 // pred_check_branch
          %650 = sbr.rel (%p648) target = $region92
        $region91: #{tpu_custom_call.1} parent=71 // pred_region
          %652 = dma.done %s644, 4096
        $region92: #{tpu_custom_call.1} parent=71 // pred_fallthru
          _
        %s653 = sand.u32 %s39, 1
        %s654 = scalar_lea.sflag [#allocation13], %s653
        %s655 = sand.u32 %s198, 1
        %s656 = smul.addr %s655, 64
        %s657 = scalar_lea.vmem [#allocation12], %s656
        // Predicated region
        $region93: #{tpu_custom_call.1} parent=71 // pred_check
          %p658 = pneg %p211
        $region94: #{tpu_custom_call.1} parent=71 // pred_check_branch
          %660 = sbr.rel (%p658) target = $region96
        $region95: #{tpu_custom_call.1} parent=71 // pred_region
          %662 = dma.done %s654, 1024
        $region96: #{tpu_custom_call.1} parent=71 // pred_fallthru
          _
        %s663 = sand.u32 %s39, 1
        %s664 = scalar_lea.sflag [#allocation13], %s663
        %s665 = sand.u32 %s224, 1
        %s666 = scalar_lea.vmem [#allocation14], %s665
        // Predicated region
        $region97: #{tpu_custom_call.1} parent=71 // pred_check
          %p667 = pneg %p237
        $region98: #{tpu_custom_call.1} parent=71 // pred_check_branch
          %669 = sbr.rel (%p667) target = $region100
        $region99: #{tpu_custom_call.1} parent=71 // pred_region
          %671 = dma.done %s664, 16
        $region100: #{tpu_custom_call.1} parent=71 // pred_fallthru
          _
        %s672 = sand.u32 %s39, 1
        %s673 = scalar_lea.sflag [#allocation16], %s672
        %s674 = sand.u32 %s250, 1
        %s675 = smul.addr %s674, 128
        %s676 = scalar_lea.vmem [#allocation15], %s675
        // Predicated region
        $region101: #{tpu_custom_call.1} parent=71 // pred_check
          %p677 = pneg %p263
        $region102: #{tpu_custom_call.1} parent=71 // pred_check_branch
          %679 = sbr.rel (%p677) target = $region104
        $region103: #{tpu_custom_call.1} parent=71 // pred_region
          %681 = dma.done %s673, 2048
        $region104: #{tpu_custom_call.1} parent=71 // pred_fallthru
          _
        // Predicated region
        $region105: #{tpu_custom_call.1} parent=71 // pred_check
          %p682 = pneg %p310
        $region106: #{tpu_custom_call.1} parent=71 // pred_check_branch
          %684 = sbr.rel (%p682) target = $region108
        $region107: #{tpu_custom_call.1} parent=71 // pred_region
          %686 = dma.done [#allocation16], 2048
        $region108: #{tpu_custom_call.1} parent=71 // pred_fallthru
          _
        // Predicated region
        $region109: #{tpu_custom_call.1} parent=71 // pred_check
          %p687 = pneg %p331
        $region110: #{tpu_custom_call.1} parent=71 // pred_check_branch
          %689 = sbr.rel (%p687) target = $region112
        $region111: #{tpu_custom_call.1} parent=71 // pred_region
          %691 = dma.done [#allocation19], 2048
        $region112: #{tpu_custom_call.1} parent=71 // pred_fallthru
          _
        // Predicated region
        $region113: #{tpu_custom_call.1} parent=71 // pred_check
          %p692 = pneg %p352
        $region114: #{tpu_custom_call.1} parent=71 // pred_check_branch
          %694 = sbr.rel (%p692) target = $region116
        $region115: #{tpu_custom_call.1} parent=71 // pred_region
          %696 = dma.done [#allocation19], 2048
        $region116: #{tpu_custom_call.1} parent=71 // pred_fallthru
          _
        %p697 = pneg %p55
        %p698 = pneg %p52
        %s699 = sand.u32 %s39, 1
        %s700 = scalar_lea.sflag [#allocation7], %s699
        %s701 = sand.u32 %s68, 1
        %s702 = scalar_lea.vmem [#allocation6], %s701
        %p703 = pneg %p81
        %p704 = pneg %p78
        %s705 = sand.u32 %s39, 1
        %s706 = scalar_lea.sflag [#allocation7], %s705
        %s707 = sand.u32 %s94, 1
        %s708 = smul.addr %s707, 768
        %s709 = scalar_lea.vmem [#allocation8], %s708
        %p710 = pneg %p107
        %p711 = pneg %p104
        %s712 = sand.u32 %s39, 1
        %s713 = scalar_lea.sflag [#allocation10], %s712
        %s714 = sand.u32 %s120, 1
        %s715 = smul.addr %s714, 12
        %s716 = scalar_lea.vmem [#allocation9], %s715
        %p717 = pneg %p133
        %p718 = pneg %p130
        %s719 = sand.u32 %s39, 1
        %s720 = scalar_lea.sflag [#allocation10], %s719
        %s721 = sand.u32 %s146, 1
        %s722 = smul.addr %s721, 256
        %s723 = scalar_lea.vmem [#allocation11], %s722
        %p724 = pneg %p159
        %p725 = pneg %p156
        %p726 = scmp.lt.s32.totalorder %s39, 1
        %s727 = scalar_select %p726, %s39, 1
        %s728 = scalar_lea.vmem %s5, %s727
        %p729 = pneg %p185
        %p730 = pneg %p182
        %s731 = sand.u32 %s39, 1
        %s732 = scalar_lea.sflag [#allocation13], %s731
        %s733 = sand.u32 %s198, 1
        %s734 = smul.addr %s733, 64
        %s735 = scalar_lea.vmem [#allocation12], %s734
        %p736 = pneg %p211
        %p737 = pneg %p208
        %s738 = sand.u32 %s39, 1
        %s739 = scalar_lea.sflag [#allocation13], %s738
        %s740 = sand.u32 %s224, 1
        %s741 = scalar_lea.vmem [#allocation14], %s740
        %p742 = pneg %p237
        %p743 = pneg %p234
        %s744 = sand.u32 %s39, 1
        %s745 = scalar_lea.sflag [#allocation16], %s744
        %s746 = sand.u32 %s250, 1
        %s747 = smul.addr %s746, 128
        %s748 = scalar_lea.vmem [#allocation15], %s747
        %p749 = pneg %p263
        %p750 = pneg %p260
        %p751 = scmp.lt.s32.totalorder %s39, 1
        %s752 = scalar_select %p751, %s39, 1
        %s753 = smul.addr %s752, 2
        %s754 = scalar_lea.vmem %s9, %s753
        %p755 = pneg %p289
        %p756 = pneg %p286
        %p757 = pneg %p310
        %p758 = pneg %p307
        %p759 = pneg %p331
        %p760 = pneg %p328
        %p761 = pneg %p352
        %p762 = pneg %p349
        %p763 = pneg %p373
        %p764 = pneg %p370
        %p765 = scmp.lt.s32.totalorder %s39, 1
        %s766 = scalar_select %p765, %s39, 1
        %s767 = scalar_lea.vmem %s5, %s766
        %p768 = scmp.lt.s32.totalorder %s39, 1
        %s769 = scalar_select %p768, %s39, 1
        %s770 = smul.addr %s769, 2
        %s771 = scalar_lea.vmem %s9, %s770
        %p772 = scmp.eq.s32.totalorder %s39, 0
        // Predicated region
        $region117: #{tpu_custom_call.1} parent=71 // pred_check
          %p773 = pneg %p772
        $region118: #{tpu_custom_call.1} parent=71 // pred_check_branch
          %775 = sbr.rel (%p773) target = $region120
        $region119: #{tpu_custom_call.1} parent=71 // pred_region
          %v776 = vld [vmem:[#allocation3] sm:$0xff]
          %v777 = vld [vmem:[#allocation3 + $0x8] sm:$0xff]
          %v778 = vld [vmem:[#allocation3 + $0x10] sm:$0xff]
          %v779 = vld [vmem:[#allocation3 + $0x18] sm:$0xff]
          %780 = vst [vmem:[#allocation2] sm:$0xff] %v776
          %781 = vst [vmem:[#allocation2 + $0x8] sm:$0xff] %v777
          %782 = vst [vmem:[#allocation2 + $0x10] sm:$0xff] %v778
          %783 = vst [vmem:[#allocation2 + $0x18] sm:$0xff] %v779
        $region120: #{tpu_custom_call.1} parent=71 // pred_fallthru
          _
        %v784 = vld [vmem:[#allocation2] sm:$0xff]
        %v785 = vld [vmem:[#allocation2 + $0x8] sm:$0xff]
        %v786 = vld [vmem:[#allocation2 + $0x10] sm:$0xff]
        %v787 = vld [vmem:[#allocation2 + $0x18] sm:$0xff]
        %v788 = vld [vmem:[%s617] sm:$0x1]
        %v789 = vmul.f32 %v784, %v784
        %v790 = vmul.f32 %v785, %v785
        %v791 = vmul.f32 %v786, %v786
        %v792 = vmul.f32 %v787, %v787
        %793 = vadd.xlane.f32.xlu0 %v789
        %v794 = vpop.xlane.xlu0 %793
        %795 = vadd.xlane.f32.xlu0 %v790
        %v796 = vpop.xlane.xlu0 %795
        %797 = vadd.xlane.f32.xlu0 %v791
        %v798 = vpop.xlane.xlu0 %797
        %799 = vadd.xlane.f32.xlu0 %v792
        %v800 = vpop.xlane.xlu0 %799
        %v801 = vrcp.pop 128.0
        %v802 = vmul.f32 128.0, %v801
        %v803 = vsub.f32 1.0, %v802
        %v804 = vmul.f32 %v801, %v803
        %v805 = vadd.f32 %v801, %v804
        %vm806 = vweird.f32 %v801
        %v807 = vsel %vm806, %v801, %v805
        %v808 = vmul.f32 %v794, %v807
        %v809 = vmul.f32 %v796, %v807
        %v810 = vmul.f32 %v798, %v807
        %v811 = vmul.f32 %v800, %v807
        %v812 = vadd.f32 %v808, 1e-06
        %v813 = vadd.f32 %v809, 1e-06
        %v814 = vadd.f32 %v810, 1e-06
        %v815 = vadd.f32 %v811, 1e-06
        %v816 = vrsqrt.pop %v812
        %v817 = vmul.f32 %v816, %v812
        %v818 = vmul.f32 %v817, %v816
        %v819 = vmul.f32 0.5, %v818
        %v820 = vsub.f32 1.5, %v819
        %v821 = vmul.f32 %v816, %v820
        %vm822 = vweird.f32 %v812
        %vm823 = vweird.f32 %v816
        %vm824 = vmor %vm822, %vm823
        %v825 = vsel %vm824, %v816, %v821
        %v826 = vrsqrt.pop %v813
        %v827 = vmul.f32 %v826, %v813
        %v828 = vmul.f32 %v827, %v826
        %v829 = vmul.f32 0.5, %v828
        %v830 = vsub.f32 1.5, %v829
        %v831 = vmul.f32 %v826, %v830
        %vm832 = vweird.f32 %v813
        %vm833 = vweird.f32 %v826
        %vm834 = vmor %vm832, %vm833
        %v835 = vsel %vm834, %v826, %v831
        %v836 = vrsqrt.pop %v814
        %v837 = vmul.f32 %v836, %v814
        %v838 = vmul.f32 %v837, %v836
        %v839 = vmul.f32 0.5, %v838
        %v840 = vsub.f32 1.5, %v839
        %v841 = vmul.f32 %v836, %v840
        %vm842 = vweird.f32 %v814
        %vm843 = vweird.f32 %v836
        %vm844 = vmor %vm842, %vm843
        %v845 = vsel %vm844, %v836, %v841
        %v846 = vrsqrt.pop %v815
        %v847 = vmul.f32 %v846, %v815
        %v848 = vmul.f32 %v847, %v846
        %v849 = vmul.f32 0.5, %v848
        %v850 = vsub.f32 1.5, %v849
        %v851 = vmul.f32 %v846, %v850
        %vm852 = vweird.f32 %v815
        %vm853 = vweird.f32 %v846
        %vm854 = vmor %vm852, %vm853
        %v855 = vsel %vm854, %v846, %v851
        %v856 = vmul.f32 %v784, %v825
        %v857 = vmul.f32 %v785, %v835
        %v858 = vmul.f32 %v786, %v845
        %v859 = vmul.f32 %v787, %v855
        %v861 = vperm.slane %v788, 0
        %v863 = vmul.f32 %v856, %v861
        %v864 = vmul.f32 %v857, %v861
        %v865 = vmul.f32 %v858, %v861
        %v866 = vmul.f32 %v859, %v861
        %v867 = vpack.c.bf16 %v864, %v863
        %v868 = vpack.c.bf16 %v866, %v865
        %v869 = vld [vmem:[%s627] sm:$0xff]
        %v870 = vld [vmem:[%s627 + $0x8] sm:$0xff]
        %v871 = vld [vmem:[%s627 + $0x10] sm:$0xff]
        %v872 = vld [vmem:[%s627 + $0x18] sm:$0xff]
        %v873 = vld [vmem:[%s627 + $0x20] sm:$0xff]
        %v874 = vld [vmem:[%s627 + $0x28] sm:$0xff]
        %v875 = vld [vmem:[%s627 + $0x30] sm:$0xff]
        %v876 = vld [vmem:[%s627 + $0x38] sm:$0xff]
        %v877 = vld [vmem:[%s627 + $0x40] sm:$0xff]
        %v878 = vld [vmem:[%s627 + $0x48] sm:$0xff]
        %v879 = vld [vmem:[%s627 + $0x50] sm:$0xff]
        %v880 = vld [vmem:[%s627 + $0x58] sm:$0xff]
        %v881 = vld [vmem:[%s627 + $0x60] sm:$0xff]
        %v882 = vld [vmem:[%s627 + $0x68] sm:$0xff]
        %v883 = vld [vmem:[%s627 + $0x70] sm:$0xff]
        %v884 = vld [vmem:[%s627 + $0x78] sm:$0xff]
        %v885 = vld [vmem:[%s627 + $0x80] sm:$0xff]
        %v886 = vld [vmem:[%s627 + $0x88] sm:$0xff]
        %v887 = vld [vmem:[%s627 + $0x90] sm:$0xff]
        %v888 = vld [vmem:[%s627 + $0x98] sm:$0xff]
        %v889 = vld [vmem:[%s627 + $0xa0] sm:$0xff]
        %v890 = vld [vmem:[%s627 + $0xa8] sm:$0xff]
        %v891 = vld [vmem:[%s627 + $0xb0] sm:$0xff]
        %v892 = vld [vmem:[%s627 + $0xb8] sm:$0xff]
        %v893 = vld [vmem:[%s627 + $0xc0] sm:$0xff]
        %v894 = vld [vmem:[%s627 + $0xc8] sm:$0xff]
        %v895 = vld [vmem:[%s627 + $0xd0] sm:$0xff]
        %v896 = vld [vmem:[%s627 + $0xd8] sm:$0xff]
        %v897 = vld [vmem:[%s627 + $0xe0] sm:$0xff]
        %v898 = vld [vmem:[%s627 + $0xe8] sm:$0xff]
        %v899 = vld [vmem:[%s627 + $0xf0] sm:$0xff]
        %v900 = vld [vmem:[%s627 + $0xf8] sm:$0xff]
        %v901 = vld [vmem:[%s627 + $0x100] sm:$0xff]
        %v902 = vld [vmem:[%s627 + $0x108] sm:$0xff]
        %v903 = vld [vmem:[%s627 + $0x110] sm:$0xff]
        %v904 = vld [vmem:[%s627 + $0x118] sm:$0xff]
        %v905 = vld [vmem:[%s627 + $0x120] sm:$0xff]
        %v906 = vld [vmem:[%s627 + $0x128] sm:$0xff]
        %v907 = vld [vmem:[%s627 + $0x130] sm:$0xff]
        %v908 = vld [vmem:[%s627 + $0x138] sm:$0xff]
        %v909 = vld [vmem:[%s627 + $0x140] sm:$0xff]
        %v910 = vld [vmem:[%s627 + $0x148] sm:$0xff]
        %v911 = vld [vmem:[%s627 + $0x150] sm:$0xff]
        %v912 = vld [vmem:[%s627 + $0x158] sm:$0xff]
        %v913 = vld [vmem:[%s627 + $0x160] sm:$0xff]
        %v914 = vld [vmem:[%s627 + $0x168] sm:$0xff]
        %v915 = vld [vmem:[%s627 + $0x170] sm:$0xff]
        %v916 = vld [vmem:[%s627 + $0x178] sm:$0xff]
        %v917 = vld [vmem:[%s627 + $0x180] sm:$0xff]
        %v918 = vld [vmem:[%s627 + $0x188] sm:$0xff]
        %v919 = vld [vmem:[%s627 + $0x190] sm:$0xff]
        %v920 = vld [vmem:[%s627 + $0x198] sm:$0xff]
        %v921 = vld [vmem:[%s627 + $0x1a0] sm:$0xff]
        %v922 = vld [vmem:[%s627 + $0x1a8] sm:$0xff]
        %v923 = vld [vmem:[%s627 + $0x1b0] sm:$0xff]
        %v924 = vld [vmem:[%s627 + $0x1b8] sm:$0xff]
        %v925 = vld [vmem:[%s627 + $0x1c0] sm:$0xff]
        %v926 = vld [vmem:[%s627 + $0x1c8] sm:$0xff]
        %v927 = vld [vmem:[%s627 + $0x1d0] sm:$0xff]
        %v928 = vld [vmem:[%s627 + $0x1d8] sm:$0xff]
        %v929 = vld [vmem:[%s627 + $0x1e0] sm:$0xff]
        %v930 = vld [vmem:[%s627 + $0x1e8] sm:$0xff]
        %v931 = vld [vmem:[%s627 + $0x1f0] sm:$0xff]
        %v932 = vld [vmem:[%s627 + $0x1f8] sm:$0xff]
        %v933 = vld [vmem:[%s627 + $0x200] sm:$0xff]
        %v934 = vld [vmem:[%s627 + $0x208] sm:$0xff]
        %v935 = vld [vmem:[%s627 + $0x210] sm:$0xff]
        %v936 = vld [vmem:[%s627 + $0x218] sm:$0xff]
        %v937 = vld [vmem:[%s627 + $0x220] sm:$0xff]
        %v938 = vld [vmem:[%s627 + $0x228] sm:$0xff]
        %v939 = vld [vmem:[%s627 + $0x230] sm:$0xff]
        %v940 = vld [vmem:[%s627 + $0x238] sm:$0xff]
        %v941 = vld [vmem:[%s627 + $0x240] sm:$0xff]
        %v942 = vld [vmem:[%s627 + $0x248] sm:$0xff]
        %v943 = vld [vmem:[%s627 + $0x250] sm:$0xff]
        %v944 = vld [vmem:[%s627 + $0x258] sm:$0xff]
        %v945 = vld [vmem:[%s627 + $0x260] sm:$0xff]
        %v946 = vld [vmem:[%s627 + $0x268] sm:$0xff]
        %v947 = vld [vmem:[%s627 + $0x270] sm:$0xff]
        %v948 = vld [vmem:[%s627 + $0x278] sm:$0xff]
        %v949 = vld [vmem:[%s627 + $0x280] sm:$0xff]
        %v950 = vld [vmem:[%s627 + $0x288] sm:$0xff]
        %v951 = vld [vmem:[%s627 + $0x290] sm:$0xff]
        %v952 = vld [vmem:[%s627 + $0x298] sm:$0xff]
        %v953 = vld [vmem:[%s627 + $0x2a0] sm:$0xff]
        %v954 = vld [vmem:[%s627 + $0x2a8] sm:$0xff]
        %v955 = vld [vmem:[%s627 + $0x2b0] sm:$0xff]
        %v956 = vld [vmem:[%s627 + $0x2b8] sm:$0xff]
        %v957 = vld [vmem:[%s627 + $0x2c0] sm:$0xff]
        %v958 = vld [vmem:[%s627 + $0x2c8] sm:$0xff]
        %v959 = vld [vmem:[%s627 + $0x2d0] sm:$0xff]
        %v960 = vld [vmem:[%s627 + $0x2d8] sm:$0xff]
        %v961 = vld [vmem:[%s627 + $0x2e0] sm:$0xff]
        %v962 = vld [vmem:[%s627 + $0x2e8] sm:$0xff]
        %v963 = vld [vmem:[%s627 + $0x2f0] sm:$0xff]
        %v964 = vld [vmem:[%s627 + $0x2f8] sm:$0xff]
        %v965 = vld [vmem:[%s637] sm:$0xff]
        %v966 = vld [vmem:[%s637 + $0x8] sm:$0xf]
        %v969 = vperm.slane %v965, 0
        %v970 = vperm.slane %v965, 1
        %v971 = vperm.slane %v965, 2
        %v972 = vperm.slane %v965, 3
        %v973 = vperm.slane %v965, 4
        %v974 = vperm.slane %v965, 5
        %v975 = vperm.slane %v965, 6
        %v976 = vperm.slane %v965, 7
        %v977 = vperm.slane %v966, 0
        %v978 = vperm.slane %v966, 1
        %v979 = vperm.slane %v966, 2
        %v980 = vperm.slane %v966, 3
        %v1089 = vunpack.c.l.b16 %v869
        %v1090 = vunpack.c.h.b16 %v869
        %v1091 = vunpack.c.l.b16 %v870
        %v1092 = vunpack.c.h.b16 %v870
        %v1093 = vunpack.c.l.b16 %v871
        %v1094 = vunpack.c.h.b16 %v871
        %v1095 = vunpack.c.l.b16 %v872
        %v1096 = vunpack.c.h.b16 %v872
        %v1097 = vunpack.c.l.b16 %v873
        %v1098 = vunpack.c.h.b16 %v873
        %v1099 = vunpack.c.l.b16 %v874
        %v1100 = vunpack.c.h.b16 %v874
        %v1101 = vunpack.c.l.b16 %v875
        %v1102 = vunpack.c.h.b16 %v875
        %v1103 = vunpack.c.l.b16 %v876
        %v1104 = vunpack.c.h.b16 %v876
        %v1105 = vunpack.c.l.b16 %v877
        %v1106 = vunpack.c.h.b16 %v877
        %v1107 = vunpack.c.l.b16 %v878
        %v1108 = vunpack.c.h.b16 %v878
        %v1109 = vunpack.c.l.b16 %v879
        %v1110 = vunpack.c.h.b16 %v879
        %v1111 = vunpack.c.l.b16 %v880
        %v1112 = vunpack.c.h.b16 %v880
        %v1113 = vunpack.c.l.b16 %v881
        %v1114 = vunpack.c.h.b16 %v881
        %v1115 = vunpack.c.l.b16 %v882
        %v1116 = vunpack.c.h.b16 %v882
        %v1117 = vunpack.c.l.b16 %v883
        %v1118 = vunpack.c.h.b16 %v883
        %v1119 = vunpack.c.l.b16 %v884
        %v1120 = vunpack.c.h.b16 %v884
        %v1121 = vunpack.c.l.b16 %v885
        %v1122 = vunpack.c.h.b16 %v885
        %v1123 = vunpack.c.l.b16 %v886
        %v1124 = vunpack.c.h.b16 %v886
        %v1125 = vunpack.c.l.b16 %v887
        %v1126 = vunpack.c.h.b16 %v887
        %v1127 = vunpack.c.l.b16 %v888
        %v1128 = vunpack.c.h.b16 %v888
        %v1129 = vunpack.c.l.b16 %v889
        %v1130 = vunpack.c.h.b16 %v889
        %v1131 = vunpack.c.l.b16 %v890
        %v1132 = vunpack.c.h.b16 %v890
        %v1133 = vunpack.c.l.b16 %v891
        %v1134 = vunpack.c.h.b16 %v891
        %v1135 = vunpack.c.l.b16 %v892
        %v1136 = vunpack.c.h.b16 %v892
        %v1137 = vunpack.c.l.b16 %v893
        %v1138 = vunpack.c.h.b16 %v893
        %v1139 = vunpack.c.l.b16 %v894
        %v1140 = vunpack.c.h.b16 %v894
        %v1141 = vunpack.c.l.b16 %v895
        %v1142 = vunpack.c.h.b16 %v895
        %v1143 = vunpack.c.l.b16 %v896
        %v1144 = vunpack.c.h.b16 %v896
        %v1145 = vunpack.c.l.b16 %v897
        %v1146 = vunpack.c.h.b16 %v897
        %v1147 = vunpack.c.l.b16 %v898
        %v1148 = vunpack.c.h.b16 %v898
        %v1149 = vunpack.c.l.b16 %v899
        %v1150 = vunpack.c.h.b16 %v899
        %v1151 = vunpack.c.l.b16 %v900
        %v1152 = vunpack.c.h.b16 %v900
        %v1153 = vunpack.c.l.b16 %v901
        %v1154 = vunpack.c.h.b16 %v901
        %v1155 = vunpack.c.l.b16 %v902
        %v1156 = vunpack.c.h.b16 %v902
        %v1157 = vunpack.c.l.b16 %v903
        %v1158 = vunpack.c.h.b16 %v903
        %v1159 = vunpack.c.l.b16 %v904
        %v1160 = vunpack.c.h.b16 %v904
        %v1161 = vunpack.c.l.b16 %v905
        %v1162 = vunpack.c.h.b16 %v905
        %v1163 = vunpack.c.l.b16 %v906
        %v1164 = vunpack.c.h.b16 %v906
        %v1165 = vunpack.c.l.b16 %v907
        %v1166 = vunpack.c.h.b16 %v907
        %v1167 = vunpack.c.l.b16 %v908
        %v1168 = vunpack.c.h.b16 %v908
        %v1169 = vunpack.c.l.b16 %v909
        %v1170 = vunpack.c.h.b16 %v909
        %v1171 = vunpack.c.l.b16 %v910
        %v1172 = vunpack.c.h.b16 %v910
        %v1173 = vunpack.c.l.b16 %v911
        %v1174 = vunpack.c.h.b16 %v911
        %v1175 = vunpack.c.l.b16 %v912
        %v1176 = vunpack.c.h.b16 %v912
        %v1177 = vunpack.c.l.b16 %v913
        %v1178 = vunpack.c.h.b16 %v913
        %v1179 = vunpack.c.l.b16 %v914
        %v1180 = vunpack.c.h.b16 %v914
        %v1181 = vunpack.c.l.b16 %v915
        %v1182 = vunpack.c.h.b16 %v915
        %v1183 = vunpack.c.l.b16 %v916
        %v1184 = vunpack.c.h.b16 %v916
        %v1185 = vunpack.c.l.b16 %v917
        %v1186 = vunpack.c.h.b16 %v917
        %v1187 = vunpack.c.l.b16 %v918
        %v1188 = vunpack.c.h.b16 %v918
        %v1189 = vunpack.c.l.b16 %v919
        %v1190 = vunpack.c.h.b16 %v919
        %v1191 = vunpack.c.l.b16 %v920
        %v1192 = vunpack.c.h.b16 %v920
        %v1193 = vunpack.c.l.b16 %v921
        %v1194 = vunpack.c.h.b16 %v921
        %v1195 = vunpack.c.l.b16 %v922
        %v1196 = vunpack.c.h.b16 %v922
        %v1197 = vunpack.c.l.b16 %v923
        %v1198 = vunpack.c.h.b16 %v923
        %v1199 = vunpack.c.l.b16 %v924
        %v1200 = vunpack.c.h.b16 %v924
        %v1201 = vunpack.c.l.b16 %v925
        %v1202 = vunpack.c.h.b16 %v925
        %v1203 = vunpack.c.l.b16 %v926
        %v1204 = vunpack.c.h.b16 %v926
        %v1205 = vunpack.c.l.b16 %v927
        %v1206 = vunpack.c.h.b16 %v927
        %v1207 = vunpack.c.l.b16 %v928
        %v1208 = vunpack.c.h.b16 %v928
        %v1209 = vunpack.c.l.b16 %v929
        %v1210 = vunpack.c.h.b16 %v929
        %v1211 = vunpack.c.l.b16 %v930
        %v1212 = vunpack.c.h.b16 %v930
        %v1213 = vunpack.c.l.b16 %v931
        %v1214 = vunpack.c.h.b16 %v931
        %v1215 = vunpack.c.l.b16 %v932
        %v1216 = vunpack.c.h.b16 %v932
        %v1217 = vunpack.c.l.b16 %v933
        %v1218 = vunpack.c.h.b16 %v933
        %v1219 = vunpack.c.l.b16 %v934
        %v1220 = vunpack.c.h.b16 %v934
        %v1221 = vunpack.c.l.b16 %v935
        %v1222 = vunpack.c.h.b16 %v935
        %v1223 = vunpack.c.l.b16 %v936
        %v1224 = vunpack.c.h.b16 %v936
        %v1225 = vunpack.c.l.b16 %v937
        %v1226 = vunpack.c.h.b16 %v937
        %v1227 = vunpack.c.l.b16 %v938
        %v1228 = vunpack.c.h.b16 %v938
        %v1229 = vunpack.c.l.b16 %v939
        %v1230 = vunpack.c.h.b16 %v939
        %v1231 = vunpack.c.l.b16 %v940
        %v1232 = vunpack.c.h.b16 %v940
        %v1233 = vunpack.c.l.b16 %v941
        %v1234 = vunpack.c.h.b16 %v941
        %v1235 = vunpack.c.l.b16 %v942
        %v1236 = vunpack.c.h.b16 %v942
        %v1237 = vunpack.c.l.b16 %v943
        %v1238 = vunpack.c.h.b16 %v943
        %v1239 = vunpack.c.l.b16 %v944
        %v1240 = vunpack.c.h.b16 %v944
        %v1241 = vunpack.c.l.b16 %v945
        %v1242 = vunpack.c.h.b16 %v945
        %v1243 = vunpack.c.l.b16 %v946
        %v1244 = vunpack.c.h.b16 %v946
        %v1245 = vunpack.c.l.b16 %v947
        %v1246 = vunpack.c.h.b16 %v947
        %v1247 = vunpack.c.l.b16 %v948
        %v1248 = vunpack.c.h.b16 %v948
        %v1249 = vunpack.c.l.b16 %v949
        %v1250 = vunpack.c.h.b16 %v949
        %v1251 = vunpack.c.l.b16 %v950
        %v1252 = vunpack.c.h.b16 %v950
        %v1253 = vunpack.c.l.b16 %v951
        %v1254 = vunpack.c.h.b16 %v951
        %v1255 = vunpack.c.l.b16 %v952
        %v1256 = vunpack.c.h.b16 %v952
        %v1257 = vunpack.c.l.b16 %v953
        %v1258 = vunpack.c.h.b16 %v953
        %v1259 = vunpack.c.l.b16 %v954
        %v1260 = vunpack.c.h.b16 %v954
        %v1261 = vunpack.c.l.b16 %v955
        %v1262 = vunpack.c.h.b16 %v955
        %v1263 = vunpack.c.l.b16 %v956
        %v1264 = vunpack.c.h.b16 %v956
        %v1265 = vunpack.c.l.b16 %v957
        %v1266 = vunpack.c.h.b16 %v957
        %v1267 = vunpack.c.l.b16 %v958
        %v1268 = vunpack.c.h.b16 %v958
        %v1269 = vunpack.c.l.b16 %v959
        %v1270 = vunpack.c.h.b16 %v959
        %v1271 = vunpack.c.l.b16 %v960
        %v1272 = vunpack.c.h.b16 %v960
        %v1273 = vunpack.c.l.b16 %v961
        %v1274 = vunpack.c.h.b16 %v961
        %v1275 = vunpack.c.l.b16 %v962
        %v1276 = vunpack.c.h.b16 %v962
        %v1277 = vunpack.c.l.b16 %v963
        %v1278 = vunpack.c.h.b16 %v963
        %v1279 = vunpack.c.l.b16 %v964
        %v1280 = vunpack.c.h.b16 %v964
        %v1281 = vpack.c.b16 %v1101, %v1089
        %v1282 = vpack.c.b16 %v1102, %v1090
        %v1283 = vpack.c.b16 %v1103, %v1091
        %v1284 = vpack.c.b16 %v1104, %v1092
        %v1285 = vpack.c.b16 %v1105, %v1093
        %v1286 = vpack.c.b16 %v1106, %v1094
        %v1287 = vpack.c.b16 %v1107, %v1095
        %v1288 = vpack.c.b16 %v1108, %v1096
        %v1289 = vpack.c.b16 %v1109, %v1097
        %v1290 = vpack.c.b16 %v1110, %v1098
        %v1291 = vpack.c.b16 %v1111, %v1099
        %v1292 = vpack.c.b16 %v1112, %v1100
        %v1293 = vpack.c.b16 %v1125, %v1113
        %v1294 = vpack.c.b16 %v1126, %v1114
        %v1295 = vpack.c.b16 %v1127, %v1115
        %v1296 = vpack.c.b16 %v1128, %v1116
        %v1297 = vpack.c.b16 %v1129, %v1117
        %v1298 = vpack.c.b16 %v1130, %v1118
        %v1299 = vpack.c.b16 %v1131, %v1119
        %v1300 = vpack.c.b16 %v1132, %v1120
        %v1301 = vpack.c.b16 %v1133, %v1121
        %v1302 = vpack.c.b16 %v1134, %v1122
        %v1303 = vpack.c.b16 %v1135, %v1123
        %v1304 = vpack.c.b16 %v1136, %v1124
        %v1305 = vpack.c.b16 %v1149, %v1137
        %v1306 = vpack.c.b16 %v1150, %v1138
        %v1307 = vpack.c.b16 %v1151, %v1139
        %v1308 = vpack.c.b16 %v1152, %v1140
        %v1309 = vpack.c.b16 %v1153, %v1141
        %v1310 = vpack.c.b16 %v1154, %v1142
        %v1311 = vpack.c.b16 %v1155, %v1143
        %v1312 = vpack.c.b16 %v1156, %v1144
        %v1313 = vpack.c.b16 %v1157, %v1145
        %v1314 = vpack.c.b16 %v1158, %v1146
        %v1315 = vpack.c.b16 %v1159, %v1147
        %v1316 = vpack.c.b16 %v1160, %v1148
        %v1317 = vpack.c.b16 %v1173, %v1161
        %v1318 = vpack.c.b16 %v1174, %v1162
        %v1319 = vpack.c.b16 %v1175, %v1163
        %v1320 = vpack.c.b16 %v1176, %v1164
        %v1321 = vpack.c.b16 %v1177, %v1165
        %v1322 = vpack.c.b16 %v1178, %v1166
        %v1323 = vpack.c.b16 %v1179, %v1167
        %v1324 = vpack.c.b16 %v1180, %v1168
        %v1325 = vpack.c.b16 %v1181, %v1169
        %v1326 = vpack.c.b16 %v1182, %v1170
        %v1327 = vpack.c.b16 %v1183, %v1171
        %v1328 = vpack.c.b16 %v1184, %v1172
        %v1329 = vpack.c.b16 %v1197, %v1185
        %v1330 = vpack.c.b16 %v1198, %v1186
        %v1331 = vpack.c.b16 %v1199, %v1187
        %v1332 = vpack.c.b16 %v1200, %v1188
        %v1333 = vpack.c.b16 %v1201, %v1189
        %v1334 = vpack.c.b16 %v1202, %v1190
        %v1335 = vpack.c.b16 %v1203, %v1191
        %v1336 = vpack.c.b16 %v1204, %v1192
        %v1337 = vpack.c.b16 %v1205, %v1193
        %v1338 = vpack.c.b16 %v1206, %v1194
        %v1339 = vpack.c.b16 %v1207, %v1195
        %v1340 = vpack.c.b16 %v1208, %v1196
        %v1341 = vpack.c.b16 %v1221, %v1209
        %v1342 = vpack.c.b16 %v1222, %v1210
        %v1343 = vpack.c.b16 %v1223, %v1211
        %v1344 = vpack.c.b16 %v1224, %v1212
        %v1345 = vpack.c.b16 %v1225, %v1213
        %v1346 = vpack.c.b16 %v1226, %v1214
        %v1347 = vpack.c.b16 %v1227, %v1215
        %v1348 = vpack.c.b16 %v1228, %v1216
        %v1349 = vpack.c.b16 %v1229, %v1217
        %v1350 = vpack.c.b16 %v1230, %v1218
        %v1351 = vpack.c.b16 %v1231, %v1219
        %v1352 = vpack.c.b16 %v1232, %v1220
        %v1353 = vpack.c.b16 %v1245, %v1233
        %v1354 = vpack.c.b16 %v1246, %v1234
        %v1355 = vpack.c.b16 %v1247, %v1235
        %v1356 = vpack.c.b16 %v1248, %v1236
        %v1357 = vpack.c.b16 %v1249, %v1237
        %v1358 = vpack.c.b16 %v1250, %v1238
        %v1359 = vpack.c.b16 %v1251, %v1239
        %v1360 = vpack.c.b16 %v1252, %v1240
        %v1361 = vpack.c.b16 %v1253, %v1241
        %v1362 = vpack.c.b16 %v1254, %v1242
        %v1363 = vpack.c.b16 %v1255, %v1243
        %v1364 = vpack.c.b16 %v1256, %v1244
        %v1365 = vpack.c.b16 %v1269, %v1257
        %v1366 = vpack.c.b16 %v1270, %v1258
        %v1367 = vpack.c.b16 %v1271, %v1259
        %v1368 = vpack.c.b16 %v1272, %v1260
        %v1369 = vpack.c.b16 %v1273, %v1261
        %v1370 = vpack.c.b16 %v1274, %v1262
        %v1371 = vpack.c.b16 %v1275, %v1263
        %v1372 = vpack.c.b16 %v1276, %v1264
        %v1373 = vpack.c.b16 %v1277, %v1265
        %v1374 = vpack.c.b16 %v1278, %v1266
        %v1375 = vpack.c.b16 %v1279, %v1267
        %v1376 = vpack.c.b16 %v1280, %v1268
        %1473 = vmatpush.bf16.msra.mxu0 %v1365
        %1474 = vmatpush.bf16.msra.mxu0 %v1353
        %1475 = vmatpush.bf16.msra.mxu0 %v1341
        %1476 = vmatpush.bf16.msra.mxu0 %v1329
        %1477 = vmatpush.bf16.msra.mxu0 %v1317
        %1478 = vmatpush.bf16.msra.mxu0 %v1305
        %1479 = vmatpush.bf16.msra.mxu0 %v1293
        %1480 = vmatpush.bf16.msra.mxu0 %v1281
        %1481 = vmatmul.bf16.gmra.mxu0 %v867
        %v1482 = vpop.f32.mrf.mxu0
        %v1483 = vadd.f32 %v969, %v1482
        %v1484 = vpop.f32.mrf.mxu0
        %v1485 = vadd.f32 %v969, %v1484
        %1486 = vmatmul.bf16.gmra.mxu0 %v868
        %v1487 = vpop.f32.mrf.mxu0
        %v1488 = vadd.f32 %v969, %v1487
        %v1489 = vpop.f32.mrf.mxu0
        %v1490 = vadd.f32 %v969, %v1489
        %1491 = vdwg.mxu0
        %1492 = vmatpush.bf16.msra.mxu0 %v1366
        %1493 = vmatpush.bf16.msra.mxu0 %v1354
        %1494 = vmatpush.bf16.msra.mxu0 %v1342
        %1495 = vmatpush.bf16.msra.mxu0 %v1330
        %1496 = vmatpush.bf16.msra.mxu0 %v1318
        %1497 = vmatpush.bf16.msra.mxu0 %v1306
        %1498 = vmatpush.bf16.msra.mxu0 %v1294
        %1499 = vmatpush.bf16.msra.mxu0 %v1282
        %1500 = vmatmul.bf16.gmra.mxu0 %v867
        %v1501 = vpop.f32.mrf.mxu0
        %v1502 = vadd.f32 %v970, %v1501
        %v1503 = vpop.f32.mrf.mxu0
        %v1504 = vadd.f32 %v970, %v1503
        %1505 = vmatmul.bf16.gmra.mxu0 %v868
        %v1506 = vpop.f32.mrf.mxu0
        %v1507 = vadd.f32 %v970, %v1506
        %v1508 = vpop.f32.mrf.mxu0
        %v1509 = vadd.f32 %v970, %v1508
        %1510 = vdwg.mxu0
        %1511 = vmatpush.bf16.msra.mxu0 %v1367
        %1512 = vmatpush.bf16.msra.mxu0 %v1355
        %1513 = vmatpush.bf16.msra.mxu0 %v1343
        %1514 = vmatpush.bf16.msra.mxu0 %v1331
        %1515 = vmatpush.bf16.msra.mxu0 %v1319
        %1516 = vmatpush.bf16.msra.mxu0 %v1307
        %1517 = vmatpush.bf16.msra.mxu0 %v1295
        %1518 = vmatpush.bf16.msra.mxu0 %v1283
        %1519 = vmatmul.bf16.gmra.mxu0 %v867
        %v1520 = vpop.f32.mrf.mxu0
        %v1521 = vadd.f32 %v971, %v1520
        %v1522 = vpop.f32.mrf.mxu0
        %v1523 = vadd.f32 %v971, %v1522
        %1524 = vmatmul.bf16.gmra.mxu0 %v868
        %v1525 = vpop.f32.mrf.mxu0
        %v1526 = vadd.f32 %v971, %v1525
        %v1527 = vpop.f32.mrf.mxu0
        %v1528 = vadd.f32 %v971, %v1527
        %1529 = vdwg.mxu0
        %1530 = vmatpush.bf16.msra.mxu0 %v1368
        %1531 = vmatpush.bf16.msra.mxu0 %v1356
        %1532 = vmatpush.bf16.msra.mxu0 %v1344
        %1533 = vmatpush.bf16.msra.mxu0 %v1332
        %1534 = vmatpush.bf16.msra.mxu0 %v1320
        %1535 = vmatpush.bf16.msra.mxu0 %v1308
        %1536 = vmatpush.bf16.msra.mxu0 %v1296
        %1537 = vmatpush.bf16.msra.mxu0 %v1284
        %1538 = vmatmul.bf16.gmra.mxu0 %v867
        %v1539 = vpop.f32.mrf.mxu0
        %v1540 = vadd.f32 %v972, %v1539
        %v1541 = vpop.f32.mrf.mxu0
        %v1542 = vadd.f32 %v972, %v1541
        %1543 = vmatmul.bf16.gmra.mxu0 %v868
        %v1544 = vpop.f32.mrf.mxu0
        %v1545 = vadd.f32 %v972, %v1544
        %v1546 = vpop.f32.mrf.mxu0
        %v1547 = vadd.f32 %v972, %v1546
        %1548 = vdwg.mxu0
        %1549 = vmatpush.bf16.msra.mxu0 %v1369
        %1550 = vmatpush.bf16.msra.mxu0 %v1357
        %1551 = vmatpush.bf16.msra.mxu0 %v1345
        %1552 = vmatpush.bf16.msra.mxu0 %v1333
        %1553 = vmatpush.bf16.msra.mxu0 %v1321
        %1554 = vmatpush.bf16.msra.mxu0 %v1309
        %1555 = vmatpush.bf16.msra.mxu0 %v1297
        %1556 = vmatpush.bf16.msra.mxu0 %v1285
        %1557 = vmatmul.bf16.gmra.mxu0 %v867
        %v1558 = vpop.f32.mrf.mxu0
        %v1559 = vadd.f32 %v973, %v1558
        %v1560 = vpop.f32.mrf.mxu0
        %v1561 = vadd.f32 %v973, %v1560
        %1562 = vmatmul.bf16.gmra.mxu0 %v868
        %v1563 = vpop.f32.mrf.mxu0
        %v1564 = vadd.f32 %v973, %v1563
        %v1565 = vpop.f32.mrf.mxu0
        %v1566 = vadd.f32 %v973, %v1565
        %1567 = vdwg.mxu0
        %1568 = vmatpush.bf16.msra.mxu0 %v1370
        %1569 = vmatpush.bf16.msra.mxu0 %v1358
        %1570 = vmatpush.bf16.msra.mxu0 %v1346
        %1571 = vmatpush.bf16.msra.mxu0 %v1334
        %1572 = vmatpush.bf16.msra.mxu0 %v1322
        %1573 = vmatpush.bf16.msra.mxu0 %v1310
        %1574 = vmatpush.bf16.msra.mxu0 %v1298
        %1575 = vmatpush.bf16.msra.mxu0 %v1286
        %1576 = vmatmul.bf16.gmra.mxu0 %v867
        %v1577 = vpop.f32.mrf.mxu0
        %v1578 = vadd.f32 %v974, %v1577
        %v1579 = vpop.f32.mrf.mxu0
        %v1580 = vadd.f32 %v974, %v1579
        %1581 = vmatmul.bf16.gmra.mxu0 %v868
        %v1582 = vpop.f32.mrf.mxu0
        %v1583 = vadd.f32 %v974, %v1582
        %v1584 = vpop.f32.mrf.mxu0
        %v1585 = vadd.f32 %v974, %v1584
        %1586 = vdwg.mxu0
        %1587 = vmatpush.bf16.msra.mxu0 %v1371
        %1588 = vmatpush.bf16.msra.mxu0 %v1359
        %1589 = vmatpush.bf16.msra.mxu0 %v1347
        %1590 = vmatpush.bf16.msra.mxu0 %v1335
        %1591 = vmatpush.bf16.msra.mxu0 %v1323
        %1592 = vmatpush.bf16.msra.mxu0 %v1311
        %1593 = vmatpush.bf16.msra.mxu0 %v1299
        %1594 = vmatpush.bf16.msra.mxu0 %v1287
        %1595 = vmatmul.bf16.gmra.mxu0 %v867
        %v1596 = vpop.f32.mrf.mxu0
        %v1597 = vadd.f32 %v975, %v1596
        %v1598 = vpop.f32.mrf.mxu0
        %v1599 = vadd.f32 %v975, %v1598
        %1600 = vmatmul.bf16.gmra.mxu0 %v868
        %v1601 = vpop.f32.mrf.mxu0
        %v1602 = vadd.f32 %v975, %v1601
        %v1603 = vpop.f32.mrf.mxu0
        %v1604 = vadd.f32 %v975, %v1603
        %1605 = vdwg.mxu0
        %1606 = vmatpush.bf16.msra.mxu0 %v1372
        %1607 = vmatpush.bf16.msra.mxu0 %v1360
        %1608 = vmatpush.bf16.msra.mxu0 %v1348
        %1609 = vmatpush.bf16.msra.mxu0 %v1336
        %1610 = vmatpush.bf16.msra.mxu0 %v1324
        %1611 = vmatpush.bf16.msra.mxu0 %v1312
        %1612 = vmatpush.bf16.msra.mxu0 %v1300
        %1613 = vmatpush.bf16.msra.mxu0 %v1288
        %1614 = vmatmul.bf16.gmra.mxu0 %v867
        %v1615 = vpop.f32.mrf.mxu0
        %v1616 = vadd.f32 %v976, %v1615
        %v1617 = vpop.f32.mrf.mxu0
        %v1618 = vadd.f32 %v976, %v1617
        %1619 = vmatmul.bf16.gmra.mxu0 %v868
        %v1620 = vpop.f32.mrf.mxu0
        %v1621 = vadd.f32 %v976, %v1620
        %v1622 = vpop.f32.mrf.mxu0
        %v1623 = vadd.f32 %v976, %v1622
        %1624 = vdwg.mxu0
        %1625 = vmatpush.bf16.msra.mxu0 %v1373
        %1626 = vmatpush.bf16.msra.mxu0 %v1361
        %1627 = vmatpush.bf16.msra.mxu0 %v1349
        %1628 = vmatpush.bf16.msra.mxu0 %v1337
        %1629 = vmatpush.bf16.msra.mxu0 %v1325
        %1630 = vmatpush.bf16.msra.mxu0 %v1313
        %1631 = vmatpush.bf16.msra.mxu0 %v1301
        %1632 = vmatpush.bf16.msra.mxu0 %v1289
        %1633 = vmatmul.bf16.gmra.mxu0 %v867
        %v1634 = vpop.f32.mrf.mxu0
        %v1635 = vadd.f32 %v977, %v1634
        %v1636 = vpop.f32.mrf.mxu0
        %v1637 = vadd.f32 %v977, %v1636
        %1638 = vmatmul.bf16.gmra.mxu0 %v868
        %v1639 = vpop.f32.mrf.mxu0
        %v1640 = vadd.f32 %v977, %v1639
        %v1641 = vpop.f32.mrf.mxu0
        %v1642 = vadd.f32 %v977, %v1641
        %1643 = vdwg.mxu0
        %1644 = vmatpush.bf16.msra.mxu0 %v1374
        %1645 = vmatpush.bf16.msra.mxu0 %v1362
        %1646 = vmatpush.bf16.msra.mxu0 %v1350
        %1647 = vmatpush.bf16.msra.mxu0 %v1338
        %1648 = vmatpush.bf16.msra.mxu0 %v1326
        %1649 = vmatpush.bf16.msra.mxu0 %v1314
        %1650 = vmatpush.bf16.msra.mxu0 %v1302
        %1651 = vmatpush.bf16.msra.mxu0 %v1290
        %1652 = vmatmul.bf16.gmra.mxu0 %v867
        %v1653 = vpop.f32.mrf.mxu0
        %v1654 = vadd.f32 %v978, %v1653
        %v1655 = vpop.f32.mrf.mxu0
        %v1656 = vadd.f32 %v978, %v1655
        %1657 = vmatmul.bf16.gmra.mxu0 %v868
        %v1658 = vpop.f32.mrf.mxu0
        %v1659 = vadd.f32 %v978, %v1658
        %v1660 = vpop.f32.mrf.mxu0
        %v1661 = vadd.f32 %v978, %v1660
        %1662 = vdwg.mxu0
        %1663 = vmatpush.bf16.msra.mxu0 %v1375
        %1664 = vmatpush.bf16.msra.mxu0 %v1363
        %1665 = vmatpush.bf16.msra.mxu0 %v1351
        %1666 = vmatpush.bf16.msra.mxu0 %v1339
        %1667 = vmatpush.bf16.msra.mxu0 %v1327
        %1668 = vmatpush.bf16.msra.mxu0 %v1315
        %1669 = vmatpush.bf16.msra.mxu0 %v1303
        %1670 = vmatpush.bf16.msra.mxu0 %v1291
        %1671 = vmatmul.bf16.gmra.mxu0 %v867
        %v1672 = vpop.f32.mrf.mxu0
        %v1673 = vadd.f32 %v979, %v1672
        %v1674 = vpop.f32.mrf.mxu0
        %v1675 = vadd.f32 %v979, %v1674
        %1676 = vmatmul.bf16.gmra.mxu0 %v868
        %v1677 = vpop.f32.mrf.mxu0
        %v1678 = vadd.f32 %v979, %v1677
        %v1679 = vpop.f32.mrf.mxu0
        %v1680 = vadd.f32 %v979, %v1679
        %1681 = vdwg.mxu0
        %1682 = vmatpush.bf16.msra.mxu0 %v1376
        %1683 = vmatpush.bf16.msra.mxu0 %v1364
        %1684 = vmatpush.bf16.msra.mxu0 %v1352
        %1685 = vmatpush.bf16.msra.mxu0 %v1340
        %1686 = vmatpush.bf16.msra.mxu0 %v1328
        %1687 = vmatpush.bf16.msra.mxu0 %v1316
        %1688 = vmatpush.bf16.msra.mxu0 %v1304
        %1689 = vmatpush.bf16.msra.mxu0 %v1292
        %1690 = vmatmul.bf16.gmra.mxu0 %v867
        %v1691 = vpop.f32.mrf.mxu0
        %v1692 = vadd.f32 %v980, %v1691
        %v1693 = vpop.f32.mrf.mxu0
        %v1694 = vadd.f32 %v980, %v1693
        %1695 = vmatmul.bf16.gmra.mxu0 %v868
        %v1696 = vpop.f32.mrf.mxu0
        %v1697 = vadd.f32 %v980, %v1696
        %v1698 = vpop.f32.mrf.mxu0
        %v1699 = vadd.f32 %v980, %v1698
        %1700 = vdwg.mxu0
        %v1701 = vld [vmem:[#allocation17] sm:$0xff]
        %v1702 = vld [vmem:[#allocation17 + $0x8] sm:$0xff]
        %v1703 = vld [vmem:[#allocation17 + $0x10] sm:$0xff]
        %v1704 = vld [vmem:[#allocation17 + $0x18] sm:$0xff]
        %v1705 = vld [vmem:[#allocation17 + $0x20] sm:$0xff]
        %v1706 = vld [vmem:[#allocation17 + $0x28] sm:$0xff]
        %v1707 = vld [vmem:[#allocation17 + $0x30] sm:$0xff]
        %v1708 = vld [vmem:[#allocation17 + $0x38] sm:$0xff]
        %v1709 = vld [vmem:[#allocation17 + $0x40] sm:$0xff]
        %v1710 = vld [vmem:[#allocation17 + $0x48] sm:$0xff]
        %v1711 = vld [vmem:[#allocation17 + $0x50] sm:$0xff]
        %v1712 = vld [vmem:[#allocation17 + $0x58] sm:$0xff]
        %v1713 = vld [vmem:[#allocation17 + $0x60] sm:$0xff]
        %v1714 = vld [vmem:[#allocation17 + $0x68] sm:$0xff]
        %v1715 = vld [vmem:[#allocation17 + $0x70] sm:$0xff]
        %v1716 = vld [vmem:[#allocation17 + $0x78] sm:$0xff]
        %v1717 = vld [vmem:[#allocation18] sm:$0xff]
        %v1718 = vld [vmem:[#allocation18 + $0x8] sm:$0xff]
        %v1719 = vld [vmem:[#allocation18 + $0x10] sm:$0xff]
        %v1720 = vld [vmem:[#allocation18 + $0x18] sm:$0xff]
        %v1721 = vld [vmem:[#allocation18 + $0x20] sm:$0xff]
        %v1722 = vld [vmem:[#allocation18 + $0x28] sm:$0xff]
        %v1723 = vld [vmem:[#allocation18 + $0x30] sm:$0xff]
        %v1724 = vld [vmem:[#allocation18 + $0x38] sm:$0xff]
        %v1725 = vld [vmem:[#allocation18 + $0x40] sm:$0xff]
        %v1726 = vld [vmem:[#allocation18 + $0x48] sm:$0xff]
        %v1727 = vld [vmem:[#allocation18 + $0x50] sm:$0xff]
        %v1728 = vld [vmem:[#allocation18 + $0x58] sm:$0xff]
        %v1729 = vld [vmem:[#allocation18 + $0x60] sm:$0xff]
        %v1730 = vld [vmem:[#allocation18 + $0x68] sm:$0xff]
        %v1731 = vld [vmem:[#allocation18 + $0x70] sm:$0xff]
        %v1732 = vld [vmem:[#allocation18 + $0x78] sm:$0xff]
        %v1733 = vmul.f32 %v1483, %v1701
        %v1734 = vmul.f32 %v1485, %v1702
        %v1735 = vmul.f32 %v1488, %v1703
        %v1736 = vmul.f32 %v1490, %v1704
        %v1737 = vmul.f32 %v1502, %v1705
        %v1738 = vmul.f32 %v1504, %v1706
        %v1739 = vmul.f32 %v1507, %v1707
        %v1740 = vmul.f32 %v1509, %v1708
        %v1741 = vmul.f32 %v1521, %v1709
        %v1742 = vmul.f32 %v1523, %v1710
        %v1743 = vmul.f32 %v1526, %v1711
        %v1744 = vmul.f32 %v1528, %v1712
        %v1745 = vmul.f32 %v1540, %v1713
        %v1746 = vmul.f32 %v1542, %v1714
        %v1747 = vmul.f32 %v1545, %v1715
        %v1748 = vmul.f32 %v1547, %v1716
        %1749 = vrot.lane.b32.xlu0 %v1483, 64
        %v1750 = vpop.permute.xlu0 %1749
        %1751 = vrot.lane.b32.xlu0 %v1485, 64
        %v1752 = vpop.permute.xlu0 %1751
        %1753 = vrot.lane.b32.xlu0 %v1488, 64
        %v1754 = vpop.permute.xlu0 %1753
        %1755 = vrot.lane.b32.xlu0 %v1490, 64
        %v1756 = vpop.permute.xlu0 %1755
        %1757 = vrot.lane.b32.xlu0 %v1502, 64
        %v1758 = vpop.permute.xlu0 %1757
        %1759 = vrot.lane.b32.xlu0 %v1504, 64
        %v1760 = vpop.permute.xlu0 %1759
        %1761 = vrot.lane.b32.xlu0 %v1507, 64
        %v1762 = vpop.permute.xlu0 %1761
        %1763 = vrot.lane.b32.xlu0 %v1509, 64
        %v1764 = vpop.permute.xlu0 %1763
        %1765 = vrot.lane.b32.xlu0 %v1521, 64
        %v1766 = vpop.permute.xlu0 %1765
        %1767 = vrot.lane.b32.xlu0 %v1523, 64
        %v1768 = vpop.permute.xlu0 %1767
        %1769 = vrot.lane.b32.xlu0 %v1526, 64
        %v1770 = vpop.permute.xlu0 %1769
        %1771 = vrot.lane.b32.xlu0 %v1528, 64
        %v1772 = vpop.permute.xlu0 %1771
        %1773 = vrot.lane.b32.xlu0 %v1540, 64
        %v1774 = vpop.permute.xlu0 %1773
        %1775 = vrot.lane.b32.xlu0 %v1542, 64
        %v1776 = vpop.permute.xlu0 %1775
        %1777 = vrot.lane.b32.xlu0 %v1545, 64
        %v1778 = vpop.permute.xlu0 %1777
        %1779 = vrot.lane.b32.xlu0 %v1547, 64
        %v1780 = vpop.permute.xlu0 %1779
        %v1781 = vmul.f32 %v1750, %v1717
        %v1782 = vmul.f32 %v1752, %v1718
        %v1783 = vmul.f32 %v1754, %v1719
        %v1784 = vmul.f32 %v1756, %v1720
        %v1785 = vmul.f32 %v1758, %v1721
        %v1786 = vmul.f32 %v1760, %v1722
        %v1787 = vmul.f32 %v1762, %v1723
        %v1788 = vmul.f32 %v1764, %v1724
        %v1789 = vmul.f32 %v1766, %v1725
        %v1790 = vmul.f32 %v1768, %v1726
        %v1791 = vmul.f32 %v1770, %v1727
        %v1792 = vmul.f32 %v1772, %v1728
        %v1793 = vmul.f32 %v1774, %v1729
        %v1794 = vmul.f32 %v1776, %v1730
        %v1795 = vmul.f32 %v1778, %v1731
        %v1796 = vmul.f32 %v1780, %v1732
        %v1797 = vadd.f32 %v1733, %v1781
        %v1798 = vadd.f32 %v1734, %v1782
        %v1799 = vadd.f32 %v1735, %v1783
        %v1800 = vadd.f32 %v1736, %v1784
        %v1801 = vadd.f32 %v1737, %v1785
        %v1802 = vadd.f32 %v1738, %v1786
        %v1803 = vadd.f32 %v1739, %v1787
        %v1804 = vadd.f32 %v1740, %v1788
        %v1805 = vadd.f32 %v1741, %v1789
        %v1806 = vadd.f32 %v1742, %v1790
        %v1807 = vadd.f32 %v1743, %v1791
        %v1808 = vadd.f32 %v1744, %v1792
        %v1809 = vadd.f32 %v1745, %v1793
        %v1810 = vadd.f32 %v1746, %v1794
        %v1811 = vadd.f32 %v1747, %v1795
        %v1812 = vadd.f32 %v1748, %v1796
        %v1813 = vpack.c.bf16 %v1798, %v1797
        %v1814 = vpack.c.bf16 %v1800, %v1799
        %v1815 = vpack.c.bf16 %v1802, %v1801
        %v1816 = vpack.c.bf16 %v1804, %v1803
        %v1817 = vpack.c.bf16 %v1806, %v1805
        %v1818 = vpack.c.bf16 %v1808, %v1807
        %v1819 = vpack.c.bf16 %v1810, %v1809
        %v1820 = vpack.c.bf16 %v1812, %v1811
        %v1821 = vmul.f32 %v1559, %v1701
        %v1822 = vmul.f32 %v1561, %v1702
        %v1823 = vmul.f32 %v1564, %v1703
        %v1824 = vmul.f32 %v1566, %v1704
        %v1825 = vmul.f32 %v1578, %v1705
        %v1826 = vmul.f32 %v1580, %v1706
        %v1827 = vmul.f32 %v1583, %v1707
        %v1828 = vmul.f32 %v1585, %v1708
        %v1829 = vmul.f32 %v1597, %v1709
        %v1830 = vmul.f32 %v1599, %v1710
        %v1831 = vmul.f32 %v1602, %v1711
        %v1832 = vmul.f32 %v1604, %v1712
        %v1833 = vmul.f32 %v1616, %v1713
        %v1834 = vmul.f32 %v1618, %v1714
        %v1835 = vmul.f32 %v1621, %v1715
        %v1836 = vmul.f32 %v1623, %v1716
        %1837 = vrot.lane.b32.xlu0 %v1559, 64
        %v1838 = vpop.permute.xlu0 %1837
        %1839 = vrot.lane.b32.xlu0 %v1561, 64
        %v1840 = vpop.permute.xlu0 %1839
        %1841 = vrot.lane.b32.xlu0 %v1564, 64
        %v1842 = vpop.permute.xlu0 %1841
        %1843 = vrot.lane.b32.xlu0 %v1566, 64
        %v1844 = vpop.permute.xlu0 %1843
        %1845 = vrot.lane.b32.xlu0 %v1578, 64
        %v1846 = vpop.permute.xlu0 %1845
        %1847 = vrot.lane.b32.xlu0 %v1580, 64
        %v1848 = vpop.permute.xlu0 %1847
        %1849 = vrot.lane.b32.xlu0 %v1583, 64
        %v1850 = vpop.permute.xlu0 %1849
        %1851 = vrot.lane.b32.xlu0 %v1585, 64
        %v1852 = vpop.permute.xlu0 %1851
        %1853 = vrot.lane.b32.xlu0 %v1597, 64
        %v1854 = vpop.permute.xlu0 %1853
        %1855 = vrot.lane.b32.xlu0 %v1599, 64
        %v1856 = vpop.permute.xlu0 %1855
        %1857 = vrot.lane.b32.xlu0 %v1602, 64
        %v1858 = vpop.permute.xlu0 %1857
        %1859 = vrot.lane.b32.xlu0 %v1604, 64
        %v1860 = vpop.permute.xlu0 %1859
        %1861 = vrot.lane.b32.xlu0 %v1616, 64
        %v1862 = vpop.permute.xlu0 %1861
        %1863 = vrot.lane.b32.xlu0 %v1618, 64
        %v1864 = vpop.permute.xlu0 %1863
        %1865 = vrot.lane.b32.xlu0 %v1621, 64
        %v1866 = vpop.permute.xlu0 %1865
        %1867 = vrot.lane.b32.xlu0 %v1623, 64
        %v1868 = vpop.permute.xlu0 %1867
        %v1869 = vmul.f32 %v1838, %v1717
        %v1870 = vmul.f32 %v1840, %v1718
        %v1871 = vmul.f32 %v1842, %v1719
        %v1872 = vmul.f32 %v1844, %v1720
        %v1873 = vmul.f32 %v1846, %v1721
        %v1874 = vmul.f32 %v1848, %v1722
        %v1875 = vmul.f32 %v1850, %v1723
        %v1876 = vmul.f32 %v1852, %v1724
        %v1877 = vmul.f32 %v1854, %v1725
        %v1878 = vmul.f32 %v1856, %v1726
        %v1879 = vmul.f32 %v1858, %v1727
        %v1880 = vmul.f32 %v1860, %v1728
        %v1881 = vmul.f32 %v1862, %v1729
        %v1882 = vmul.f32 %v1864, %v1730
        %v1883 = vmul.f32 %v1866, %v1731
        %v1884 = vmul.f32 %v1868, %v1732
        %v1885 = vadd.f32 %v1821, %v1869
        %v1886 = vadd.f32 %v1822, %v1870
        %v1887 = vadd.f32 %v1823, %v1871
        %v1888 = vadd.f32 %v1824, %v1872
        %v1889 = vadd.f32 %v1825, %v1873
        %v1890 = vadd.f32 %v1826, %v1874
        %v1891 = vadd.f32 %v1827, %v1875
        %v1892 = vadd.f32 %v1828, %v1876
        %v1893 = vadd.f32 %v1829, %v1877
        %v1894 = vadd.f32 %v1830, %v1878
        %v1895 = vadd.f32 %v1831, %v1879
        %v1896 = vadd.f32 %v1832, %v1880
        %v1897 = vadd.f32 %v1833, %v1881
        %v1898 = vadd.f32 %v1834, %v1882
        %v1899 = vadd.f32 %v1835, %v1883
        %v1900 = vadd.f32 %v1836, %v1884
        %v1901 = vpack.c.bf16 %v1886, %v1885
        %v1902 = vpack.c.bf16 %v1888, %v1887
        %v1903 = vpack.c.bf16 %v1890, %v1889
        %v1904 = vpack.c.bf16 %v1892, %v1891
        %v1905 = vpack.c.bf16 %v1894, %v1893
        %v1906 = vpack.c.bf16 %v1896, %v1895
        %v1907 = vpack.c.bf16 %v1898, %v1897
        %v1908 = vpack.c.bf16 %v1900, %v1899
        %1909 = vmatpush.bf16.xpose.msra.mxu0 %v1908
        %1910 = vmatpush.bf16.xpose.msra.mxu0 %v1907
        %1911 = vmatpush.bf16.xpose.msra.mxu0 %v1906
        %1912 = vmatpush.bf16.xpose.msra.mxu0 %v1905
        %1913 = vmatpush.bf16.xpose.msra.mxu0 %v1904
        %1914 = vmatpush.bf16.xpose.msra.mxu0 %v1903
        %1915 = vmatpush.bf16.xpose.msra.mxu0 %v1902
        %1916 = vmatpush.bf16.xpose.msra.mxu0 %v1901
        %1917 = vmatmul.bf16.gmra.mxu0 %v1813
        %v1918 = vpop.f32.mrf.mxu0
        %v1919 = vadd.f32 0.0, %v1918
        %v1920 = vpop.f32.mrf.mxu0
        %v1921 = vadd.f32 0.0, %v1920
        %1922 = vmatmul.bf16.gmra.mxu0 %v1814
        %v1923 = vpop.f32.mrf.mxu0
        %v1924 = vadd.f32 0.0, %v1923
        %v1925 = vpop.f32.mrf.mxu0
        %v1926 = vadd.f32 0.0, %v1925
        %1927 = vmatmul.bf16.gmra.mxu0 %v1815
        %v1928 = vpop.f32.mrf.mxu0
        %v1929 = vadd.f32 0.0, %v1928
        %v1930 = vpop.f32.mrf.mxu0
        %v1931 = vadd.f32 0.0, %v1930
        %1932 = vmatmul.bf16.gmra.mxu0 %v1816
        %v1933 = vpop.f32.mrf.mxu0
        %v1934 = vadd.f32 0.0, %v1933
        %v1935 = vpop.f32.mrf.mxu0
        %v1936 = vadd.f32 0.0, %v1935
        %1937 = vmatmul.bf16.gmra.mxu0 %v1817
        %v1938 = vpop.f32.mrf.mxu0
        %v1939 = vadd.f32 0.0, %v1938
        %v1940 = vpop.f32.mrf.mxu0
        %v1941 = vadd.f32 0.0, %v1940
        %1942 = vmatmul.bf16.gmra.mxu0 %v1818
        %v1943 = vpop.f32.mrf.mxu0
        %v1944 = vadd.f32 0.0, %v1943
        %v1945 = vpop.f32.mrf.mxu0
        %v1946 = vadd.f32 0.0, %v1945
        %1947 = vmatmul.bf16.gmra.mxu0 %v1819
        %v1948 = vpop.f32.mrf.mxu0
        %v1949 = vadd.f32 0.0, %v1948
        %v1950 = vpop.f32.mrf.mxu0
        %v1951 = vadd.f32 0.0, %v1950
        %1952 = vmatmul.bf16.gmra.mxu0 %v1820
        %v1953 = vpop.f32.mrf.mxu0
        %v1954 = vadd.f32 0.0, %v1953
        %v1955 = vpop.f32.mrf.mxu0
        %v1956 = vadd.f32 0.0, %v1955
        %1957 = vdwg.mxu0
        %v1958 = vmul.f32 %v1919, 0.088388346
        %v1959 = vmul.f32 %v1921, 0.088388346
        %v1960 = vmul.f32 %v1924, 0.088388346
        %v1961 = vmul.f32 %v1926, 0.088388346
        %v1962 = vmul.f32 %v1929, 0.088388346
        %v1963 = vmul.f32 %v1931, 0.088388346
        %v1964 = vmul.f32 %v1934, 0.088388346
        %v1965 = vmul.f32 %v1936, 0.088388346
        %v1966 = vmul.f32 %v1939, 0.088388346
        %v1967 = vmul.f32 %v1941, 0.088388346
        %v1968 = vmul.f32 %v1944, 0.088388346
        %v1969 = vmul.f32 %v1946, 0.088388346
        %v1970 = vmul.f32 %v1949, 0.088388346
        %v1971 = vmul.f32 %v1951, 0.088388346
        %v1972 = vmul.f32 %v1954, 0.088388346
        %v1973 = vmul.f32 %v1956, 0.088388346
        %v1974 = vld [vmem:[#allocation20] sm:$0xff]
        %v1975 = vld [vmem:[#allocation20 + $0x8] sm:$0xff]
        %v1976 = vld [vmem:[#allocation20 + $0x10] sm:$0xff]
        %v1977 = vld [vmem:[#allocation20 + $0x18] sm:$0xff]
        %v1978 = vld [vmem:[#allocation20 + $0x20] sm:$0xff]
        %v1979 = vld [vmem:[#allocation20 + $0x28] sm:$0xff]
        %v1980 = vld [vmem:[#allocation20 + $0x30] sm:$0xff]
        %v1981 = vld [vmem:[#allocation20 + $0x38] sm:$0xff]
        %v1982 = vld [vmem:[#allocation20 + $0x40] sm:$0xff]
        %v1983 = vld [vmem:[#allocation20 + $0x48] sm:$0xff]
        %v1984 = vld [vmem:[#allocation20 + $0x50] sm:$0xff]
        %v1985 = vld [vmem:[#allocation20 + $0x58] sm:$0xff]
        %v1986 = vld [vmem:[#allocation20 + $0x60] sm:$0xff]
        %v1987 = vld [vmem:[#allocation20 + $0x68] sm:$0xff]
        %v1988 = vld [vmem:[#allocation20 + $0x70] sm:$0xff]
        %v1989 = vld [vmem:[#allocation20 + $0x78] sm:$0xff]
        %v1990 = vadd.f32 %v1958, %v1974
        %v1991 = vadd.f32 %v1959, %v1975
        %v1992 = vadd.f32 %v1960, %v1976
        %v1993 = vadd.f32 %v1961, %v1977
        %v1994 = vadd.f32 %v1962, %v1978
        %v1995 = vadd.f32 %v1963, %v1979
        %v1996 = vadd.f32 %v1964, %v1980
        %v1997 = vadd.f32 %v1965, %v1981
        %v1998 = vadd.f32 %v1966, %v1982
        %v1999 = vadd.f32 %v1967, %v1983
        %v2000 = vadd.f32 %v1968, %v1984
        %v2001 = vadd.f32 %v1969, %v1985
        %v2002 = vadd.f32 %v1970, %v1986
        %v2003 = vadd.f32 %v1971, %v1987
        %v2004 = vadd.f32 %v1972, %v1988
        %v2005 = vadd.f32 %v1973, %v1989
        %2006 = vmax.xlane.f32.xlu0 %v1990
        %v2007 = vpop.xlane.xlu0 %2006
        %2008 = vmax.xlane.f32.xlu0 %v1991
        %v2009 = vpop.xlane.xlu0 %2008
        %2010 = vmax.xlane.f32.xlu0 %v1992
        %v2011 = vpop.xlane.xlu0 %2010
        %2012 = vmax.xlane.f32.xlu0 %v1993
        %v2013 = vpop.xlane.xlu0 %2012
        %2014 = vmax.xlane.f32.xlu0 %v1994
        %v2015 = vpop.xlane.xlu0 %2014
        %2016 = vmax.xlane.f32.xlu0 %v1995
        %v2017 = vpop.xlane.xlu0 %2016
        %2018 = vmax.xlane.f32.xlu0 %v1996
        %v2019 = vpop.xlane.xlu0 %2018
        %2020 = vmax.xlane.f32.xlu0 %v1997
        %v2021 = vpop.xlane.xlu0 %2020
        %2022 = vmax.xlane.f32.xlu0 %v1998
        %v2023 = vpop.xlane.xlu0 %2022
        %2024 = vmax.xlane.f32.xlu0 %v1999
        %v2025 = vpop.xlane.xlu0 %2024
        %2026 = vmax.xlane.f32.xlu0 %v2000
        %v2027 = vpop.xlane.xlu0 %2026
        %2028 = vmax.xlane.f32.xlu0 %v2001
        %v2029 = vpop.xlane.xlu0 %2028
        %2030 = vmax.xlane.f32.xlu0 %v2002
        %v2031 = vpop.xlane.xlu0 %2030
        %2032 = vmax.xlane.f32.xlu0 %v2003
        %v2033 = vpop.xlane.xlu0 %2032
        %2034 = vmax.xlane.f32.xlu0 %v2004
        %v2035 = vpop.xlane.xlu0 %2034
        %2036 = vmax.xlane.f32.xlu0 %v2005
        %v2037 = vpop.xlane.xlu0 %2036
        %v2038 = vsub.f32 %v1990, %v2007
        %v2039 = vsub.f32 %v1991, %v2009
        %v2040 = vsub.f32 %v1992, %v2011
        %v2041 = vsub.f32 %v1993, %v2013
        %v2042 = vsub.f32 %v1994, %v2015
        %v2043 = vsub.f32 %v1995, %v2017
        %v2044 = vsub.f32 %v1996, %v2019
        %v2045 = vsub.f32 %v1997, %v2021
        %v2046 = vsub.f32 %v1998, %v2023
        %v2047 = vsub.f32 %v1999, %v2025
        %v2048 = vsub.f32 %v2000, %v2027
        %v2049 = vsub.f32 %v2001, %v2029
        %v2050 = vsub.f32 %v2002, %v2031
        %v2051 = vsub.f32 %v2003, %v2033
        %v2052 = vsub.f32 %v2004, %v2035
        %v2053 = vsub.f32 %v2005, %v2037
        %v2054 = vmul.f32 %v2038, 1.442695
        %v2055 = vpow.pop %v2054
        %v2056 = vmul.f32 %v2039, 1.442695
        %v2057 = vpow.pop %v2056
        %v2058 = vmul.f32 %v2040, 1.442695
        %v2059 = vpow.pop %v2058
        %v2060 = vmul.f32 %v2041, 1.442695
        %v2061 = vpow.pop %v2060
        %v2062 = vmul.f32 %v2042, 1.442695
        %v2063 = vpow.pop %v2062
        %v2064 = vmul.f32 %v2043, 1.442695
        %v2065 = vpow.pop %v2064
        %v2066 = vmul.f32 %v2044, 1.442695
        %v2067 = vpow.pop %v2066
        %v2068 = vmul.f32 %v2045, 1.442695
        %v2069 = vpow.pop %v2068
        %v2070 = vmul.f32 %v2046, 1.442695
        %v2071 = vpow.pop %v2070
        %v2072 = vmul.f32 %v2047, 1.442695
        %v2073 = vpow.pop %v2072
        %v2074 = vmul.f32 %v2048, 1.442695
        %v2075 = vpow.pop %v2074
        %v2076 = vmul.f32 %v2049, 1.442695
        %v2077 = vpow.pop %v2076
        %v2078 = vmul.f32 %v2050, 1.442695
        %v2079 = vpow.pop %v2078
        %v2080 = vmul.f32 %v2051, 1.442695
        %v2081 = vpow.pop %v2080
        %v2082 = vmul.f32 %v2052, 1.442695
        %v2083 = vpow.pop %v2082
        %v2084 = vmul.f32 %v2053, 1.442695
        %v2085 = vpow.pop %v2084
        %2086 = vadd.xlane.f32.xlu0 %v2055
        %v2087 = vpop.xlane.xlu0 %2086
        %2088 = vadd.xlane.f32.xlu0 %v2057
        %v2089 = vpop.xlane.xlu0 %2088
        %2090 = vadd.xlane.f32.xlu0 %v2059
        %v2091 = vpop.xlane.xlu0 %2090
        %2092 = vadd.xlane.f32.xlu0 %v2061
        %v2093 = vpop.xlane.xlu0 %2092
        %2094 = vadd.xlane.f32.xlu0 %v2063
        %v2095 = vpop.xlane.xlu0 %2094
        %2096 = vadd.xlane.f32.xlu0 %v2065
        %v2097 = vpop.xlane.xlu0 %2096
        %2098 = vadd.xlane.f32.xlu0 %v2067
        %v2099 = vpop.xlane.xlu0 %2098
        %2100 = vadd.xlane.f32.xlu0 %v2069
        %v2101 = vpop.xlane.xlu0 %2100
        %2102 = vadd.xlane.f32.xlu0 %v2071
        %v2103 = vpop.xlane.xlu0 %2102
        %2104 = vadd.xlane.f32.xlu0 %v2073
        %v2105 = vpop.xlane.xlu0 %2104
        %2106 = vadd.xlane.f32.xlu0 %v2075
        %v2107 = vpop.xlane.xlu0 %2106
        %2108 = vadd.xlane.f32.xlu0 %v2077
        %v2109 = vpop.xlane.xlu0 %2108
        %2110 = vadd.xlane.f32.xlu0 %v2079
        %v2111 = vpop.xlane.xlu0 %2110
        %2112 = vadd.xlane.f32.xlu0 %v2081
        %v2113 = vpop.xlane.xlu0 %2112
        %2114 = vadd.xlane.f32.xlu0 %v2083
        %v2115 = vpop.xlane.xlu0 %2114
        %2116 = vadd.xlane.f32.xlu0 %v2085
        %v2117 = vpop.xlane.xlu0 %2116
        %v2118 = vrcp.pop %v2087
        %v2119 = vrcp.pop %v2089
        %v2120 = vrcp.pop %v2091
        %v2121 = vrcp.pop %v2093
        %v2122 = vrcp.pop %v2095
        %v2123 = vrcp.pop %v2097
        %v2124 = vrcp.pop %v2099
        %v2125 = vrcp.pop %v2101
        %v2126 = vrcp.pop %v2103
        %v2127 = vrcp.pop %v2105
        %v2128 = vrcp.pop %v2107
        %v2129 = vrcp.pop %v2109
        %v2130 = vrcp.pop %v2111
        %v2131 = vrcp.pop %v2113
        %v2132 = vrcp.pop %v2115
        %v2133 = vrcp.pop %v2117
        %v2134 = vmul.f32 %v2055, %v2118
        %v2135 = vmul.f32 %v2057, %v2119
        %v2136 = vmul.f32 %v2059, %v2120
        %v2137 = vmul.f32 %v2061, %v2121
        %v2138 = vmul.f32 %v2063, %v2122
        %v2139 = vmul.f32 %v2065, %v2123
        %v2140 = vmul.f32 %v2067, %v2124
        %v2141 = vmul.f32 %v2069, %v2125
        %v2142 = vmul.f32 %v2071, %v2126
        %v2143 = vmul.f32 %v2073, %v2127
        %v2144 = vmul.f32 %v2075, %v2128
        %v2145 = vmul.f32 %v2077, %v2129
        %v2146 = vmul.f32 %v2079, %v2130
        %v2147 = vmul.f32 %v2081, %v2131
        %v2148 = vmul.f32 %v2083, %v2132
        %v2149 = vmul.f32 %v2085, %v2133
        %v2150 = vpack.c.bf16 %v2135, %v2134
        %v2151 = vpack.c.bf16 %v2137, %v2136
        %v2152 = vpack.c.bf16 %v2139, %v2138
        %v2153 = vpack.c.bf16 %v2141, %v2140
        %v2154 = vpack.c.bf16 %v2143, %v2142
        %v2155 = vpack.c.bf16 %v2145, %v2144
        %v2156 = vpack.c.bf16 %v2147, %v2146
        %v2157 = vpack.c.bf16 %v2149, %v2148
        %v2158 = vpack.c.bf16 %v1637, %v1635
        %v2159 = vpack.c.bf16 %v1642, %v1640
        %v2160 = vpack.c.bf16 %v1656, %v1654
        %v2161 = vpack.c.bf16 %v1661, %v1659
        %v2162 = vpack.c.bf16 %v1675, %v1673
        %v2163 = vpack.c.bf16 %v1680, %v1678
        %v2164 = vpack.c.bf16 %v1694, %v1692
        %v2165 = vpack.c.bf16 %v1699, %v1697
        %2166 = vmatpush.bf16.msra.mxu0 %v2165
        %2167 = vmatpush.bf16.msra.mxu0 %v2164
        %2168 = vmatpush.bf16.msra.mxu0 %v2163
        %2169 = vmatpush.bf16.msra.mxu0 %v2162
        %2170 = vmatpush.bf16.msra.mxu0 %v2161
        %2171 = vmatpush.bf16.msra.mxu0 %v2160
        %2172 = vmatpush.bf16.msra.mxu0 %v2159
        %2173 = vmatpush.bf16.msra.mxu0 %v2158
        %2174 = vmatmul.bf16.gmra.mxu0 %v2150
        %v2175 = vpop.f32.mrf.mxu0
        %v2176 = vadd.f32 0.0, %v2175
        %v2177 = vpop.f32.mrf.mxu0
        %v2178 = vadd.f32 0.0, %v2177
        %2179 = vmatmul.bf16.gmra.mxu0 %v2151
        %v2180 = vpop.f32.mrf.mxu0
        %v2181 = vadd.f32 0.0, %v2180
        %v2182 = vpop.f32.mrf.mxu0
        %v2183 = vadd.f32 0.0, %v2182
        %2184 = vmatmul.bf16.gmra.mxu0 %v2152
        %v2185 = vpop.f32.mrf.mxu0
        %v2186 = vadd.f32 0.0, %v2185
        %v2187 = vpop.f32.mrf.mxu0
        %v2188 = vadd.f32 0.0, %v2187
        %2189 = vmatmul.bf16.gmra.mxu0 %v2153
        %v2190 = vpop.f32.mrf.mxu0
        %v2191 = vadd.f32 0.0, %v2190
        %v2192 = vpop.f32.mrf.mxu0
        %v2193 = vadd.f32 0.0, %v2192
        %2194 = vmatmul.bf16.gmra.mxu0 %v2154
        %v2195 = vpop.f32.mrf.mxu0
        %v2196 = vadd.f32 0.0, %v2195
        %v2197 = vpop.f32.mrf.mxu0
        %v2198 = vadd.f32 0.0, %v2197
        %2199 = vmatmul.bf16.gmra.mxu0 %v2155
        %v2200 = vpop.f32.mrf.mxu0
        %v2201 = vadd.f32 0.0, %v2200
        %v2202 = vpop.f32.mrf.mxu0
        %v2203 = vadd.f32 0.0, %v2202
        %2204 = vmatmul.bf16.gmra.mxu0 %v2156
        %v2205 = vpop.f32.mrf.mxu0
        %v2206 = vadd.f32 0.0, %v2205
        %v2207 = vpop.f32.mrf.mxu0
        %v2208 = vadd.f32 0.0, %v2207
        %2209 = vmatmul.bf16.gmra.mxu0 %v2157
        %v2210 = vpop.f32.mrf.mxu0
        %v2211 = vadd.f32 0.0, %v2210
        %v2212 = vpop.f32.mrf.mxu0
        %v2213 = vadd.f32 0.0, %v2212
        %2214 = vdwg.mxu0
        %v2215 = vpack.c.bf16 %v2178, %v2176
        %v2216 = vpack.c.bf16 %v2188, %v2186
        %v2217 = vpack.c.bf16 %v2198, %v2196
        %v2218 = vpack.c.bf16 %v2208, %v2206
        %v2219 = vpack.c.bf16 %v2183, %v2181
        %v2220 = vpack.c.bf16 %v2193, %v2191
        %v2221 = vpack.c.bf16 %v2203, %v2201
        %v2222 = vpack.c.bf16 %v2213, %v2211
        %v2223 = vld [vmem:[%s647] sm:$0xf]
        %v2224 = vld [vmem:[%s647 + $0x4] sm:$0xf]
        %v2225 = vld [vmem:[%s647 + $0x8] sm:$0xf]
        %v2226 = vld [vmem:[%s647 + $0xc] sm:$0xf]
        %v2227 = vld [vmem:[%s647 + $0x10] sm:$0xf]
        %v2228 = vld [vmem:[%s647 + $0x14] sm:$0xf]
        %v2229 = vld [vmem:[%s647 + $0x18] sm:$0xf]
        %v2230 = vld [vmem:[%s647 + $0x1c] sm:$0xf]
        %v2231 = vld [vmem:[%s647 + $0x20] sm:$0xf]
        %v2232 = vld [vmem:[%s647 + $0x24] sm:$0xf]
        %v2233 = vld [vmem:[%s647 + $0x28] sm:$0xf]
        %v2234 = vld [vmem:[%s647 + $0x2c] sm:$0xf]
        %v2235 = vld [vmem:[%s647 + $0x30] sm:$0xf]
        %v2236 = vld [vmem:[%s647 + $0x34] sm:$0xf]
        %v2237 = vld [vmem:[%s647 + $0x38] sm:$0xf]
        %v2238 = vld [vmem:[%s647 + $0x3c] sm:$0xf]
        %v2239 = vld [vmem:[%s647 + $0x40] sm:$0xf]
        %v2240 = vld [vmem:[%s647 + $0x44] sm:$0xf]
        %v2241 = vld [vmem:[%s647 + $0x48] sm:$0xf]
        %v2242 = vld [vmem:[%s647 + $0x4c] sm:$0xf]
        %v2243 = vld [vmem:[%s647 + $0x50] sm:$0xf]
        %v2244 = vld [vmem:[%s647 + $0x54] sm:$0xf]
        %v2245 = vld [vmem:[%s647 + $0x58] sm:$0xf]
        %v2246 = vld [vmem:[%s647 + $0x5c] sm:$0xf]
        %v2247 = vld [vmem:[%s647 + $0x60] sm:$0xf]
        %v2248 = vld [vmem:[%s647 + $0x64] sm:$0xf]
        %v2249 = vld [vmem:[%s647 + $0x68] sm:$0xf]
        %v2250 = vld [vmem:[%s647 + $0x6c] sm:$0xf]
        %v2251 = vld [vmem:[%s647 + $0x70] sm:$0xf]
        %v2252 = vld [vmem:[%s647 + $0x74] sm:$0xf]
        %v2253 = vld [vmem:[%s647 + $0x78] sm:$0xf]
        %v2254 = vld [vmem:[%s647 + $0x7c] sm:$0xf]
        %v2255 = vld [vmem:[%s647 + $0x80] sm:$0xf]
        %v2256 = vld [vmem:[%s647 + $0x84] sm:$0xf]
        %v2257 = vld [vmem:[%s647 + $0x88] sm:$0xf]
        %v2258 = vld [vmem:[%s647 + $0x8c] sm:$0xf]
        %v2259 = vld [vmem:[%s647 + $0x90] sm:$0xf]
        %v2260 = vld [vmem:[%s647 + $0x94] sm:$0xf]
        %v2261 = vld [vmem:[%s647 + $0x98] sm:$0xf]
        %v2262 = vld [vmem:[%s647 + $0x9c] sm:$0xf]
        %v2263 = vld [vmem:[%s647 + $0xa0] sm:$0xf]
        %v2264 = vld [vmem:[%s647 + $0xa4] sm:$0xf]
        %v2265 = vld [vmem:[%s647 + $0xa8] sm:$0xf]
        %v2266 = vld [vmem:[%s647 + $0xac] sm:$0xf]
        %v2267 = vld [vmem:[%s647 + $0xb0] sm:$0xf]
        %v2268 = vld [vmem:[%s647 + $0xb4] sm:$0xf]
        %v2269 = vld [vmem:[%s647 + $0xb8] sm:$0xf]
        %v2270 = vld [vmem:[%s647 + $0xbc] sm:$0xf]
        %v2271 = vld [vmem:[%s647 + $0xc0] sm:$0xf]
        %v2272 = vld [vmem:[%s647 + $0xc4] sm:$0xf]
        %v2273 = vld [vmem:[%s647 + $0xc8] sm:$0xf]
        %v2274 = vld [vmem:[%s647 + $0xcc] sm:$0xf]
        %v2275 = vld [vmem:[%s647 + $0xd0] sm:$0xf]
        %v2276 = vld [vmem:[%s647 + $0xd4] sm:$0xf]
        %v2277 = vld [vmem:[%s647 + $0xd8] sm:$0xf]
        %v2278 = vld [vmem:[%s647 + $0xdc] sm:$0xf]
        %v2279 = vld [vmem:[%s647 + $0xe0] sm:$0xf]
        %v2280 = vld [vmem:[%s647 + $0xe4] sm:$0xf]
        %v2281 = vld [vmem:[%s647 + $0xe8] sm:$0xf]
        %v2282 = vld [vmem:[%s647 + $0xec] sm:$0xf]
        %v2283 = vld [vmem:[%s647 + $0xf0] sm:$0xf]
        %v2284 = vld [vmem:[%s647 + $0xf4] sm:$0xf]
        %v2285 = vld [vmem:[%s647 + $0xf8] sm:$0xf]
        %v2286 = vld [vmem:[%s647 + $0xfc] sm:$0xf]
        %v2287 = vld [vmem:[%s767] sm:$0x1]
        %v2289 = vperm.slane %v2287, 0
        %v2355 = vunpack.c.l.b16 %v2223
        %v2356 = vunpack.c.l.b16 %v2224
        %v2357 = vunpack.c.l.b16 %v2225
        %v2358 = vunpack.c.l.b16 %v2226
        %v2359 = vunpack.c.l.b16 %v2227
        %v2360 = vunpack.c.l.b16 %v2228
        %v2361 = vunpack.c.l.b16 %v2229
        %v2362 = vunpack.c.l.b16 %v2230
        %v2363 = vunpack.c.l.b16 %v2231
        %v2364 = vunpack.c.l.b16 %v2232
        %v2365 = vunpack.c.l.b16 %v2233
        %v2366 = vunpack.c.l.b16 %v2234
        %v2367 = vunpack.c.l.b16 %v2235
        %v2368 = vunpack.c.l.b16 %v2236
        %v2369 = vunpack.c.l.b16 %v2237
        %v2370 = vunpack.c.l.b16 %v2238
        %v2371 = vunpack.c.l.b16 %v2239
        %v2372 = vunpack.c.l.b16 %v2240
        %v2373 = vunpack.c.l.b16 %v2241
        %v2374 = vunpack.c.l.b16 %v2242
        %v2375 = vunpack.c.l.b16 %v2243
        %v2376 = vunpack.c.l.b16 %v2244
        %v2377 = vunpack.c.l.b16 %v2245
        %v2378 = vunpack.c.l.b16 %v2246
        %v2379 = vunpack.c.l.b16 %v2247
        %v2380 = vunpack.c.l.b16 %v2248
        %v2381 = vunpack.c.l.b16 %v2249
        %v2382 = vunpack.c.l.b16 %v2250
        %v2383 = vunpack.c.l.b16 %v2251
        %v2384 = vunpack.c.l.b16 %v2252
        %v2385 = vunpack.c.l.b16 %v2253
        %v2386 = vunpack.c.l.b16 %v2254
        %v2387 = vunpack.c.l.b16 %v2255
        %v2388 = vunpack.c.l.b16 %v2256
        %v2389 = vunpack.c.l.b16 %v2257
        %v2390 = vunpack.c.l.b16 %v2258
        %v2391 = vunpack.c.l.b16 %v2259
        %v2392 = vunpack.c.l.b16 %v2260
        %v2393 = vunpack.c.l.b16 %v2261
        %v2394 = vunpack.c.l.b16 %v2262
        %v2395 = vunpack.c.l.b16 %v2263
        %v2396 = vunpack.c.l.b16 %v2264
        %v2397 = vunpack.c.l.b16 %v2265
        %v2398 = vunpack.c.l.b16 %v2266
        %v2399 = vunpack.c.l.b16 %v2267
        %v2400 = vunpack.c.l.b16 %v2268
        %v2401 = vunpack.c.l.b16 %v2269
        %v2402 = vunpack.c.l.b16 %v2270
        %v2403 = vunpack.c.l.b16 %v2271
        %v2404 = vunpack.c.l.b16 %v2272
        %v2405 = vunpack.c.l.b16 %v2273
        %v2406 = vunpack.c.l.b16 %v2274
        %v2407 = vunpack.c.l.b16 %v2275
        %v2408 = vunpack.c.l.b16 %v2276
        %v2409 = vunpack.c.l.b16 %v2277
        %v2410 = vunpack.c.l.b16 %v2278
        %v2411 = vunpack.c.l.b16 %v2279
        %v2412 = vunpack.c.l.b16 %v2280
        %v2413 = vunpack.c.l.b16 %v2281
        %v2414 = vunpack.c.l.b16 %v2282
        %v2415 = vunpack.c.l.b16 %v2283
        %v2416 = vunpack.c.l.b16 %v2284
        %v2417 = vunpack.c.l.b16 %v2285
        %v2418 = vunpack.c.l.b16 %v2286
        %v2419 = vpack.c.b16 %v2356, %v2355
        %v2420 = vpack.c.b16 %v2358, %v2357
        %v2421 = vpack.c.b16 %v2360, %v2359
        %v2422 = vpack.c.b16 %v2362, %v2361
        %v2423 = vpack.c.b16 %v2364, %v2363
        %v2424 = vpack.c.b16 %v2366, %v2365
        %v2425 = vpack.c.b16 %v2368, %v2367
        %v2426 = vpack.c.b16 %v2370, %v2369
        %v2427 = vpack.c.b16 %v2372, %v2371
        %v2428 = vpack.c.b16 %v2374, %v2373
        %v2429 = vpack.c.b16 %v2376, %v2375
        %v2430 = vpack.c.b16 %v2378, %v2377
        %v2431 = vpack.c.b16 %v2380, %v2379
        %v2432 = vpack.c.b16 %v2382, %v2381
        %v2433 = vpack.c.b16 %v2384, %v2383
        %v2434 = vpack.c.b16 %v2386, %v2385
        %v2435 = vpack.c.b16 %v2388, %v2387
        %v2436 = vpack.c.b16 %v2390, %v2389
        %v2437 = vpack.c.b16 %v2392, %v2391
        %v2438 = vpack.c.b16 %v2394, %v2393
        %v2439 = vpack.c.b16 %v2396, %v2395
        %v2440 = vpack.c.b16 %v2398, %v2397
        %v2441 = vpack.c.b16 %v2400, %v2399
        %v2442 = vpack.c.b16 %v2402, %v2401
        %v2443 = vpack.c.b16 %v2404, %v2403
        %v2444 = vpack.c.b16 %v2406, %v2405
        %v2445 = vpack.c.b16 %v2408, %v2407
        %v2446 = vpack.c.b16 %v2410, %v2409
        %v2447 = vpack.c.b16 %v2412, %v2411
        %v2448 = vpack.c.b16 %v2414, %v2413
        %v2449 = vpack.c.b16 %v2416, %v2415
        %v2450 = vpack.c.b16 %v2418, %v2417
        %2483 = vmatpush.bf16.msra.mxu0 %v2426
        %2484 = vmatpush.bf16.msra.mxu0 %v2425
        %2485 = vmatpush.bf16.msra.mxu0 %v2424
        %2486 = vmatpush.bf16.msra.mxu0 %v2423
        %2487 = vmatpush.bf16.msra.mxu0 %v2422
        %2488 = vmatpush.bf16.msra.mxu0 %v2421
        %2489 = vmatpush.bf16.msra.mxu0 %v2420
        %2490 = vmatpush.bf16.msra.mxu0 %v2419
        %2491 = vmatmul.bf16.gmra.mxu0 %v2215
        %v2492 = vpop.f32.mrf.mxu0
        %v2493 = vadd.f32 %v2289, %v2492
        %v2494 = vpop.f32.mrf.mxu0
        %v2495 = vadd.f32 %v2289, %v2494
        %2496 = vmatmul.bf16.gmra.mxu0 %v2219
        %v2497 = vpop.f32.mrf.mxu0
        %v2498 = vadd.f32 %v2289, %v2497
        %v2499 = vpop.f32.mrf.mxu0
        %v2500 = vadd.f32 %v2289, %v2499
        %2501 = vdwg.mxu0
        %2502 = vmatpush.bf16.msra.mxu0 %v2434
        %2503 = vmatpush.bf16.msra.mxu0 %v2433
        %2504 = vmatpush.bf16.msra.mxu0 %v2432
        %2505 = vmatpush.bf16.msra.mxu0 %v2431
        %2506 = vmatpush.bf16.msra.mxu0 %v2430
        %2507 = vmatpush.bf16.msra.mxu0 %v2429
        %2508 = vmatpush.bf16.msra.mxu0 %v2428
        %2509 = vmatpush.bf16.msra.mxu0 %v2427
        %2510 = vmatmul.bf16.gmra.mxu0 %v2216
        %v2511 = vpop.f32.mrf.mxu0
        %v2512 = vadd.f32 %v2493, %v2511
        %v2513 = vpop.f32.mrf.mxu0
        %v2514 = vadd.f32 %v2495, %v2513
        %2515 = vmatmul.bf16.gmra.mxu0 %v2220
        %v2516 = vpop.f32.mrf.mxu0
        %v2517 = vadd.f32 %v2498, %v2516
        %v2518 = vpop.f32.mrf.mxu0
        %v2519 = vadd.f32 %v2500, %v2518
        %2520 = vdwg.mxu0
        %2521 = vmatpush.bf16.msra.mxu0 %v2442
        %2522 = vmatpush.bf16.msra.mxu0 %v2441
        %2523 = vmatpush.bf16.msra.mxu0 %v2440
        %2524 = vmatpush.bf16.msra.mxu0 %v2439
        %2525 = vmatpush.bf16.msra.mxu0 %v2438
        %2526 = vmatpush.bf16.msra.mxu0 %v2437
        %2527 = vmatpush.bf16.msra.mxu0 %v2436
        %2528 = vmatpush.bf16.msra.mxu0 %v2435
        %2529 = vmatmul.bf16.gmra.mxu0 %v2217
        %v2530 = vpop.f32.mrf.mxu0
        %v2531 = vadd.f32 %v2512, %v2530
        %v2532 = vpop.f32.mrf.mxu0
        %v2533 = vadd.f32 %v2514, %v2532
        %2534 = vmatmul.bf16.gmra.mxu0 %v2221
        %v2535 = vpop.f32.mrf.mxu0
        %v2536 = vadd.f32 %v2517, %v2535
        %v2537 = vpop.f32.mrf.mxu0
        %v2538 = vadd.f32 %v2519, %v2537
        %2539 = vdwg.mxu0
        %2540 = vmatpush.bf16.msra.mxu0 %v2450
        %2541 = vmatpush.bf16.msra.mxu0 %v2449
        %2542 = vmatpush.bf16.msra.mxu0 %v2448
        %2543 = vmatpush.bf16.msra.mxu0 %v2447
        %2544 = vmatpush.bf16.msra.mxu0 %v2446
        %2545 = vmatpush.bf16.msra.mxu0 %v2445
        %2546 = vmatpush.bf16.msra.mxu0 %v2444
        %2547 = vmatpush.bf16.msra.mxu0 %v2443
        %2548 = vmatmul.bf16.gmra.mxu0 %v2218
        %v2549 = vpop.f32.mrf.mxu0
        %v2550 = vadd.f32 %v2531, %v2549
        %v2551 = vpop.f32.mrf.mxu0
        %v2552 = vadd.f32 %v2533, %v2551
        %2553 = vmatmul.bf16.gmra.mxu0 %v2222
        %v2554 = vpop.f32.mrf.mxu0
        %v2555 = vadd.f32 %v2536, %v2554
        %v2556 = vpop.f32.mrf.mxu0
        %v2557 = vadd.f32 %v2538, %v2556
        %2558 = vdwg.mxu0
        %v2559 = vadd.f32 %v863, %v2550
        %v2560 = vadd.f32 %v864, %v2552
        %v2561 = vadd.f32 %v865, %v2555
        %v2562 = vadd.f32 %v866, %v2557
        %v2563 = vmul.f32 %v2559, %v2559
        %v2564 = vmul.f32 %v2560, %v2560
        %v2565 = vmul.f32 %v2561, %v2561
        %v2566 = vmul.f32 %v2562, %v2562
        %2567 = vadd.xlane.f32.xlu0 %v2563
        %v2568 = vpop.xlane.xlu0 %2567
        %2569 = vadd.xlane.f32.xlu0 %v2564
        %v2570 = vpop.xlane.xlu0 %2569
        %2571 = vadd.xlane.f32.xlu0 %v2565
        %v2572 = vpop.xlane.xlu0 %2571
        %2573 = vadd.xlane.f32.xlu0 %v2566
        %v2574 = vpop.xlane.xlu0 %2573
        %v2575 = vmul.f32 %v2568, %v807
        %v2576 = vmul.f32 %v2570, %v807
        %v2577 = vmul.f32 %v2572, %v807
        %v2578 = vmul.f32 %v2574, %v807
        %v2579 = vadd.f32 %v2575, 1e-06
        %v2580 = vadd.f32 %v2576, 1e-06
        %v2581 = vadd.f32 %v2577, 1e-06
        %v2582 = vadd.f32 %v2578, 1e-06
        %v2583 = vrsqrt.pop %v2579
        %v2584 = vmul.f32 %v2583, %v2579
        %v2585 = vmul.f32 %v2584, %v2583
        %v2586 = vmul.f32 0.5, %v2585
        %v2587 = vsub.f32 1.5, %v2586
        %v2588 = vmul.f32 %v2583, %v2587
        %vm2589 = vweird.f32 %v2579
        %vm2590 = vweird.f32 %v2583
        %vm2591 = vmor %vm2589, %vm2590
        %v2592 = vsel %vm2591, %v2583, %v2588
        %v2593 = vrsqrt.pop %v2580
        %v2594 = vmul.f32 %v2593, %v2580
        %v2595 = vmul.f32 %v2594, %v2593
        %v2596 = vmul.f32 0.5, %v2595
        %v2597 = vsub.f32 1.5, %v2596
        %v2598 = vmul.f32 %v2593, %v2597
        %vm2599 = vweird.f32 %v2580
        %vm2600 = vweird.f32 %v2593
        %vm2601 = vmor %vm2599, %vm2600
        %v2602 = vsel %vm2601, %v2593, %v2598
        %v2603 = vrsqrt.pop %v2581
        %v2604 = vmul.f32 %v2603, %v2581
        %v2605 = vmul.f32 %v2604, %v2603
        %v2606 = vmul.f32 0.5, %v2605
        %v2607 = vsub.f32 1.5, %v2606
        %v2608 = vmul.f32 %v2603, %v2607
        %vm2609 = vweird.f32 %v2581
        %vm2610 = vweird.f32 %v2603
        %vm2611 = vmor %vm2609, %vm2610
        %v2612 = vsel %vm2611, %v2603, %v2608
        %v2613 = vrsqrt.pop %v2582
        %v2614 = vmul.f32 %v2613, %v2582
        %v2615 = vmul.f32 %v2614, %v2613
        %v2616 = vmul.f32 0.5, %v2615
        %v2617 = vsub.f32 1.5, %v2616
        %v2618 = vmul.f32 %v2613, %v2617
        %vm2619 = vweird.f32 %v2582
        %vm2620 = vweird.f32 %v2613
        %vm2621 = vmor %vm2619, %vm2620
        %v2622 = vsel %vm2621, %v2613, %v2618
        %v2623 = vmul.f32 %v2559, %v2592
        %v2624 = vmul.f32 %v2560, %v2602
        %v2625 = vmul.f32 %v2561, %v2612
        %v2626 = vmul.f32 %v2562, %v2622
        %v2627 = vmul.f32 %v2623, %v861
        %v2628 = vmul.f32 %v2624, %v861
        %v2629 = vmul.f32 %v2625, %v861
        %v2630 = vmul.f32 %v2626, %v861
        %v2631 = vpack.c.bf16 %v2628, %v2627
        %v2632 = vpack.c.bf16 %v2630, %v2629
        %v2633 = vld [vmem:[%s657] sm:$0xf]
        %v2634 = vld [vmem:[%s657 + $0x4] sm:$0xf]
        %v2635 = vld [vmem:[%s657 + $0x8] sm:$0xf]
        %v2636 = vld [vmem:[%s657 + $0xc] sm:$0xf]
        %v2637 = vld [vmem:[%s657 + $0x10] sm:$0xf]
        %v2638 = vld [vmem:[%s657 + $0x14] sm:$0xf]
        %v2639 = vld [vmem:[%s657 + $0x18] sm:$0xf]
        %v2640 = vld [vmem:[%s657 + $0x1c] sm:$0xf]
        %v2641 = vld [vmem:[%s657 + $0x20] sm:$0xf]
        %v2642 = vld [vmem:[%s657 + $0x24] sm:$0xf]
        %v2643 = vld [vmem:[%s657 + $0x28] sm:$0xf]
        %v2644 = vld [vmem:[%s657 + $0x2c] sm:$0xf]
        %v2645 = vld [vmem:[%s657 + $0x30] sm:$0xf]
        %v2646 = vld [vmem:[%s657 + $0x34] sm:$0xf]
        %v2647 = vld [vmem:[%s657 + $0x38] sm:$0xf]
        %v2648 = vld [vmem:[%s657 + $0x3c] sm:$0xf]
        %v2649 = vld [vmem:[%s666] sm:$0x1]
        %v2651 = vperm.slane %v2649, 0
        %v2669 = vunpack.c.l.b16 %v2633
        %v2670 = vunpack.c.l.b16 %v2634
        %v2671 = vunpack.c.l.b16 %v2635
        %v2672 = vunpack.c.l.b16 %v2636
        %v2673 = vunpack.c.l.b16 %v2637
        %v2674 = vunpack.c.l.b16 %v2638
        %v2675 = vunpack.c.l.b16 %v2639
        %v2676 = vunpack.c.l.b16 %v2640
        %v2677 = vunpack.c.l.b16 %v2641
        %v2678 = vunpack.c.l.b16 %v2642
        %v2679 = vunpack.c.l.b16 %v2643
        %v2680 = vunpack.c.l.b16 %v2644
        %v2681 = vunpack.c.l.b16 %v2645
        %v2682 = vunpack.c.l.b16 %v2646
        %v2683 = vunpack.c.l.b16 %v2647
        %v2684 = vunpack.c.l.b16 %v2648
        %v2685 = vpack.c.b16 %v2670, %v2669
        %v2686 = vpack.c.b16 %v2672, %v2671
        %v2687 = vpack.c.b16 %v2674, %v2673
        %v2688 = vpack.c.b16 %v2676, %v2675
        %v2689 = vpack.c.b16 %v2678, %v2677
        %v2690 = vpack.c.b16 %v2680, %v2679
        %v2691 = vpack.c.b16 %v2682, %v2681
        %v2692 = vpack.c.b16 %v2684, %v2683
        %2701 = vmatpush.bf16.msra.mxu0 %v2692
        %2702 = vmatpush.bf16.msra.mxu0 %v2691
        %2703 = vmatpush.bf16.msra.mxu0 %v2690
        %2704 = vmatpush.bf16.msra.mxu0 %v2689
        %2705 = vmatpush.bf16.msra.mxu0 %v2688
        %2706 = vmatpush.bf16.msra.mxu0 %v2687
        %2707 = vmatpush.bf16.msra.mxu0 %v2686
        %2708 = vmatpush.bf16.msra.mxu0 %v2685
        %2709 = vmatmul.bf16.gmra.mxu0 %v2631
        %v2710 = vpop.f32.mrf.mxu0
        %v2711 = vadd.f32 %v2651, %v2710
        %v2712 = vpop.f32.mrf.mxu0
        %v2713 = vadd.f32 %v2651, %v2712
        %2714 = vmatmul.bf16.gmra.mxu0 %v2632
        %v2715 = vpop.f32.mrf.mxu0
        %v2716 = vadd.f32 %v2651, %v2715
        %v2717 = vpop.f32.mrf.mxu0
        %v2718 = vadd.f32 %v2651, %v2717
        %2719 = vdwg.mxu0
        %v2720 = vpack.c.bf16 %v2713, %v2711
        %v2721 = vpack.c.bf16 %v2718, %v2716
        %v2722 = vld [vmem:[%s676] sm:$0xff]
        %v2723 = vld [vmem:[%s676 + $0x8] sm:$0xff]
        %v2724 = vld [vmem:[%s676 + $0x10] sm:$0xff]
        %v2725 = vld [vmem:[%s676 + $0x18] sm:$0xff]
        %v2726 = vld [vmem:[%s676 + $0x20] sm:$0xff]
        %v2727 = vld [vmem:[%s676 + $0x28] sm:$0xff]
        %v2728 = vld [vmem:[%s676 + $0x30] sm:$0xff]
        %v2729 = vld [vmem:[%s676 + $0x38] sm:$0xff]
        %v2730 = vld [vmem:[%s676 + $0x40] sm:$0xff]
        %v2731 = vld [vmem:[%s676 + $0x48] sm:$0xff]
        %v2732 = vld [vmem:[%s676 + $0x50] sm:$0xff]
        %v2733 = vld [vmem:[%s676 + $0x58] sm:$0xff]
        %v2734 = vld [vmem:[%s676 + $0x60] sm:$0xff]
        %v2735 = vld [vmem:[%s676 + $0x68] sm:$0xff]
        %v2736 = vld [vmem:[%s676 + $0x70] sm:$0xff]
        %v2737 = vld [vmem:[%s676 + $0x78] sm:$0xff]
        %v2738 = vld [vmem:[%s771] sm:$0x3]
        %v2740 = vperm.slane %v2738, 0
        %v2741 = vperm.slane %v2738, 1
        %v2760 = vunpack.c.l.b16 %v2722
        %v2761 = vunpack.c.h.b16 %v2722
        %v2762 = vunpack.c.l.b16 %v2723
        %v2763 = vunpack.c.h.b16 %v2723
        %v2764 = vunpack.c.l.b16 %v2724
        %v2765 = vunpack.c.h.b16 %v2724
        %v2766 = vunpack.c.l.b16 %v2725
        %v2767 = vunpack.c.h.b16 %v2725
        %v2768 = vunpack.c.l.b16 %v2726
        %v2769 = vunpack.c.h.b16 %v2726
        %v2770 = vunpack.c.l.b16 %v2727
        %v2771 = vunpack.c.h.b16 %v2727
        %v2772 = vunpack.c.l.b16 %v2728
        %v2773 = vunpack.c.h.b16 %v2728
        %v2774 = vunpack.c.l.b16 %v2729
        %v2775 = vunpack.c.h.b16 %v2729
        %v2776 = vunpack.c.l.b16 %v2730
        %v2777 = vunpack.c.h.b16 %v2730
        %v2778 = vunpack.c.l.b16 %v2731
        %v2779 = vunpack.c.h.b16 %v2731
        %v2780 = vunpack.c.l.b16 %v2732
        %v2781 = vunpack.c.h.b16 %v2732
        %v2782 = vunpack.c.l.b16 %v2733
        %v2783 = vunpack.c.h.b16 %v2733
        %v2784 = vunpack.c.l.b16 %v2734
        %v2785 = vunpack.c.h.b16 %v2734
        %v2786 = vunpack.c.l.b16 %v2735
        %v2787 = vunpack.c.h.b16 %v2735
        %v2788 = vunpack.c.l.b16 %v2736
        %v2789 = vunpack.c.h.b16 %v2736
        %v2790 = vunpack.c.l.b16 %v2737
        %v2791 = vunpack.c.h.b16 %v2737
        %v2792 = vpack.c.b16 %v2762, %v2760
        %v2793 = vpack.c.b16 %v2763, %v2761
        %v2794 = vpack.c.b16 %v2766, %v2764
        %v2795 = vpack.c.b16 %v2767, %v2765
        %v2796 = vpack.c.b16 %v2770, %v2768
        %v2797 = vpack.c.b16 %v2771, %v2769
        %v2798 = vpack.c.b16 %v2774, %v2772
        %v2799 = vpack.c.b16 %v2775, %v2773
        %v2800 = vpack.c.b16 %v2778, %v2776
        %v2801 = vpack.c.b16 %v2779, %v2777
        %v2802 = vpack.c.b16 %v2782, %v2780
        %v2803 = vpack.c.b16 %v2783, %v2781
        %v2804 = vpack.c.b16 %v2786, %v2784
        %v2805 = vpack.c.b16 %v2787, %v2785
        %v2806 = vpack.c.b16 %v2790, %v2788
        %v2807 = vpack.c.b16 %v2791, %v2789
        %2824 = vmatpush.bf16.msra.mxu0 %v2806
        %2825 = vmatpush.bf16.msra.mxu0 %v2804
        %2826 = vmatpush.bf16.msra.mxu0 %v2802
        %2827 = vmatpush.bf16.msra.mxu0 %v2800
        %2828 = vmatpush.bf16.msra.mxu0 %v2798
        %2829 = vmatpush.bf16.msra.mxu0 %v2796
        %2830 = vmatpush.bf16.msra.mxu0 %v2794
        %2831 = vmatpush.bf16.msra.mxu0 %v2792
        %2832 = vmatmul.bf16.gmra.mxu0 %v2720
        %v2833 = vpop.f32.mrf.mxu0
        %v2834 = vadd.f32 %v2740, %v2833
        %v2835 = vpop.f32.mrf.mxu0
        %v2836 = vadd.f32 %v2740, %v2835
        %2837 = vmatmul.bf16.gmra.mxu0 %v2721
        %v2838 = vpop.f32.mrf.mxu0
        %v2839 = vadd.f32 %v2740, %v2838
        %v2840 = vpop.f32.mrf.mxu0
        %v2841 = vadd.f32 %v2740, %v2840
        %2842 = vdwg.mxu0
        %2843 = vmatpush.bf16.msra.mxu0 %v2807
        %2844 = vmatpush.bf16.msra.mxu0 %v2805
        %2845 = vmatpush.bf16.msra.mxu0 %v2803
        %2846 = vmatpush.bf16.msra.mxu0 %v2801
        %2847 = vmatpush.bf16.msra.mxu0 %v2799
        %2848 = vmatpush.bf16.msra.mxu0 %v2797
        %2849 = vmatpush.bf16.msra.mxu0 %v2795
        %2850 = vmatpush.bf16.msra.mxu0 %v2793
        %2851 = vmatmul.bf16.gmra.mxu0 %v2720
        %v2852 = vpop.f32.mrf.mxu0
        %v2853 = vadd.f32 %v2741, %v2852
        %v2854 = vpop.f32.mrf.mxu0
        %v2855 = vadd.f32 %v2741, %v2854
        %2856 = vmatmul.bf16.gmra.mxu0 %v2721
        %v2857 = vpop.f32.mrf.mxu0
        %v2858 = vadd.f32 %v2741, %v2857
        %v2859 = vpop.f32.mrf.mxu0
        %v2860 = vadd.f32 %v2741, %v2859
        %2861 = vdwg.mxu0
        %v2862 = vmul.f32 %v2834, 0.5
        %v2863 = vmul.f32 %v2836, 0.5
        %v2864 = vmul.f32 %v2839, 0.5
        %v2865 = vmul.f32 %v2841, 0.5
        %v2866 = vtanh.pop %v2862
        %v2867 = vtanh.pop %v2863
        %v2868 = vtanh.pop %v2864
        %v2869 = vtanh.pop %v2865
        %v2870 = vadd.f32 %v2866, 1.0
        %v2871 = vadd.f32 %v2867, 1.0
        %v2872 = vadd.f32 %v2868, 1.0
        %v2873 = vadd.f32 %v2869, 1.0
        %v2874 = vmul.f32 %v2870, 0.5
        %v2875 = vmul.f32 %v2871, 0.5
        %v2876 = vmul.f32 %v2872, 0.5
        %v2877 = vmul.f32 %v2873, 0.5
        %v2878 = vmul.f32 %v2834, %v2874
        %v2879 = vmul.f32 %v2836, %v2875
        %v2880 = vmul.f32 %v2839, %v2876
        %v2881 = vmul.f32 %v2841, %v2877
        %v2882 = vmul.f32 %v2853, %v2878
        %v2883 = vmul.f32 %v2855, %v2879
        %v2884 = vmul.f32 %v2858, %v2880
        %v2885 = vmul.f32 %v2860, %v2881
        %v2886 = vadd.f32 %v2627, %v2882
        %v2887 = vadd.f32 %v2628, %v2883
        %v2888 = vadd.f32 %v2629, %v2884
        %v2889 = vadd.f32 %v2630, %v2885
        %2890 = vst [vmem:[#allocation2] sm:$0xff] %v2886
        %2891 = vst [vmem:[#allocation2 + $0x8] sm:$0xff] %v2887
        %2892 = vst [vmem:[#allocation2 + $0x10] sm:$0xff] %v2888
        %2893 = vst [vmem:[#allocation2 + $0x18] sm:$0xff] %v2889
        %p2894 = scmp.eq.s32.totalorder %s39, 1
        // Predicated region
        $region121: #{tpu_custom_call.1} parent=71 // pred_check
          %p2895 = pneg %p2894
        $region122: #{tpu_custom_call.1} parent=71 // pred_check_branch
          %2897 = sbr.rel (%p2895) target = $region124
        $region123: #{tpu_custom_call.1} parent=71 // pred_region
          %2898 = vst [vmem:[#allocation21] sm:$0xff] %v2886
          %2899 = vst [vmem:[#allocation21 + $0x8] sm:$0xff] %v2887
          %2900 = vst [vmem:[#allocation21 + $0x10] sm:$0xff] %v2888
          %2901 = vst [vmem:[#allocation21 + $0x18] sm:$0xff] %v2889
        $region124: #{tpu_custom_call.1} parent=71 // pred_fallthru
          _
        // Predicated region
        $region125: #{tpu_custom_call.1} parent=71 // pred_check
          %p2902 = pneg %p370
        $region126: #{tpu_custom_call.1} parent=71 // pred_check_branch
          %2904 = sbr.rel (%p2902) target = $region128
        $region127: #{tpu_custom_call.1} parent=71 // pred_region
          %2906 = vsyncadd [#allocation5], 0
          %s2907 = sshll.u32 [#allocation21], 4
          %s2908 = int_to_ptr.vmem [resolvable:$true] %s2907
          %s2909 = sshll.u32 %s13, 4
          %s2910 = int_to_ptr.hbm [resolvable:$true] %s2909
          %2915 = dma.vmem_to_hbm [thread:$0]  %s2908, 512, %s2910, [#allocation5], 128, 128, 8
        $region128: #{tpu_custom_call.1} parent=71 // pred_fallthru
          _
        // Predicated region
        $region129: #{tpu_custom_call.1} parent=71 // pred_check
          %p2916 = pneg %p370
        $region130: #{tpu_custom_call.1} parent=71 // pred_check_branch
          %2918 = sbr.rel (%p2916) target = $region132
        $region131: #{tpu_custom_call.1} parent=71 // pred_region
          %2920 = dma.done [#allocation5], 512
        $region132: #{tpu_custom_call.1} parent=71 // pred_fallthru
          _
      $region72: #{tpu_custom_call.1} parent=5 // pred_fallthru
        _
      %p2921 = scmp.le.s32.totalorder 2, %s34
      // Predicated region
      $region133: #{tpu_custom_call.1} parent=5 // pred_check
        %p2922 = pneg %p2921
      $region134: #{tpu_custom_call.1} parent=5 // pred_check_branch
        %2924 = sbr.rel (%p2922) target = $region136
      $region135: #{tpu_custom_call.1} parent=5 // pred_region
        %s2925 = ssub.s32 %s34, 2
      $region136: #{tpu_custom_call.1} parent=5 // pred_fallthru
        _
    $region6: #{tpu_custom_call.1} parent=1 // loop_footer
      %s38 = sadd.s32 1, %s34
    $region7: #{tpu_custom_call.1} parent=1 // loop_footer_branch
      %33 = sbr.rel target = $region3
    $region8: #{tpu_custom_call.1} parent=1 // loop_exit
      _
    %2926 = vsyncpa [#allocation4], 1
    %s2927 = scalar_lea.sflag [#allocation4], 1
    %2928 = vsyncpa %s2927, 1
    %2929 = vsyncpa [#allocation7], 1
    %s2930 = scalar_lea.sflag [#allocation7], 1
    %2931 = vsyncpa %s2930, 1
    %2932 = vsyncpa [#allocation10], 1
    %s2933 = scalar_lea.sflag [#allocation10], 1
    %2934 = vsyncpa %s2933, 1
    %2935 = vsyncpa [#allocation13], 1
    %s2936 = scalar_lea.sflag [#allocation13], 1
    %2937 = vsyncpa %s2936, 1
    %2938 = vsyncpa [#allocation16], 1
    %s2939 = scalar_lea.sflag [#allocation16], 1
    %2940 = vsyncpa %s2939, 1
    %2941 = vsyncpa [#allocation19], 1
    %2942 = vsyncpa [#allocation5], 1
    %s2943 = scalar_lea.sflag [#allocation5], 1
    %2944 = vsyncpa %s2943, 1

</llo_original>
